<compile_context>
chip_gen: v5e
topology: v5e:2x2
jax: 0.10.0
libtpu: 0.0.40
codegen_flags: <defaults>
</compile_context>

<pallas_src>
import functools

import jax
import jax.numpy as jnp
import numpy as np
from jax.experimental import pallas as pl
from jax.experimental.pallas import tpu as pltpu


def _round_up(x, m):
    return ((x + m - 1) // m) * m


# ---------------------------------------------------------------------------
# Fused Bottleneck kernel (one image per grid step)
# ---------------------------------------------------------------------------

def _bottleneck_kernel(xp_ref, w1_ref, w2_ref, w3_ref,
                       bn1_ref, bn2_ref, bn3_ref, o_ref, *, H, W):
    # xp_ref : (1, H+2, Wp, CI)  bf16   spatially padded, channel padded input
    # w1_ref : (CI, CW) bf16, w2_ref: (9, CW, CW) bf16, w3_ref: (CW, CO) bf16
    # bn*_ref: (2, C)   f32  row0 = scale, row1 = shift (folded eval-mode BN)
    # o_ref  : (1, H, W, CO) f32
    Hp, Wp, CI = xp_ref.shape[1:]
    CW = w1_ref.shape[1]
    CO = w3_ref.shape[1]
    Mp = Hp * Wp
    M = H * W

    xp = xp_ref[0]                                        # (Hp, Wp, CI) bf16

    # ---- conv1 (1x1) + bn1 + relu over the padded extent -------------------
    y1 = jnp.dot(xp.reshape(Mp, CI), w1_ref[...],
                 preferred_element_type=jnp.float32)      # (Mp, CW) f32
    y1 = jnp.maximum(y1 * bn1_ref[0:1, :] + bn1_ref[1:2, :], 0.0)
    y1 = y1.reshape(Hp, Wp, CW)

    # Re-zero the padding ring so it matches the 3x3 conv's zero padding
    # (zero input -> bn shift -> relu would otherwise leave relu(b1) there).
    hh = jax.lax.broadcasted_iota(jnp.int32, (Hp, Wp, CW), 0)
    ww = jax.lax.broadcasted_iota(jnp.int32, (Hp, Wp, CW), 1)
    interior = (hh >= 1) & (hh <= H) & (ww >= 1) & (ww <= W)
    y1 = jnp.where(interior, y1, 0.0)

    # ---- conv2 (3x3, pad=1, stride=1) + bn2 + relu --------------------------
    # One W-shifted copy per kx (3 total); ky handled by cheap leading-dim
    # slices + layout-preserving reshapes.  9 bf16 MXU matmuls, f32 accumulate.
    acc = jnp.zeros((M, CW), jnp.float32)
    for kx in range(3):
        xs = y1[:, kx:kx + W, :].astype(jnp.bfloat16)     # (Hp, W, CW) bf16
        for ky in range(3):
            tap = xs[ky:ky + H].reshape(M, CW)            # (M, CW) bf16
            acc = acc + jnp.dot(tap, w2_ref[ky * 3 + kx],
                                preferred_element_type=jnp.float32)
    y2 = jnp.maximum(acc * bn2_ref[0:1, :] + bn2_ref[1:2, :], 0.0)

    # ---- conv3 (1x1) + bn3 + identity skip + relu ---------------------------
    y3 = jnp.dot(y2.astype(jnp.bfloat16), w3_ref[...],
                 preferred_element_type=jnp.float32)      # (M, CO) f32
    y3 = y3 * bn3_ref[0:1, :] + bn3_ref[1:2, :]
    skip = xp.astype(jnp.float32)[1:H + 1, 1:W + 1, :].reshape(M, CI)
    out = jnp.maximum(y3 + skip, 0.0)
    o_ref[0] = out.reshape(H, W, CO).astype(o_ref.dtype)


# ---------------------------------------------------------------------------
# Host wrapper
# ---------------------------------------------------------------------------

def bottleneck_forward_pallas(x_nchw, p):
    """Equivalent of Bottleneck.forward (stride=1, downsample=None)."""
    N, Cin, H, W = x_nchw.shape
    width = p['w1'].shape[1]
    Cout = p['w3'].shape[1]
    if Cin != Cout:
        raise NotImplementedError(
            "identity skip requires inplanes == planes * expansion "
            "(stride>1 / downsample not implemented)")

    CIp = _round_up(Cin, 128)          # lane-dense channel padding
    CWp = _round_up(width, 128)
    COp = _round_up(Cout, 128)
    Hp = H + 2
    Wp = _round_up(W + 2, 16)          # keep (Hp*Wp, C) merges bf16-tile aligned

    # Single host-side relayout: NCHW -> NHWC, pad channels to the lane width,
    # add the 3x3 spatial halo, cast to bf16.
    x = jnp.transpose(x_nchw, (0, 2, 3, 1)).astype(jnp.float32)
    xp = jnp.pad(x, ((0, 0), (1, 1), (1, Wp - W - 1),
                     (0, CIp - Cin))).astype(jnp.bfloat16)

    w1 = jnp.pad(p['w1'], ((0, CIp - Cin), (0, CWp - width))).astype(jnp.bfloat16)
    w2 = jnp.pad(p['w2'].reshape(9, width, width),
                 ((0, 0), (0, CWp - width), (0, CWp - width))).astype(jnp.bfloat16)
    w3 = jnp.pad(p['w3'], ((0, CWp - width), (0, COp - Cout))).astype(jnp.bfloat16)

    def pack_bn(sb, cpad):
        s, b = sb
        c = s.shape[0]
        return jnp.pad(jnp.stack([s, b]).astype(jnp.float32),
                       ((0, 0), (0, cpad - c)))

    bn1 = pack_bn(p['bn1'], CWp)
    bn2 = pack_bn(p['bn2'], CWp)
    bn3 = pack_bn(p['bn3'], COp)

    out = pl.pallas_call(
        functools.partial(_bottleneck_kernel, H=H, W=W),
        out_shape=jax.ShapeDtypeStruct((N, H, W, COp), jnp.float32),
        grid=(N,),
        in_specs=[
            pl.BlockSpec((1, Hp, Wp, CIp), lambda n: (n, 0, 0, 0)),
            pl.BlockSpec((CIp, CWp), lambda n: (0, 0)),
            pl.BlockSpec((9, CWp, CWp), lambda n: (0, 0, 0)),
            pl.BlockSpec((CWp, COp), lambda n: (0, 0)),
            pl.BlockSpec((2, CWp), lambda n: (0, 0)),
            pl.BlockSpec((2, CWp), lambda n: (0, 0)),
            pl.BlockSpec((2, COp), lambda n: (0, 0)),
        ],
        out_specs=pl.BlockSpec((1, H, W, COp), lambda n: (n, 0, 0, 0)),
        compiler_params=pltpu.CompilerParams(
            dimension_semantics=("parallel",),
            vmem_limit_bytes=32 * 1024 * 1024),
    )(xp, w1, w2, w3, bn1, bn2, bn3)

    out = out[..., :Cout]
    return jnp.transpose(out, (0, 3, 1, 2))               # back to NCHW


# ---------------------------------------------------------------------------
# Pure-JAX reference (same bf16 rounding points, f32 accumulation)
# ---------------------------------------------------------------------------

def bottleneck_forward_ref(x_nchw, p):
    dn = ('NHWC', 'HWIO', 'NHWC')

    def affine(y, sb):
        s, b = sb
        return y * s.reshape(1, 1, 1, -1) + b.reshape(1, 1, 1, -1)

    x = jnp.transpose(x_nchw, (0, 2, 3, 1)).astype(jnp.bfloat16)
    w1 = p['w1'].astype(jnp.bfloat16).reshape(1, 1, *p['w1'].shape)
    w2 = p['w2'].astype(jnp.bfloat16)
    w3 = p['w3'].astype(jnp.bfloat16).reshape(1, 1, *p['w3'].shape)

    y = jax.lax.conv_general_dilated(x, w1, (1, 1), 'VALID',
                                     dimension_numbers=dn,
                                     preferred_element_type=jnp.float32)
    y = jax.nn.relu(affine(y, p['bn1'])).astype(jnp.bfloat16)
    y = jax.lax.conv_general_dilated(y, w2, (1, 1), [(1, 1), (1, 1)],
                                     dimension_numbers=dn,
                                     preferred_element_type=jnp.float32)
    y = jax.nn.relu(affine(y, p['bn2'])).astype(jnp.bfloat16)
    y = jax.lax.conv_general_dilated(y, w3, (1, 1), 'VALID',
                                     dimension_numbers=dn,
                                     preferred_element_type=jnp.float32)
    y = affine(y, p['bn3'])
    out = jax.nn.relu(x.astype(jnp.float32) + y)
    return jnp.transpose(out, (0, 3, 1, 2))


# ---------------------------------------------------------------------------
# Deterministic parameter construction
# ---------------------------------------------------------------------------

def ternarize(w):
    """TWN ternarization: {-1, 0, +1}, threshold 0.7 * mean(|w|), no scaling."""
    delta = 0.7 * jnp.mean(jnp.abs(w))
    return jnp.where(jnp.abs(w) > delta, jnp.sign(w), 0.0).astype(jnp.float32)


def fold_bn(gamma, beta, running_mean, running_var, eps=1e-5):
    scale = gamma / jnp.sqrt(running_var + eps)
    shift = beta - running_mean * scale
    return scale.astype(jnp.float32), shift.astype(jnp.float32)


def make_params(key, inplanes, planes, base_width=64, groups=1, expansion=4):
    width = int(planes * base_width / 64) * groups
    out_planes = planes * expansion
    ks = jax.random.split(key, 15)

    # Torch-style OIHW raw weights -> ternarize -> kernel layouts
    w1_raw = 0.1 * jax.random.normal(ks[0], (width, inplanes, 1, 1))
    w2_raw = 0.1 * jax.random.normal(ks[1], (width, width, 3, 3))
    w3_raw = 0.1 * jax.random.normal(ks[2], (out_planes, width, 1, 1))

    w1 = ternarize(w1_raw)[:, :, 0, 0].T                    # (Cin, width)
    w2 = jnp.transpose(ternarize(w2_raw), (2, 3, 1, 0))     # (3,3,Cin,Cout) HWIO
    w3 = ternarize(w3_raw)[:, :, 0, 0].T                    # (width, out_planes)

    def bn(kg, kb, km, kv, c):
        gamma = 0.5 + jax.random.uniform(kg, (c,))
        beta = 0.1 * jax.random.normal(kb, (c,))
        mean = 0.1 * jax.random.normal(km, (c,))
        var = 0.5 + jax.random.uniform(kv, (c,))
        return fold_bn(gamma, beta, mean, var)

    return {
        'w1': w1, 'w2': w2, 'w3': w3,
        'bn1': bn(ks[3], ks[4], ks[5], ks[6], width),
        'bn2': bn(ks[7], ks[8], ks[9], ks[10], width),
        'bn3': bn(ks[11], ks[12], ks[13], ks[14], out_planes),
    }


# ---------------------------------------------------------------------------

if __name__ == "__main__":
    # Bottleneck(inplanes=16, planes=4) -> width=4, out_planes=16 (identity skip)
    N, inplanes, planes, H, W = 2, 16, 4, 16, 16

    key = jax.random.PRNGKey(0)
    k_x, k_p = jax.random.split(key)
    x = jax.random.normal(k_x, (N, inplanes, H, W), dtype=jnp.float32)   # NCHW
    params = make_params(k_p, inplanes, planes)

    out = jax.block_until_ready(bottleneck_forward_pallas(x, params))
    ref = jax.block_until_ready(bottleneck_forward_ref(x, params))

    assert out.shape == (N, planes * 4, H, W), out.shape
    np.testing.assert_allclose(np.asarray(out), np.asarray(ref),
                               rtol=1e-2, atol=1e-2)
    print("KERNEL_OK")
</pallas_src>

<mosaic_0001>
module attributes {stable_mosaic.version = 11 : i64} {
  func.func @_bottleneck_kernel(%arg0: i32, %arg1: memref<1x18x32x128xbf16, #tpu.memory_space<vmem>>, %arg2: memref<128x128xbf16, #tpu.memory_space<vmem>>, %arg3: memref<9x128x128xbf16, #tpu.memory_space<vmem>>, %arg4: memref<128x128xbf16, #tpu.memory_space<vmem>>, %arg5: memref<2x128xf32, #tpu.memory_space<vmem>>, %arg6: memref<2x128xf32, #tpu.memory_space<vmem>>, %arg7: memref<2x128xf32, #tpu.memory_space<vmem>>, %arg8: memref<1x16x16x128xf32, #tpu.memory_space<vmem>>) attributes {dimension_semantics = [#tpu.dimension_semantics<parallel>], iteration_bounds = array<i64: 2>, scalar_prefetch = 0 : i64, scratch_operands = 0 : i64, tpu.core_type = #tpu.core_type<tc>, window_params = [{transform_indices = @transform_0, window_bounds = array<i64: 1, 18, 32, 128>}, {pipeline_mode = #tpu.pipeline_mode<synchronous>, transform_indices = @transform_1, window_bounds = array<i64: 128, 128>}, {pipeline_mode = #tpu.pipeline_mode<synchronous>, transform_indices = @transform_2, window_bounds = array<i64: 9, 128, 128>}, {pipeline_mode = #tpu.pipeline_mode<synchronous>, transform_indices = @transform_3, window_bounds = array<i64: 128, 128>}, {pipeline_mode = #tpu.pipeline_mode<synchronous>, transform_indices = @transform_4, window_bounds = array<i64: 2, 128>}, {pipeline_mode = #tpu.pipeline_mode<synchronous>, transform_indices = @transform_5, window_bounds = array<i64: 2, 128>}, {pipeline_mode = #tpu.pipeline_mode<synchronous>, transform_indices = @transform_6, window_bounds = array<i64: 2, 128>}, {transform_indices = @transform_7, window_bounds = array<i64: 1, 16, 16, 128>}]} {
    %c0 = arith.constant 0 : index
    %c0_0 = arith.constant 0 : index
    %c0_1 = arith.constant 0 : index
    %c0_2 = arith.constant 0 : index
    %0 = vector.load %arg1[%c0, %c0_0, %c0_1, %c0_2] : memref<1x18x32x128xbf16, #tpu.memory_space<vmem>>, vector<1x18x32x128xbf16>
    %1 = vector.shape_cast %0 : vector<1x18x32x128xbf16> to vector<18x32x128xbf16>
    %2 = vector.shape_cast %1 : vector<18x32x128xbf16> to vector<576x128xbf16>
    %c0_3 = arith.constant 0 : index
    %c0_4 = arith.constant 0 : index
    %3 = vector.load %arg2[%c0_3, %c0_4] : memref<128x128xbf16, #tpu.memory_space<vmem>>, vector<128x128xbf16>
    %cst = arith.constant dense<0.000000e+00> : vector<576x128xf32>
    %4 = tpu.matmul %2, %3, %cst {dimension_numbers = #tpu.dot_dimension_numbers<[1], [0], [0], [1], [0, 0, 1, 1], [], []>} : vector<576x128xbf16>, vector<128x128xbf16>, vector<576x128xf32> -> vector<576x128xf32>
    %c0_5 = arith.constant 0 : index
    %c0_6 = arith.constant 0 : index
    %5 = vector.load %arg5[%c0_5, %c0_6] : memref<2x128xf32, #tpu.memory_space<vmem>>, vector<1x128xf32>
    %6 = vector.broadcast %5 : vector<1x128xf32> to vector<576x128xf32>
    %7 = arith.mulf %4, %6 : vector<576x128xf32>
    %c1 = arith.constant 1 : index
    %c0_7 = arith.constant 0 : index
    %8 = vector.load %arg5[%c1, %c0_7] : memref<2x128xf32, #tpu.memory_space<vmem>>, vector<1x128xf32>
    %9 = vector.broadcast %8 : vector<1x128xf32> to vector<576x128xf32>
    %10 = arith.addf %7, %9 : vector<576x128xf32>
    %cst_8 = arith.constant 0.000000e+00 : f32
    %11 = vector.broadcast %cst_8 : f32 to vector<576x128xf32>
    %12 = arith.maximumf %10, %11 : vector<576x128xf32>
    %13 = vector.shape_cast %12 : vector<576x128xf32> to vector<18x32x128xf32>
    %14 = tpu.iota {dimensions = array<i32: 0>} : vector<18x32x128xi32>
    %15 = tpu.iota {dimensions = array<i32: 1>} : vector<18x32x128xi32>
    %c1_i32 = arith.constant 1 : i32
    %16 = vector.broadcast %c1_i32 : i32 to vector<18x32x128xi32>
    %17 = arith.cmpi sge, %14, %16 : vector<18x32x128xi32>
    %c16_i32 = arith.constant 16 : i32
    %18 = vector.broadcast %c16_i32 : i32 to vector<18x32x128xi32>
    %19 = arith.cmpi sle, %14, %18 : vector<18x32x128xi32>
    %20 = arith.andi %17, %19 : vector<18x32x128xi1>
    %c1_i32_9 = arith.constant 1 : i32
    %21 = vector.broadcast %c1_i32_9 : i32 to vector<18x32x128xi32>
    %22 = arith.cmpi sge, %15, %21 : vector<18x32x128xi32>
    %23 = arith.andi %20, %22 : vector<18x32x128xi1>
    %c16_i32_10 = arith.constant 16 : i32
    %24 = vector.broadcast %c16_i32_10 : i32 to vector<18x32x128xi32>
    %25 = arith.cmpi sle, %15, %24 : vector<18x32x128xi32>
    %26 = arith.andi %23, %25 : vector<18x32x128xi1>
    %cst_11 = arith.constant 0.000000e+00 : f32
    %27 = vector.broadcast %cst_11 : f32 to vector<18x32x128xf32>
    %28 = arith.select %26, %13, %27 : vector<18x32x128xi1>, vector<18x32x128xf32>
    %cst_12 = arith.constant 0.000000e+00 : f32
    %29 = vector.broadcast %cst_12 : f32 to vector<256x128xf32>
    %30 = vector.extract_strided_slice %28 {offsets = [0, 0, 0], sizes = [18, 16, 128], strides = [1, 1, 1]} : vector<18x32x128xf32> to vector<18x16x128xf32>
    %31 = arith.truncf %30 : vector<18x16x128xf32> to vector<18x16x128xbf16>
    %32 = vector.extract_strided_slice %31 {offsets = [0, 0, 0], sizes = [16, 16, 128], strides = [1, 1, 1]} : vector<18x16x128xbf16> to vector<16x16x128xbf16>
    %33 = vector.shape_cast %32 : vector<16x16x128xbf16> to vector<256x128xbf16>
    %c0_13 = arith.constant 0 : index
    %c0_14 = arith.constant 0 : index
    %c0_15 = arith.constant 0 : index
    %34 = vector.load %arg3[%c0_13, %c0_14, %c0_15] : memref<9x128x128xbf16, #tpu.memory_space<vmem>>, vector<1x128x128xbf16>
    %35 = vector.shape_cast %34 : vector<1x128x128xbf16> to vector<128x128xbf16>
    %cst_16 = arith.constant dense<0.000000e+00> : vector<256x128xf32>
    %36 = tpu.matmul %33, %35, %cst_16 {dimension_numbers = #tpu.dot_dimension_numbers<[1], [0], [0], [1], [0, 0, 1, 1], [], []>} : vector<256x128xbf16>, vector<128x128xbf16>, vector<256x128xf32> -> vector<256x128xf32>
    %37 = arith.addf %29, %36 : vector<256x128xf32>
    %38 = vector.extract_strided_slice %31 {offsets = [1, 0, 0], sizes = [16, 16, 128], strides = [1, 1, 1]} : vector<18x16x128xbf16> to vector<16x16x128xbf16>
    %39 = vector.shape_cast %38 : vector<16x16x128xbf16> to vector<256x128xbf16>
    %c3 = arith.constant 3 : index
    %c0_17 = arith.constant 0 : index
    %c0_18 = arith.constant 0 : index
    %40 = vector.load %arg3[%c3, %c0_17, %c0_18] : memref<9x128x128xbf16, #tpu.memory_space<vmem>>, vector<1x128x128xbf16>
    %41 = vector.shape_cast %40 : vector<1x128x128xbf16> to vector<128x128xbf16>
    %cst_19 = arith.constant dense<0.000000e+00> : vector<256x128xf32>
    %42 = tpu.matmul %39, %41, %cst_19 {dimension_numbers = #tpu.dot_dimension_numbers<[1], [0], [0], [1], [0, 0, 1, 1], [], []>} : vector<256x128xbf16>, vector<128x128xbf16>, vector<256x128xf32> -> vector<256x128xf32>
    %43 = arith.addf %37, %42 : vector<256x128xf32>
    %44 = vector.extract_strided_slice %31 {offsets = [2, 0, 0], sizes = [16, 16, 128], strides = [1, 1, 1]} : vector<18x16x128xbf16> to vector<16x16x128xbf16>
    %45 = vector.shape_cast %44 : vector<16x16x128xbf16> to vector<256x128xbf16>
    %c6 = arith.constant 6 : index
    %c0_20 = arith.constant 0 : index
    %c0_21 = arith.constant 0 : index
    %46 = vector.load %arg3[%c6, %c0_20, %c0_21] : memref<9x128x128xbf16, #tpu.memory_space<vmem>>, vector<1x128x128xbf16>
    %47 = vector.shape_cast %46 : vector<1x128x128xbf16> to vector<128x128xbf16>
    %cst_22 = arith.constant dense<0.000000e+00> : vector<256x128xf32>
    %48 = tpu.matmul %45, %47, %cst_22 {dimension_numbers = #tpu.dot_dimension_numbers<[1], [0], [0], [1], [0, 0, 1, 1], [], []>} : vector<256x128xbf16>, vector<128x128xbf16>, vector<256x128xf32> -> vector<256x128xf32>
    %49 = arith.addf %43, %48 : vector<256x128xf32>
    %50 = vector.extract_strided_slice %28 {offsets = [0, 1, 0], sizes = [18, 16, 128], strides = [1, 1, 1]} : vector<18x32x128xf32> to vector<18x16x128xf32>
    %51 = arith.truncf %50 : vector<18x16x128xf32> to vector<18x16x128xbf16>
    %52 = vector.extract_strided_slice %51 {offsets = [0, 0, 0], sizes = [16, 16, 128], strides = [1, 1, 1]} : vector<18x16x128xbf16> to vector<16x16x128xbf16>
    %53 = vector.shape_cast %52 : vector<16x16x128xbf16> to vector<256x128xbf16>
    %c1_23 = arith.constant 1 : index
    %c0_24 = arith.constant 0 : index
    %c0_25 = arith.constant 0 : index
    %54 = vector.load %arg3[%c1_23, %c0_24, %c0_25] : memref<9x128x128xbf16, #tpu.memory_space<vmem>>, vector<1x128x128xbf16>
    %55 = vector.shape_cast %54 : vector<1x128x128xbf16> to vector<128x128xbf16>
    %cst_26 = arith.constant dense<0.000000e+00> : vector<256x128xf32>
    %56 = tpu.matmul %53, %55, %cst_26 {dimension_numbers = #tpu.dot_dimension_numbers<[1], [0], [0], [1], [0, 0, 1, 1], [], []>} : vector<256x128xbf16>, vector<128x128xbf16>, vector<256x128xf32> -> vector<256x128xf32>
    %57 = arith.addf %49, %56 : vector<256x128xf32>
    %58 = vector.extract_strided_slice %51 {offsets = [1, 0, 0], sizes = [16, 16, 128], strides = [1, 1, 1]} : vector<18x16x128xbf16> to vector<16x16x128xbf16>
    %59 = vector.shape_cast %58 : vector<16x16x128xbf16> to vector<256x128xbf16>
    %c4 = arith.constant 4 : index
    %c0_27 = arith.constant 0 : index
    %c0_28 = arith.constant 0 : index
    %60 = vector.load %arg3[%c4, %c0_27, %c0_28] : memref<9x128x128xbf16, #tpu.memory_space<vmem>>, vector<1x128x128xbf16>
    %61 = vector.shape_cast %60 : vector<1x128x128xbf16> to vector<128x128xbf16>
    %cst_29 = arith.constant dense<0.000000e+00> : vector<256x128xf32>
    %62 = tpu.matmul %59, %61, %cst_29 {dimension_numbers = #tpu.dot_dimension_numbers<[1], [0], [0], [1], [0, 0, 1, 1], [], []>} : vector<256x128xbf16>, vector<128x128xbf16>, vector<256x128xf32> -> vector<256x128xf32>
    %63 = arith.addf %57, %62 : vector<256x128xf32>
    %64 = vector.extract_strided_slice %51 {offsets = [2, 0, 0], sizes = [16, 16, 128], strides = [1, 1, 1]} : vector<18x16x128xbf16> to vector<16x16x128xbf16>
    %65 = vector.shape_cast %64 : vector<16x16x128xbf16> to vector<256x128xbf16>
    %c7 = arith.constant 7 : index
    %c0_30 = arith.constant 0 : index
    %c0_31 = arith.constant 0 : index
    %66 = vector.load %arg3[%c7, %c0_30, %c0_31] : memref<9x128x128xbf16, #tpu.memory_space<vmem>>, vector<1x128x128xbf16>
    %67 = vector.shape_cast %66 : vector<1x128x128xbf16> to vector<128x128xbf16>
    %cst_32 = arith.constant dense<0.000000e+00> : vector<256x128xf32>
    %68 = tpu.matmul %65, %67, %cst_32 {dimension_numbers = #tpu.dot_dimension_numbers<[1], [0], [0], [1], [0, 0, 1, 1], [], []>} : vector<256x128xbf16>, vector<128x128xbf16>, vector<256x128xf32> -> vector<256x128xf32>
    %69 = arith.addf %63, %68 : vector<256x128xf32>
    %70 = vector.extract_strided_slice %28 {offsets = [0, 2, 0], sizes = [18, 16, 128], strides = [1, 1, 1]} : vector<18x32x128xf32> to vector<18x16x128xf32>
    %71 = arith.truncf %70 : vector<18x16x128xf32> to vector<18x16x128xbf16>
    %72 = vector.extract_strided_slice %71 {offsets = [0, 0, 0], sizes = [16, 16, 128], strides = [1, 1, 1]} : vector<18x16x128xbf16> to vector<16x16x128xbf16>
    %73 = vector.shape_cast %72 : vector<16x16x128xbf16> to vector<256x128xbf16>
    %c2 = arith.constant 2 : index
    %c0_33 = arith.constant 0 : index
    %c0_34 = arith.constant 0 : index
    %74 = vector.load %arg3[%c2, %c0_33, %c0_34] : memref<9x128x128xbf16, #tpu.memory_space<vmem>>, vector<1x128x128xbf16>
    %75 = vector.shape_cast %74 : vector<1x128x128xbf16> to vector<128x128xbf16>
    %cst_35 = arith.constant dense<0.000000e+00> : vector<256x128xf32>
    %76 = tpu.matmul %73, %75, %cst_35 {dimension_numbers = #tpu.dot_dimension_numbers<[1], [0], [0], [1], [0, 0, 1, 1], [], []>} : vector<256x128xbf16>, vector<128x128xbf16>, vector<256x128xf32> -> vector<256x128xf32>
    %77 = arith.addf %69, %76 : vector<256x128xf32>
    %78 = vector.extract_strided_slice %71 {offsets = [1, 0, 0], sizes = [16, 16, 128], strides = [1, 1, 1]} : vector<18x16x128xbf16> to vector<16x16x128xbf16>
    %79 = vector.shape_cast %78 : vector<16x16x128xbf16> to vector<256x128xbf16>
    %c5 = arith.constant 5 : index
    %c0_36 = arith.constant 0 : index
    %c0_37 = arith.constant 0 : index
    %80 = vector.load %arg3[%c5, %c0_36, %c0_37] : memref<9x128x128xbf16, #tpu.memory_space<vmem>>, vector<1x128x128xbf16>
    %81 = vector.shape_cast %80 : vector<1x128x128xbf16> to vector<128x128xbf16>
    %cst_38 = arith.constant dense<0.000000e+00> : vector<256x128xf32>
    %82 = tpu.matmul %79, %81, %cst_38 {dimension_numbers = #tpu.dot_dimension_numbers<[1], [0], [0], [1], [0, 0, 1, 1], [], []>} : vector<256x128xbf16>, vector<128x128xbf16>, vector<256x128xf32> -> vector<256x128xf32>
    %83 = arith.addf %77, %82 : vector<256x128xf32>
    %84 = vector.extract_strided_slice %71 {offsets = [2, 0, 0], sizes = [16, 16, 128], strides = [1, 1, 1]} : vector<18x16x128xbf16> to vector<16x16x128xbf16>
    %85 = vector.shape_cast %84 : vector<16x16x128xbf16> to vector<256x128xbf16>
    %c8 = arith.constant 8 : index
    %c0_39 = arith.constant 0 : index
    %c0_40 = arith.constant 0 : index
    %86 = vector.load %arg3[%c8, %c0_39, %c0_40] : memref<9x128x128xbf16, #tpu.memory_space<vmem>>, vector<1x128x128xbf16>
    %87 = vector.shape_cast %86 : vector<1x128x128xbf16> to vector<128x128xbf16>
    %cst_41 = arith.constant dense<0.000000e+00> : vector<256x128xf32>
    %88 = tpu.matmul %85, %87, %cst_41 {dimension_numbers = #tpu.dot_dimension_numbers<[1], [0], [0], [1], [0, 0, 1, 1], [], []>} : vector<256x128xbf16>, vector<128x128xbf16>, vector<256x128xf32> -> vector<256x128xf32>
    %89 = arith.addf %83, %88 : vector<256x128xf32>
    %c0_42 = arith.constant 0 : index
    %c0_43 = arith.constant 0 : index
    %90 = vector.load %arg6[%c0_42, %c0_43] : memref<2x128xf32, #tpu.memory_space<vmem>>, vector<1x128xf32>
    %91 = vector.broadcast %90 : vector<1x128xf32> to vector<256x128xf32>
    %92 = arith.mulf %89, %91 : vector<256x128xf32>
    %c1_44 = arith.constant 1 : index
    %c0_45 = arith.constant 0 : index
    %93 = vector.load %arg6[%c1_44, %c0_45] : memref<2x128xf32, #tpu.memory_space<vmem>>, vector<1x128xf32>
    %94 = vector.broadcast %93 : vector<1x128xf32> to vector<256x128xf32>
    %95 = arith.addf %92, %94 : vector<256x128xf32>
    %cst_46 = arith.constant 0.000000e+00 : f32
    %96 = vector.broadcast %cst_46 : f32 to vector<256x128xf32>
    %97 = arith.maximumf %95, %96 : vector<256x128xf32>
    %98 = arith.truncf %97 : vector<256x128xf32> to vector<256x128xbf16>
    %c0_47 = arith.constant 0 : index
    %c0_48 = arith.constant 0 : index
    %99 = vector.load %arg4[%c0_47, %c0_48] : memref<128x128xbf16, #tpu.memory_space<vmem>>, vector<128x128xbf16>
    %cst_49 = arith.constant dense<0.000000e+00> : vector<256x128xf32>
    %100 = tpu.matmul %98, %99, %cst_49 {dimension_numbers = #tpu.dot_dimension_numbers<[1], [0], [0], [1], [0, 0, 1, 1], [], []>} : vector<256x128xbf16>, vector<128x128xbf16>, vector<256x128xf32> -> vector<256x128xf32>
    %c0_50 = arith.constant 0 : index
    %c0_51 = arith.constant 0 : index
    %101 = vector.load %arg7[%c0_50, %c0_51] : memref<2x128xf32, #tpu.memory_space<vmem>>, vector<1x128xf32>
    %102 = vector.broadcast %101 : vector<1x128xf32> to vector<256x128xf32>
    %103 = arith.mulf %100, %102 : vector<256x128xf32>
    %c1_52 = arith.constant 1 : index
    %c0_53 = arith.constant 0 : index
    %104 = vector.load %arg7[%c1_52, %c0_53] : memref<2x128xf32, #tpu.memory_space<vmem>>, vector<1x128xf32>
    %105 = vector.broadcast %104 : vector<1x128xf32> to vector<256x128xf32>
    %106 = arith.addf %103, %105 : vector<256x128xf32>
    %107 = arith.extf %1 : vector<18x32x128xbf16> to vector<18x32x128xf32>
    %108 = vector.extract_strided_slice %107 {offsets = [1, 1, 0], sizes = [16, 16, 128], strides = [1, 1, 1]} : vector<18x32x128xf32> to vector<16x16x128xf32>
    %109 = vector.shape_cast %108 : vector<16x16x128xf32> to vector<256x128xf32>
    %110 = arith.addf %106, %109 : vector<256x128xf32>
    %cst_54 = arith.constant 0.000000e+00 : f32
    %111 = vector.broadcast %cst_54 : f32 to vector<256x128xf32>
    %112 = arith.maximumf %110, %111 : vector<256x128xf32>
    %113 = vector.shape_cast %112 : vector<256x128xf32> to vector<16x16x128xf32>
    %c0_55 = arith.constant 0 : index
    %c0_56 = arith.constant 0 : index
    %c0_57 = arith.constant 0 : index
    %c0_58 = arith.constant 0 : index
    %114 = vector.load %arg8[%c0_55, %c0_56, %c0_57, %c0_58] : memref<1x16x16x128xf32, #tpu.memory_space<vmem>>, vector<1x16x16x128xf32>
    %115 = vector.shape_cast %114 : vector<1x16x16x128xf32> to vector<16x16x128xf32>
    %116 = vector.shape_cast %113 : vector<16x16x128xf32> to vector<1x16x16x128xf32>
    tpu.vector_store %arg8[%c0_55, %c0_56, %c0_57, %c0_58], %116 {strides = array<i32>} : memref<1x16x16x128xf32, #tpu.memory_space<vmem>>, vector<1x16x16x128xf32>,
    return
  }
  func.func @transform_0(%arg0: i32) -> (i32, i32, i32, i32) {
    %c0_i32 = arith.constant 0 : i32
    %c0_i32_0 = arith.constant 0 : i32
    %c0_i32_1 = arith.constant 0 : i32
    %c0_i32_2 = arith.constant 0 : i32
    return %arg0, %c0_i32, %c0_i32_0, %c0_i32_1 : i32, i32, i32, i32
  }
  func.func @transform_1(%arg0: i32) -> (i32, i32) {
    %c0_i32 = arith.constant 0 : i32
    %c0_i32_0 = arith.constant 0 : i32
    %c0_i32_1 = arith.constant 0 : i32
    return %c0_i32, %c0_i32_0 : i32, i32
  }
  func.func @transform_2(%arg0: i32) -> (i32, i32, i32) {
    %c0_i32 = arith.constant 0 : i32
    %c0_i32_0 = arith.constant 0 : i32
    %c0_i32_1 = arith.constant 0 : i32
    %c0_i32_2 = arith.constant 0 : i32
    return %c0_i32, %c0_i32_0, %c0_i32_1 : i32, i32, i32
  }
  func.func @transform_3(%arg0: i32) -> (i32, i32) {
    %c0_i32 = arith.constant 0 : i32
    %c0_i32_0 = arith.constant 0 : i32
    %c0_i32_1 = arith.constant 0 : i32
    return %c0_i32, %c0_i32_0 : i32, i32
  }
  func.func @transform_4(%arg0: i32) -> (i32, i32) {
    %c0_i32 = arith.constant 0 : i32
    %c0_i32_0 = arith.constant 0 : i32
    %c0_i32_1 = arith.constant 0 : i32
    return %c0_i32, %c0_i32_0 : i32, i32
  }
  func.func @transform_5(%arg0: i32) -> (i32, i32) {
    %c0_i32 = arith.constant 0 : i32
    %c0_i32_0 = arith.constant 0 : i32
    %c0_i32_1 = arith.constant 0 : i32
    return %c0_i32, %c0_i32_0 : i32, i32
  }
  func.func @transform_6(%arg0: i32) -> (i32, i32) {
    %c0_i32 = arith.constant 0 : i32
    %c0_i32_0 = arith.constant 0 : i32
    %c0_i32_1 = arith.constant 0 : i32
    return %c0_i32, %c0_i32_0 : i32, i32
  }
  func.func @transform_7(%arg0: i32) -> (i32, i32, i32, i32) {
    %c0_i32 = arith.constant 0 : i32
    %c0_i32_0 = arith.constant 0 : i32
    %c0_i32_1 = arith.constant 0 : i32
    %c0_i32_2 = arith.constant 0 : i32
    return %arg0, %c0_i32, %c0_i32_0, %c0_i32_1 : i32, i32, i32, i32
  }
}

</mosaic_0001>

<llo_original>
// kernel: tpu_custom_call.1
$region0: #{tpu_custom_call.1}
  #allocation0 [shape = 'u32[]', space=smem, size = 0x4, offset = 0x4, fixed_abs, tag = 'smem constant byte address 0x4 - core index']
  #allocation1 [shape = 'u32[72,128]{1,0:T(1,128)}', space=vmem, size = 0x9000, scoped, tag = 'internal scratch']
  %s0 = inlined_call_operand.hbm [shape: bf16[2,18,32,128], index: 0, kind: input, shape index: {}]
  %s1 = inlined_call_operand.hbm [shape: bf16[128,128], index: 1, kind: input, shape index: {}]
  %s2 = inlined_call_operand.hbm [shape: bf16[9,128,128], index: 2, kind: input, shape index: {}]
  %s3 = inlined_call_operand.hbm [shape: bf16[128,128], index: 3, kind: input, shape index: {}]
  %s4 = inlined_call_operand.vmem [shape: f32[2,128], index: 4, kind: input, shape index: {}]
  %s5 = inlined_call_operand.vmem [shape: f32[2,128], index: 5, kind: input, shape index: {}]
  %s6 = inlined_call_operand.hbm [shape: f32[2,128], index: 6, kind: input, shape index: {}]
  %s7 = inlined_call_operand.hbm [shape: f32[2,16,16,128], index: 7, kind: output, shape index: {}]
  %s8 = sld [smem:[#allocation0]]
  $region81: #{tpu_custom_call.1} parent=0
    _
  %s10 = ssub.s32 1, %s8
  %s11 = scalar_select 0, %s10, %s8
  $region1: #{tpu_custom_call.1} parent=0
    #allocation2 [shape = 'u8[294912]{0}', space=vmem, size = 0x48000, scoped, tag = 'input window, operand 0']
    #allocation3 [shape = 's32[2]{0}', space=sflag, size = 0x8, scoped, tag = 'scoped memory for tpu_custom_call.1']
    #allocation4 [shape = 's32[2]{0}', space=sflag, size = 0x8, scoped, tag = 'scoped memory for tpu_custom_call.1']
    #allocation5 [shape = 'u8[32768]{0}', space=vmem, size = 0x8000, scoped, tag = 'input window, operand 1, single buffered']
    #allocation6 [shape = 's32[1]{0}', space=sflag, size = 0x4, scoped, tag = 'scoped memory for tpu_custom_call.1']
    #allocation7 [shape = 'u8[294912]{0}', space=vmem, size = 0x48000, scoped, tag = 'input window, operand 2, single buffered']
    #allocation8 [shape = 'u8[32768]{0}', space=vmem, size = 0x8000, scoped, tag = 'input window, operand 3, single buffered']
    #allocation9 [shape = 's32[1]{0}', space=sflag, size = 0x4, scoped, tag = 'scoped memory for tpu_custom_call.1']
    #allocation10 [shape = 'u8[1024]{0}', space=vmem, size = 0x400, scoped, tag = 'input window, operand 6, single buffered']
    #allocation11 [shape = 'u8[262144]{0}', space=vmem, size = 0x40000, scoped, tag = 'output window, operand 0']
    %12 = vsyncpa [#allocation3], 0
    %s13 = scalar_lea.sflag [#allocation3], 1
    %14 = vsyncpa %s13, 0
    %15 = vsyncpa [#allocation6], 0
    %16 = vsyncpa [#allocation9], 0
    %17 = vsyncpa [#allocation4], 0
    %s18 = scalar_lea.sflag [#allocation4], 1
    %19 = vsyncpa %s18, 0
    loop: start=0, step=1, limit=4
    $region2: #{tpu_custom_call.1} parent=1 // loop_pre_header
      _
    $region3: #{tpu_custom_call.1} parent=1 // loop_header
      %s21 = sphi 0, %s25
      %p22 = scmp.ge.s32.totalorder %s21, 4
      %s31 = sphi 0, %s33
      %s34 = sphi 0, %s31
      %s35 = sphi 0, %s34
      %s51 = sphi 0, %s35
      %s55 = sphi 0, %s55
      %s57 = sphi 0, %s55
      %s58 = sphi 0, %s57
      %s72 = sphi 0, %s58
      %s76 = sphi 0, %s76
      %s78 = sphi 0, %s76
      %s79 = sphi 0, %s78
      %s93 = sphi 0, %s79
      %s97 = sphi 0, %s97
      %s99 = sphi 0, %s97
      %s100 = sphi 0, %s99
      %s114 = sphi 0, %s100
      %s118 = sphi 0, %s118
      %s120 = sphi 0, %s118
      %s121 = sphi 0, %s120
      %s135 = sphi 0, %s121
      %s139 = sphi 0, %s139
      %s141 = sphi 0, %s139
      %s142 = sphi 0, %s141
      %s156 = sphi 0, %s142
      %s160 = sphi 0, %s160
      %s162 = sphi 0, %s160
      %s163 = sphi 0, %s162
      %s177 = sphi 0, %s163
      %s183 = sphi 0, %s185
      %s186 = sphi 0, %s183
      %s187 = sphi 0, %s186
      %s203 = sphi 0, %s187
    $region4: #{tpu_custom_call.1} parent=1 // loop_header_branch
      %24 = sbr.rel (%p22) target = $region8
    $region5: #{tpu_custom_call.1} parent=1 // loop_body
      %s26 = ssub.s32 %s21, 1
      %s27 = ssub.s32 %s21, 2
      %s28 = sadd.s32 %s21, 1
      %s29 = ssub.s32 %s21, %s28
      %p30 = scmp.eq.s32.totalorder %s29, 0
      %s32 = sadd.s32 %s31, 1
      %s33 = scalar_select %p30, %s31, %s32
      %p36 = pneg %p30
      %p37 = scmp.eq.s32.totalorder %s21, 1
      %p38 = por %p36, %p37
      %p39 = scmp.ne.s32.totalorder %s31, %s34
      %p40 = scmp.eq.s32.totalorder %s21, 0
      %p41 = por %p39, %p40
      %p42 = scmp.ne.s32.totalorder %s31, %s34
      %p43 = scmp.eq.s32.totalorder %s26, 1
      %p44 = por %p42, %p43
      %p45 = scmp.ne.s32.totalorder %s34, %s35
      %p46 = scmp.eq.s32.totalorder %s26, 0
      %p47 = por %p45, %p46
      %p48 = scmp.ne.s32.totalorder %s34, %s35
      %p49 = scmp.eq.s32.totalorder %s27, 1
      %p50 = por %p48, %p49
      %p52 = scmp.ne.s32.totalorder %s35, %s51
      %p53 = scmp.eq.s32.totalorder %s27, 0
      %p54 = por %p52, %p53
      %s56 = sadd.s32 %s55, 1
      %p59 = scmp.eq.s32.totalorder %s21, 1
      %p60 = scmp.ne.s32.totalorder %s55, %s57
      %p61 = scmp.eq.s32.totalorder %s21, 0
      %p62 = por %p60, %p61
      %p63 = scmp.ne.s32.totalorder %s55, %s57
      %p64 = scmp.eq.s32.totalorder %s26, 1
      %p65 = por %p63, %p64
      %p66 = scmp.ne.s32.totalorder %s57, %s58
      %p67 = scmp.eq.s32.totalorder %s26, 0
      %p68 = por %p66, %p67
      %p69 = scmp.ne.s32.totalorder %s57, %s58
      %p70 = scmp.eq.s32.totalorder %s27, 1
      %p71 = por %p69, %p70
      %p73 = scmp.ne.s32.totalorder %s58, %s72
      %p74 = scmp.eq.s32.totalorder %s27, 0
      %p75 = por %p73, %p74
      %s77 = sadd.s32 %s76, 1
      %p80 = scmp.eq.s32.totalorder %s21, 1
      %p81 = scmp.ne.s32.totalorder %s76, %s78
      %p82 = scmp.eq.s32.totalorder %s21, 0
      %p83 = por %p81, %p82
      %p84 = scmp.ne.s32.totalorder %s76, %s78
      %p85 = scmp.eq.s32.totalorder %s26, 1
      %p86 = por %p84, %p85
      %p87 = scmp.ne.s32.totalorder %s78, %s79
      %p88 = scmp.eq.s32.totalorder %s26, 0
      %p89 = por %p87, %p88
      %p90 = scmp.ne.s32.totalorder %s78, %s79
      %p91 = scmp.eq.s32.totalorder %s27, 1
      %p92 = por %p90, %p91
      %p94 = scmp.ne.s32.totalorder %s79, %s93
      %p95 = scmp.eq.s32.totalorder %s27, 0
      %p96 = por %p94, %p95
      %s98 = sadd.s32 %s97, 1
      %p101 = scmp.eq.s32.totalorder %s21, 1
      %p102 = scmp.ne.s32.totalorder %s97, %s99
      %p103 = scmp.eq.s32.totalorder %s21, 0
      %p104 = por %p102, %p103
      %p105 = scmp.ne.s32.totalorder %s97, %s99
      %p106 = scmp.eq.s32.totalorder %s26, 1
      %p107 = por %p105, %p106
      %p108 = scmp.ne.s32.totalorder %s99, %s100
      %p109 = scmp.eq.s32.totalorder %s26, 0
      %p110 = por %p108, %p109
      %p111 = scmp.ne.s32.totalorder %s99, %s100
      %p112 = scmp.eq.s32.totalorder %s27, 1
      %p113 = por %p111, %p112
      %p115 = scmp.ne.s32.totalorder %s100, %s114
      %p116 = scmp.eq.s32.totalorder %s27, 0
      %p117 = por %p115, %p116
      %s119 = sadd.s32 %s118, 1
      %p122 = scmp.eq.s32.totalorder %s21, 1
      %p123 = scmp.ne.s32.totalorder %s118, %s120
      %p124 = scmp.eq.s32.totalorder %s21, 0
      %p125 = por %p123, %p124
      %p126 = scmp.ne.s32.totalorder %s118, %s120
      %p127 = scmp.eq.s32.totalorder %s26, 1
      %p128 = por %p126, %p127
      %p129 = scmp.ne.s32.totalorder %s120, %s121
      %p130 = scmp.eq.s32.totalorder %s26, 0
      %p131 = por %p129, %p130
      %p132 = scmp.ne.s32.totalorder %s120, %s121
      %p133 = scmp.eq.s32.totalorder %s27, 1
      %p134 = por %p132, %p133
      %p136 = scmp.ne.s32.totalorder %s121, %s135
      %p137 = scmp.eq.s32.totalorder %s27, 0
      %p138 = por %p136, %p137
      %s140 = sadd.s32 %s139, 1
      %p143 = scmp.eq.s32.totalorder %s21, 1
      %p144 = scmp.ne.s32.totalorder %s139, %s141
      %p145 = scmp.eq.s32.totalorder %s21, 0
      %p146 = por %p144, %p145
      %p147 = scmp.ne.s32.totalorder %s139, %s141
      %p148 = scmp.eq.s32.totalorder %s26, 1
      %p149 = por %p147, %p148
      %p150 = scmp.ne.s32.totalorder %s141, %s142
      %p151 = scmp.eq.s32.totalorder %s26, 0
      %p152 = por %p150, %p151
      %p153 = scmp.ne.s32.totalorder %s141, %s142
      %p154 = scmp.eq.s32.totalorder %s27, 1
      %p155 = por %p153, %p154
      %p157 = scmp.ne.s32.totalorder %s142, %s156
      %p158 = scmp.eq.s32.totalorder %s27, 0
      %p159 = por %p157, %p158
      %s161 = sadd.s32 %s160, 1
      %p164 = scmp.eq.s32.totalorder %s21, 1
      %p165 = scmp.ne.s32.totalorder %s160, %s162
      %p166 = scmp.eq.s32.totalorder %s21, 0
      %p167 = por %p165, %p166
      %p168 = scmp.ne.s32.totalorder %s160, %s162
      %p169 = scmp.eq.s32.totalorder %s26, 1
      %p170 = por %p168, %p169
      %p171 = scmp.ne.s32.totalorder %s162, %s163
      %p172 = scmp.eq.s32.totalorder %s26, 0
      %p173 = por %p171, %p172
      %p174 = scmp.ne.s32.totalorder %s162, %s163
      %p175 = scmp.eq.s32.totalorder %s27, 1
      %p176 = por %p174, %p175
      %p178 = scmp.ne.s32.totalorder %s163, %s177
      %p179 = scmp.eq.s32.totalorder %s27, 0
      %p180 = por %p178, %p179
      %s181 = ssub.s32 %s21, %s28
      %p182 = scmp.eq.s32.totalorder %s181, 0
      %s184 = sadd.s32 %s183, 1
      %s185 = scalar_select %p182, %s183, %s184
      %p188 = pneg %p182
      %p189 = scmp.eq.s32.totalorder %s21, 1
      %p190 = por %p188, %p189
      %p191 = scmp.ne.s32.totalorder %s183, %s186
      %p192 = scmp.eq.s32.totalorder %s21, 0
      %p193 = por %p191, %p192
      %p194 = scmp.ne.s32.totalorder %s183, %s186
      %p195 = scmp.eq.s32.totalorder %s26, 1
      %p196 = por %p194, %p195
      %p197 = scmp.ne.s32.totalorder %s186, %s187
      %p198 = scmp.eq.s32.totalorder %s26, 0
      %p199 = por %p197, %p198
      %p200 = scmp.ne.s32.totalorder %s186, %s187
      %p201 = scmp.eq.s32.totalorder %s27, 1
      %p202 = por %p200, %p201
      %p204 = scmp.ne.s32.totalorder %s187, %s203
      %p205 = scmp.eq.s32.totalorder %s27, 0
      %p206 = por %p204, %p205
      %p207 = scmp.le.s32.totalorder 1, %s21
      %p208 = scmp.lt.s32.totalorder %s21, 3
      %p209 = pnand %p207, %p208
      %p210 = pneg %p209
      // Predicated region
      $region9: #{tpu_custom_call.1} parent=5 // pred_check
        _
      $region10: #{tpu_custom_call.1} parent=5 // pred_check_branch
        %212 = sbr.rel (%p209) target = $region12
      $region11: #{tpu_custom_call.1} parent=5 // pred_region
        %s213 = ssub.s32 %s21, 1
        // Predicated region
        $region13: #{tpu_custom_call.1} parent=11 // pred_check
          %p214 = pneg %p68
        $region14: #{tpu_custom_call.1} parent=11 // pred_check_branch
          %216 = sbr.rel (%p214) target = $region16
        $region15: #{tpu_custom_call.1} parent=11 // pred_region
          %218 = vsyncadd [#allocation6], 0
          %s219 = sshll.u32 %s1, 4
          %s220 = int_to_ptr.hbm [resolvable:$true] %s219
          %s221 = sshll.u32 [#allocation5], 4
          %s222 = int_to_ptr.vmem [resolvable:$true] %s221
          %227 = dma.hbm_to_vmem [thread:$0]  %s220, 1024, %s222, [#allocation6], 64, 64, 4
        $region16: #{tpu_custom_call.1} parent=11 // pred_fallthru
          _
        // Predicated region
        $region17: #{tpu_custom_call.1} parent=11 // pred_check
          %p228 = pneg %p89
        $region18: #{tpu_custom_call.1} parent=11 // pred_check_branch
          %230 = sbr.rel (%p228) target = $region20
        $region19: #{tpu_custom_call.1} parent=11 // pred_region
          %232 = vsyncadd [#allocation6], 0
          %s233 = sshll.u32 %s2, 4
          %s234 = int_to_ptr.hbm [resolvable:$true] %s233
          %s235 = sshll.u32 [#allocation7], 4
          %s236 = int_to_ptr.vmem [resolvable:$true] %s235
          %241 = dma.hbm_to_vmem [thread:$0]  %s234, 9216, %s236, [#allocation6], 64, 64, 4
        $region20: #{tpu_custom_call.1} parent=11 // pred_fallthru
          _
        // Predicated region
        $region21: #{tpu_custom_call.1} parent=11 // pred_check
          %p242 = pneg %p110
        $region22: #{tpu_custom_call.1} parent=11 // pred_check_branch
          %244 = sbr.rel (%p242) target = $region24
        $region23: #{tpu_custom_call.1} parent=11 // pred_region
          %246 = vsyncadd [#allocation9], 0
          %s247 = sshll.u32 %s3, 4
          %s248 = int_to_ptr.hbm [resolvable:$true] %s247
          %s249 = sshll.u32 [#allocation8], 4
          %s250 = int_to_ptr.vmem [resolvable:$true] %s249
          %255 = dma.hbm_to_vmem [thread:$0]  %s248, 1024, %s250, [#allocation9], 64, 64, 4
        $region24: #{tpu_custom_call.1} parent=11 // pred_fallthru
          _
        // Predicated region
        $region25: #{tpu_custom_call.1} parent=11 // pred_check
          %p256 = pneg %p131
        $region26: #{tpu_custom_call.1} parent=11 // pred_check_branch
          %258 = sbr.rel (%p256) target = $region28
        $region27: #{tpu_custom_call.1} parent=11 // pred_region
          _
        $region28: #{tpu_custom_call.1} parent=11 // pred_fallthru
          _
        // Predicated region
        $region29: #{tpu_custom_call.1} parent=11 // pred_check
          %p259 = pneg %p152
        $region30: #{tpu_custom_call.1} parent=11 // pred_check_branch
          %261 = sbr.rel (%p259) target = $region32
        $region31: #{tpu_custom_call.1} parent=11 // pred_region
          _
        $region32: #{tpu_custom_call.1} parent=11 // pred_fallthru
          _
        // Predicated region
        $region33: #{tpu_custom_call.1} parent=11 // pred_check
          %p262 = pneg %p173
        $region34: #{tpu_custom_call.1} parent=11 // pred_check_branch
          %264 = sbr.rel (%p262) target = $region36
        $region35: #{tpu_custom_call.1} parent=11 // pred_region
          %266 = vsyncadd [#allocation9], 0
          %s268 = sshll.u32 %s6, 4
          %s269 = int_to_ptr.hbm [resolvable:$true] %s268
          %s270 = sshll.u32 [#allocation10], 4
          %s271 = int_to_ptr.vmem [resolvable:$true] %s270
          %273 = dma.hbm_to_vmem [thread:$0]  %s269, 32, %s271, [#allocation9]
        $region36: #{tpu_custom_call.1} parent=11 // pred_fallthru
          _
      $region12: #{tpu_custom_call.1} parent=5 // pred_fallthru
        _
      %p274 = scmp.lt.s32.totalorder %s21, 2
      // Predicated region
      $region37: #{tpu_custom_call.1} parent=5 // pred_check
        %p275 = pneg %p274
      $region38: #{tpu_custom_call.1} parent=5 // pred_check_branch
        %277 = sbr.rel (%p275) target = $region40
      $region39: #{tpu_custom_call.1} parent=5 // pred_region
        // Predicated region
        $region41: #{tpu_custom_call.1} parent=39 // pred_check
          %p278 = pneg %p41
        $region42: #{tpu_custom_call.1} parent=39 // pred_check_branch
          %280 = sbr.rel (%p278) target = $region44
        $region43: #{tpu_custom_call.1} parent=39 // pred_region
          %s281 = sand.u32 %s31, 1
          %s282 = scalar_lea.sflag [#allocation3], %s281
          %s283 = sand.u32 %s31, 1
          %s284 = smul.addr %s283, 288
          %s285 = scalar_lea.vmem [#allocation2], %s284
          %287 = vsyncadd %s282, 0
          %s288 = smul.addr %s21, 72
          %s289 = smul.addr %s288, 4
          %s290 = scalar_lea.hbm %s0, %s289
          %s291 = sshll.u32 %s290, 4
          %s292 = int_to_ptr.hbm [resolvable:$true] %s291
          %s293 = sshll.u32 %s285, 4
          %s294 = int_to_ptr.vmem [resolvable:$true] %s293
          %299 = dma.hbm_to_vmem [thread:$0]  %s292, 4608, %s294, %s282, 64, 64, 4
        $region44: #{tpu_custom_call.1} parent=39 // pred_fallthru
          _
      $region40: #{tpu_custom_call.1} parent=5 // pred_fallthru
        _
      %p300 = scmp.le.s32.totalorder 1, %s21
      %p301 = scmp.lt.s32.totalorder %s21, 3
      %p302 = pnand %p300, %p301
      %p303 = pneg %p302
      // Predicated region
      $region45: #{tpu_custom_call.1} parent=5 // pred_check
        _
      $region46: #{tpu_custom_call.1} parent=5 // pred_check_branch
        %305 = sbr.rel (%p302) target = $region48
      $region47: #{tpu_custom_call.1} parent=5 // pred_region
        %s306 = ssub.s32 %s21, 1
        %s307 = sand.u32 %s34, 1
        %s308 = scalar_lea.sflag [#allocation3], %s307
        %s309 = sand.u32 %s34, 1
        %s310 = smul.addr %s309, 288
        %s311 = scalar_lea.vmem [#allocation2], %s310
        // Predicated region
        $region49: #{tpu_custom_call.1} parent=47 // pred_check
          %p312 = pneg %p47
        $region50: #{tpu_custom_call.1} parent=47 // pred_check_branch
          %314 = sbr.rel (%p312) target = $region52
        $region51: #{tpu_custom_call.1} parent=47 // pred_region
          %316 = dma.done %s308, 4608
        $region52: #{tpu_custom_call.1} parent=47 // pred_fallthru
          _
        // Predicated region
        $region53: #{tpu_custom_call.1} parent=47 // pred_check
          %p317 = pneg %p68
        $region54: #{tpu_custom_call.1} parent=47 // pred_check_branch
          %319 = sbr.rel (%p317) target = $region56
        $region55: #{tpu_custom_call.1} parent=47 // pred_region
          %321 = dma.done [#allocation6], 1024
        $region56: #{tpu_custom_call.1} parent=47 // pred_fallthru
          _
        // Predicated region
        $region57: #{tpu_custom_call.1} parent=47 // pred_check
          %p322 = pneg %p89
        $region58: #{tpu_custom_call.1} parent=47 // pred_check_branch
          %324 = sbr.rel (%p322) target = $region60
        $region59: #{tpu_custom_call.1} parent=47 // pred_region
          %326 = dma.done [#allocation6], 9216
        $region60: #{tpu_custom_call.1} parent=47 // pred_fallthru
          _
        // Predicated region
        $region61: #{tpu_custom_call.1} parent=47 // pred_check
          %p327 = pneg %p110
        $region62: #{tpu_custom_call.1} parent=47 // pred_check_branch
          %329 = sbr.rel (%p327) target = $region64
        $region63: #{tpu_custom_call.1} parent=47 // pred_region
          %331 = dma.done [#allocation9], 1024
        $region64: #{tpu_custom_call.1} parent=47 // pred_fallthru
          _
        // Predicated region
        $region65: #{tpu_custom_call.1} parent=47 // pred_check
          %p332 = pneg %p173
        $region66: #{tpu_custom_call.1} parent=47 // pred_check_branch
          %334 = sbr.rel (%p332) target = $region68
        $region67: #{tpu_custom_call.1} parent=47 // pred_region
          %336 = dma.done [#allocation9], 32
        $region68: #{tpu_custom_call.1} parent=47 // pred_fallthru
          _
        %s337 = sand.u32 %s34, 1
        %s338 = scalar_lea.sflag [#allocation3], %s337
        %s339 = sand.u32 %s34, 1
        %s340 = smul.addr %s339, 288
        %s341 = scalar_lea.vmem [#allocation2], %s340
        %p342 = pneg %p47
        %p343 = pneg %p44
        %p344 = pneg %p68
        %p345 = pneg %p65
        %p346 = pneg %p89
        %p347 = pneg %p86
        %p348 = pneg %p110
        %p349 = pneg %p107
        %p350 = pneg %p131
        %p351 = pneg %p128
        %p352 = pneg %p152
        %p353 = pneg %p149
        %p354 = pneg %p173
        %p355 = pneg %p170
        %p356 = pneg %p199
        %p357 = pneg %p196
        %s358 = sand.u32 %s186, 1
        %s359 = scalar_lea.sflag [#allocation4], %s358
        %s360 = sand.u32 %s186, 1
        %s361 = smul.addr %s360, 256
        %s362 = scalar_lea.vmem [#allocation11], %s361
        %v363 = vld [vmem:[%s311] sm:$0xf]
        %v364 = vld [vmem:[%s311 + $0x4] sm:$0xf]
        %v365 = vld [vmem:[%s311 + $0x8] sm:$0xf]
        %v366 = vld [vmem:[%s311 + $0xc] sm:$0xf]
        %v367 = vld [vmem:[%s311 + $0x10] sm:$0xf]
        %v368 = vld [vmem:[%s311 + $0x14] sm:$0xf]
        %v369 = vld [vmem:[%s311 + $0x18] sm:$0xf]
        %v370 = vld [vmem:[%s311 + $0x1c] sm:$0xf]
        %v371 = vld [vmem:[%s311 + $0x20] sm:$0xf]
        %v372 = vld [vmem:[%s311 + $0x24] sm:$0xf]
        %v373 = vld [vmem:[%s311 + $0x28] sm:$0xf]
        %v374 = vld [vmem:[%s311 + $0x2c] sm:$0xf]
        %v375 = vld [vmem:[%s311 + $0x30] sm:$0xf]
        %v376 = vld [vmem:[%s311 + $0x34] sm:$0xf]
        %v377 = vld [vmem:[%s311 + $0x38] sm:$0xf]
        %v378 = vld [vmem:[%s311 + $0x3c] sm:$0xf]
        %v379 = vld [vmem:[%s311 + $0x40] sm:$0xf]
        %v380 = vld [vmem:[%s311 + $0x44] sm:$0xf]
        %v381 = vld [vmem:[%s311 + $0x48] sm:$0xf]
        %v382 = vld [vmem:[%s311 + $0x4c] sm:$0xf]
        %v383 = vld [vmem:[%s311 + $0x50] sm:$0xf]
        %v384 = vld [vmem:[%s311 + $0x54] sm:$0xf]
        %v385 = vld [vmem:[%s311 + $0x58] sm:$0xf]
        %v386 = vld [vmem:[%s311 + $0x5c] sm:$0xf]
        %v387 = vld [vmem:[%s311 + $0x60] sm:$0xf]
        %v388 = vld [vmem:[%s311 + $0x64] sm:$0xf]
        %v389 = vld [vmem:[%s311 + $0x68] sm:$0xf]
        %v390 = vld [vmem:[%s311 + $0x6c] sm:$0xf]
        %v391 = vld [vmem:[%s311 + $0x70] sm:$0xf]
        %v392 = vld [vmem:[%s311 + $0x74] sm:$0xf]
        %v393 = vld [vmem:[%s311 + $0x78] sm:$0xf]
        %v394 = vld [vmem:[%s311 + $0x7c] sm:$0xf]
        %v395 = vld [vmem:[%s311 + $0x80] sm:$0xf]
        %v396 = vld [vmem:[%s311 + $0x84] sm:$0xf]
        %v397 = vld [vmem:[%s311 + $0x88] sm:$0xf]
        %v398 = vld [vmem:[%s311 + $0x8c] sm:$0xf]
        %v399 = vld [vmem:[%s311 + $0x90] sm:$0xf]
        %v400 = vld [vmem:[%s311 + $0x94] sm:$0xf]
        %v401 = vld [vmem:[%s311 + $0x98] sm:$0xf]
        %v402 = vld [vmem:[%s311 + $0x9c] sm:$0xf]
        %v403 = vld [vmem:[%s311 + $0xa0] sm:$0xf]
        %v404 = vld [vmem:[%s311 + $0xa4] sm:$0xf]
        %v405 = vld [vmem:[%s311 + $0xa8] sm:$0xf]
        %v406 = vld [vmem:[%s311 + $0xac] sm:$0xf]
        %v407 = vld [vmem:[%s311 + $0xb0] sm:$0xf]
        %v408 = vld [vmem:[%s311 + $0xb4] sm:$0xf]
        %v409 = vld [vmem:[%s311 + $0xb8] sm:$0xf]
        %v410 = vld [vmem:[%s311 + $0xbc] sm:$0xf]
        %v411 = vld [vmem:[%s311 + $0xc0] sm:$0xf]
        %v412 = vld [vmem:[%s311 + $0xc4] sm:$0xf]
        %v413 = vld [vmem:[%s311 + $0xc8] sm:$0xf]
        %v414 = vld [vmem:[%s311 + $0xcc] sm:$0xf]
        %v415 = vld [vmem:[%s311 + $0xd0] sm:$0xf]
        %v416 = vld [vmem:[%s311 + $0xd4] sm:$0xf]
        %v417 = vld [vmem:[%s311 + $0xd8] sm:$0xf]
        %v418 = vld [vmem:[%s311 + $0xdc] sm:$0xf]
        %v419 = vld [vmem:[%s311 + $0xe0] sm:$0xf]
        %v420 = vld [vmem:[%s311 + $0xe4] sm:$0xf]
        %v421 = vld [vmem:[%s311 + $0xe8] sm:$0xf]
        %v422 = vld [vmem:[%s311 + $0xec] sm:$0xf]
        %v423 = vld [vmem:[%s311 + $0xf0] sm:$0xf]
        %v424 = vld [vmem:[%s311 + $0xf4] sm:$0xf]
        %v425 = vld [vmem:[%s311 + $0xf8] sm:$0xf]
        %v426 = vld [vmem:[%s311 + $0xfc] sm:$0xf]
        %v427 = vld [vmem:[%s311 + $0x100] sm:$0xf]
        %v428 = vld [vmem:[%s311 + $0x104] sm:$0xf]
        %v429 = vld [vmem:[%s311 + $0x108] sm:$0xf]
        %v430 = vld [vmem:[%s311 + $0x10c] sm:$0xf]
        %v431 = vld [vmem:[%s311 + $0x110] sm:$0xf]
        %v432 = vld [vmem:[%s311 + $0x114] sm:$0xf]
        %v433 = vld [vmem:[%s311 + $0x118] sm:$0xf]
        %v434 = vld [vmem:[%s311 + $0x11c] sm:$0xf]
        %v435 = vld [vmem:[#allocation5] sm:$0xf]
        %v436 = vld [vmem:[#allocation5 + $0x4] sm:$0xf]
        %v437 = vld [vmem:[#allocation5 + $0x8] sm:$0xf]
        %v438 = vld [vmem:[#allocation5 + $0xc] sm:$0xf]
        %v439 = vld [vmem:[#allocation5 + $0x10] sm:$0xf]
        %v440 = vld [vmem:[#allocation5 + $0x14] sm:$0xf]
        %v441 = vld [vmem:[#allocation5 + $0x18] sm:$0xf]
        %v442 = vld [vmem:[#allocation5 + $0x1c] sm:$0xf]
        %v443 = vld [vmem:[#allocation5 + $0x20] sm:$0xf]
        %v444 = vld [vmem:[#allocation5 + $0x24] sm:$0xf]
        %v445 = vld [vmem:[#allocation5 + $0x28] sm:$0xf]
        %v446 = vld [vmem:[#allocation5 + $0x2c] sm:$0xf]
        %v447 = vld [vmem:[#allocation5 + $0x30] sm:$0xf]
        %v448 = vld [vmem:[#allocation5 + $0x34] sm:$0xf]
        %v449 = vld [vmem:[#allocation5 + $0x38] sm:$0xf]
        %v450 = vld [vmem:[#allocation5 + $0x3c] sm:$0xf]
        %v523 = vunpack.c.l.b16 %v363
        %v524 = vunpack.c.l.b16 %v364
        %v525 = vunpack.c.l.b16 %v365
        %v526 = vunpack.c.l.b16 %v366
        %v527 = vunpack.c.l.b16 %v367
        %v528 = vunpack.c.l.b16 %v368
        %v529 = vunpack.c.l.b16 %v369
        %v530 = vunpack.c.l.b16 %v370
        %v531 = vunpack.c.l.b16 %v371
        %v532 = vunpack.c.l.b16 %v372
        %v533 = vunpack.c.l.b16 %v373
        %v534 = vunpack.c.l.b16 %v374
        %v535 = vunpack.c.l.b16 %v375
        %v536 = vunpack.c.l.b16 %v376
        %v537 = vunpack.c.l.b16 %v377
        %v538 = vunpack.c.l.b16 %v378
        %v539 = vunpack.c.l.b16 %v379
        %v540 = vunpack.c.l.b16 %v380
        %v541 = vunpack.c.l.b16 %v381
        %v542 = vunpack.c.l.b16 %v382
        %v543 = vunpack.c.l.b16 %v383
        %v544 = vunpack.c.l.b16 %v384
        %v545 = vunpack.c.l.b16 %v385
        %v546 = vunpack.c.l.b16 %v386
        %v547 = vunpack.c.l.b16 %v387
        %v548 = vunpack.c.l.b16 %v388
        %v549 = vunpack.c.l.b16 %v389
        %v550 = vunpack.c.l.b16 %v390
        %v551 = vunpack.c.l.b16 %v391
        %v552 = vunpack.c.l.b16 %v392
        %v553 = vunpack.c.l.b16 %v393
        %v554 = vunpack.c.l.b16 %v394
        %v555 = vunpack.c.l.b16 %v395
        %v556 = vunpack.c.l.b16 %v396
        %v557 = vunpack.c.l.b16 %v397
        %v558 = vunpack.c.l.b16 %v398
        %v559 = vunpack.c.l.b16 %v399
        %v560 = vunpack.c.l.b16 %v400
        %v561 = vunpack.c.l.b16 %v401
        %v562 = vunpack.c.l.b16 %v402
        %v563 = vunpack.c.l.b16 %v403
        %v564 = vunpack.c.l.b16 %v404
        %v565 = vunpack.c.l.b16 %v405
        %v566 = vunpack.c.l.b16 %v406
        %v567 = vunpack.c.l.b16 %v407
        %v568 = vunpack.c.l.b16 %v408
        %v569 = vunpack.c.l.b16 %v409
        %v570 = vunpack.c.l.b16 %v410
        %v571 = vunpack.c.l.b16 %v411
        %v572 = vunpack.c.l.b16 %v412
        %v573 = vunpack.c.l.b16 %v413
        %v574 = vunpack.c.l.b16 %v414
        %v575 = vunpack.c.l.b16 %v415
        %v576 = vunpack.c.l.b16 %v416
        %v577 = vunpack.c.l.b16 %v417
        %v578 = vunpack.c.l.b16 %v418
        %v579 = vunpack.c.l.b16 %v419
        %v580 = vunpack.c.l.b16 %v420
        %v581 = vunpack.c.l.b16 %v421
        %v582 = vunpack.c.l.b16 %v422
        %v583 = vunpack.c.l.b16 %v423
        %v584 = vunpack.c.l.b16 %v424
        %v585 = vunpack.c.l.b16 %v425
        %v586 = vunpack.c.l.b16 %v426
        %v587 = vunpack.c.l.b16 %v427
        %v588 = vunpack.c.l.b16 %v428
        %v589 = vunpack.c.l.b16 %v429
        %v590 = vunpack.c.l.b16 %v430
        %v591 = vunpack.c.l.b16 %v431
        %v592 = vunpack.c.l.b16 %v432
        %v593 = vunpack.c.l.b16 %v433
        %v594 = vunpack.c.l.b16 %v434
        %v595 = vpack.c.b16 %v524, %v523
        %v596 = vpack.c.b16 %v526, %v525
        %v597 = vpack.c.b16 %v528, %v527
        %v598 = vpack.c.b16 %v530, %v529
        %v599 = vpack.c.b16 %v532, %v531
        %v600 = vpack.c.b16 %v534, %v533
        %v601 = vpack.c.b16 %v536, %v535
        %v602 = vpack.c.b16 %v538, %v537
        %v603 = vpack.c.b16 %v540, %v539
        %v604 = vpack.c.b16 %v542, %v541
        %v605 = vpack.c.b16 %v544, %v543
        %v606 = vpack.c.b16 %v546, %v545
        %v607 = vpack.c.b16 %v548, %v547
        %v608 = vpack.c.b16 %v550, %v549
        %v609 = vpack.c.b16 %v552, %v551
        %v610 = vpack.c.b16 %v554, %v553
        %v611 = vpack.c.b16 %v556, %v555
        %v612 = vpack.c.b16 %v558, %v557
        %v613 = vpack.c.b16 %v560, %v559
        %v614 = vpack.c.b16 %v562, %v561
        %v615 = vpack.c.b16 %v564, %v563
        %v616 = vpack.c.b16 %v566, %v565
        %v617 = vpack.c.b16 %v568, %v567
        %v618 = vpack.c.b16 %v570, %v569
        %v619 = vpack.c.b16 %v572, %v571
        %v620 = vpack.c.b16 %v574, %v573
        %v621 = vpack.c.b16 %v576, %v575
        %v622 = vpack.c.b16 %v578, %v577
        %v623 = vpack.c.b16 %v580, %v579
        %v624 = vpack.c.b16 %v582, %v581
        %v625 = vpack.c.b16 %v584, %v583
        %v626 = vpack.c.b16 %v586, %v585
        %v627 = vpack.c.b16 %v588, %v587
        %v628 = vpack.c.b16 %v590, %v589
        %v629 = vpack.c.b16 %v592, %v591
        %v630 = vpack.c.b16 %v594, %v593
        %v683 = vunpack.c.l.b16 %v435
        %v684 = vunpack.c.l.b16 %v436
        %v685 = vunpack.c.l.b16 %v437
        %v686 = vunpack.c.l.b16 %v438
        %v687 = vunpack.c.l.b16 %v439
        %v688 = vunpack.c.l.b16 %v440
        %v689 = vunpack.c.l.b16 %v441
        %v690 = vunpack.c.l.b16 %v442
        %v691 = vunpack.c.l.b16 %v443
        %v692 = vunpack.c.l.b16 %v444
        %v693 = vunpack.c.l.b16 %v445
        %v694 = vunpack.c.l.b16 %v446
        %v695 = vunpack.c.l.b16 %v447
        %v696 = vunpack.c.l.b16 %v448
        %v697 = vunpack.c.l.b16 %v449
        %v698 = vunpack.c.l.b16 %v450
        %v699 = vpack.c.b16 %v684, %v683
        %v700 = vpack.c.b16 %v686, %v685
        %v701 = vpack.c.b16 %v688, %v687
        %v702 = vpack.c.b16 %v690, %v689
        %v703 = vpack.c.b16 %v692, %v691
        %v704 = vpack.c.b16 %v694, %v693
        %v705 = vpack.c.b16 %v696, %v695
        %v706 = vpack.c.b16 %v698, %v697
        %715 = vmatpush.bf16.msra.mxu0 %v706
        %716 = vmatpush.bf16.msra.mxu0 %v705
        %717 = vmatpush.bf16.msra.mxu0 %v704
        %718 = vmatpush.bf16.msra.mxu0 %v703
        %719 = vmatpush.bf16.msra.mxu0 %v702
        %720 = vmatpush.bf16.msra.mxu0 %v701
        %721 = vmatpush.bf16.msra.mxu0 %v700
        %722 = vmatpush.bf16.msra.mxu0 %v699
        %723 = vmatmul.bf16.gmra.mxu0 %v595
        %v724 = vpop.f32.mrf.mxu0
        %v725 = vadd.f32 0.0, %v724
        %v726 = vpop.f32.mrf.mxu0
        %v727 = vadd.f32 0.0, %v726
        %728 = vmatmul.bf16.gmra.mxu0 %v596
        %v729 = vpop.f32.mrf.mxu0
        %v730 = vadd.f32 0.0, %v729
        %v731 = vpop.f32.mrf.mxu0
        %732 = vmatmul.bf16.gmra.mxu0 %v597
        %v733 = vpop.f32.mrf.mxu0
        %v734 = vadd.f32 0.0, %v733
        %v735 = vpop.f32.mrf.mxu0
        %v736 = vadd.f32 0.0, %v735
        %737 = vmatmul.bf16.gmra.mxu0 %v598
        %v738 = vpop.f32.mrf.mxu0
        %v739 = vadd.f32 0.0, %v738
        %v740 = vpop.f32.mrf.mxu0
        %741 = vmatmul.bf16.gmra.mxu0 %v599
        %v742 = vpop.f32.mrf.mxu0
        %v743 = vadd.f32 0.0, %v742
        %v744 = vpop.f32.mrf.mxu0
        %v745 = vadd.f32 0.0, %v744
        %746 = vmatmul.bf16.gmra.mxu0 %v600
        %v747 = vpop.f32.mrf.mxu0
        %v748 = vadd.f32 0.0, %v747
        %v749 = vpop.f32.mrf.mxu0
        %750 = vmatmul.bf16.gmra.mxu0 %v601
        %v751 = vpop.f32.mrf.mxu0
        %v752 = vadd.f32 0.0, %v751
        %v753 = vpop.f32.mrf.mxu0
        %v754 = vadd.f32 0.0, %v753
        %755 = vmatmul.bf16.gmra.mxu0 %v602
        %v756 = vpop.f32.mrf.mxu0
        %v757 = vadd.f32 0.0, %v756
        %v758 = vpop.f32.mrf.mxu0
        %759 = vmatmul.bf16.gmra.mxu0 %v603
        %v760 = vpop.f32.mrf.mxu0
        %v761 = vadd.f32 0.0, %v760
        %v762 = vpop.f32.mrf.mxu0
        %v763 = vadd.f32 0.0, %v762
        %764 = vmatmul.bf16.gmra.mxu0 %v604
        %v765 = vpop.f32.mrf.mxu0
        %v766 = vadd.f32 0.0, %v765
        %v767 = vpop.f32.mrf.mxu0
        %768 = vmatmul.bf16.gmra.mxu0 %v605
        %v769 = vpop.f32.mrf.mxu0
        %v770 = vadd.f32 0.0, %v769
        %v771 = vpop.f32.mrf.mxu0
        %v772 = vadd.f32 0.0, %v771
        %773 = vmatmul.bf16.gmra.mxu0 %v606
        %v774 = vpop.f32.mrf.mxu0
        %v775 = vadd.f32 0.0, %v774
        %v776 = vpop.f32.mrf.mxu0
        %777 = vmatmul.bf16.gmra.mxu0 %v607
        %v778 = vpop.f32.mrf.mxu0
        %v779 = vadd.f32 0.0, %v778
        %v780 = vpop.f32.mrf.mxu0
        %v781 = vadd.f32 0.0, %v780
        %782 = vmatmul.bf16.gmra.mxu0 %v608
        %v783 = vpop.f32.mrf.mxu0
        %v784 = vadd.f32 0.0, %v783
        %v785 = vpop.f32.mrf.mxu0
        %786 = vmatmul.bf16.gmra.mxu0 %v609
        %v787 = vpop.f32.mrf.mxu0
        %v788 = vadd.f32 0.0, %v787
        %v789 = vpop.f32.mrf.mxu0
        %v790 = vadd.f32 0.0, %v789
        %791 = vmatmul.bf16.gmra.mxu0 %v610
        %v792 = vpop.f32.mrf.mxu0
        %v793 = vadd.f32 0.0, %v792
        %v794 = vpop.f32.mrf.mxu0
        %795 = vmatmul.bf16.gmra.mxu0 %v611
        %v796 = vpop.f32.mrf.mxu0
        %v797 = vadd.f32 0.0, %v796
        %v798 = vpop.f32.mrf.mxu0
        %v799 = vadd.f32 0.0, %v798
        %800 = vmatmul.bf16.gmra.mxu0 %v612
        %v801 = vpop.f32.mrf.mxu0
        %v802 = vadd.f32 0.0, %v801
        %v803 = vpop.f32.mrf.mxu0
        %804 = vmatmul.bf16.gmra.mxu0 %v613
        %v805 = vpop.f32.mrf.mxu0
        %v806 = vadd.f32 0.0, %v805
        %v807 = vpop.f32.mrf.mxu0
        %v808 = vadd.f32 0.0, %v807
        %809 = vmatmul.bf16.gmra.mxu0 %v614
        %v810 = vpop.f32.mrf.mxu0
        %v811 = vadd.f32 0.0, %v810
        %v812 = vpop.f32.mrf.mxu0
        %813 = vmatmul.bf16.gmra.mxu0 %v615
        %v814 = vpop.f32.mrf.mxu0
        %v815 = vadd.f32 0.0, %v814
        %v816 = vpop.f32.mrf.mxu0
        %v817 = vadd.f32 0.0, %v816
        %818 = vmatmul.bf16.gmra.mxu0 %v616
        %v819 = vpop.f32.mrf.mxu0
        %v820 = vadd.f32 0.0, %v819
        %v821 = vpop.f32.mrf.mxu0
        %822 = vmatmul.bf16.gmra.mxu0 %v617
        %v823 = vpop.f32.mrf.mxu0
        %v824 = vadd.f32 0.0, %v823
        %v825 = vpop.f32.mrf.mxu0
        %v826 = vadd.f32 0.0, %v825
        %827 = vmatmul.bf16.gmra.mxu0 %v618
        %v828 = vpop.f32.mrf.mxu0
        %v829 = vadd.f32 0.0, %v828
        %v830 = vpop.f32.mrf.mxu0
        %831 = vmatmul.bf16.gmra.mxu0 %v619
        %v832 = vpop.f32.mrf.mxu0
        %v833 = vadd.f32 0.0, %v832
        %v834 = vpop.f32.mrf.mxu0
        %v835 = vadd.f32 0.0, %v834
        %836 = vmatmul.bf16.gmra.mxu0 %v620
        %v837 = vpop.f32.mrf.mxu0
        %v838 = vadd.f32 0.0, %v837
        %v839 = vpop.f32.mrf.mxu0
        %840 = vmatmul.bf16.gmra.mxu0 %v621
        %v841 = vpop.f32.mrf.mxu0
        %v842 = vadd.f32 0.0, %v841
        %v843 = vpop.f32.mrf.mxu0
        %v844 = vadd.f32 0.0, %v843
        %845 = vmatmul.bf16.gmra.mxu0 %v622
        %v846 = vpop.f32.mrf.mxu0
        %v847 = vadd.f32 0.0, %v846
        %v848 = vpop.f32.mrf.mxu0
        %849 = vmatmul.bf16.gmra.mxu0 %v623
        %v850 = vpop.f32.mrf.mxu0
        %v851 = vadd.f32 0.0, %v850
        %v852 = vpop.f32.mrf.mxu0
        %v853 = vadd.f32 0.0, %v852
        %854 = vmatmul.bf16.gmra.mxu0 %v624
        %v855 = vpop.f32.mrf.mxu0
        %v856 = vadd.f32 0.0, %v855
        %v857 = vpop.f32.mrf.mxu0
        %858 = vmatmul.bf16.gmra.mxu0 %v625
        %v859 = vpop.f32.mrf.mxu0
        %v860 = vadd.f32 0.0, %v859
        %v861 = vpop.f32.mrf.mxu0
        %v862 = vadd.f32 0.0, %v861
        %863 = vmatmul.bf16.gmra.mxu0 %v626
        %v864 = vpop.f32.mrf.mxu0
        %v865 = vadd.f32 0.0, %v864
        %v866 = vpop.f32.mrf.mxu0
        %867 = vmatmul.bf16.gmra.mxu0 %v627
        %v868 = vpop.f32.mrf.mxu0
        %v869 = vadd.f32 0.0, %v868
        %v870 = vpop.f32.mrf.mxu0
        %v871 = vadd.f32 0.0, %v870
        %872 = vmatmul.bf16.gmra.mxu0 %v628
        %v873 = vpop.f32.mrf.mxu0
        %v874 = vadd.f32 0.0, %v873
        %v875 = vpop.f32.mrf.mxu0
        %876 = vmatmul.bf16.gmra.mxu0 %v629
        %v877 = vpop.f32.mrf.mxu0
        %v878 = vadd.f32 0.0, %v877
        %v879 = vpop.f32.mrf.mxu0
        %v880 = vadd.f32 0.0, %v879
        %881 = vmatmul.bf16.gmra.mxu0 %v630
        %v882 = vpop.f32.mrf.mxu0
        %v883 = vadd.f32 0.0, %v882
        %v884 = vpop.f32.mrf.mxu0
        %885 = vdwg.mxu0
        %v886 = vld [vmem:[%s4] sm:$0x1]
        %v887 = vperm.slane %v886, 0
        %v888 = vmul.f32 %v725, %v887
        %v889 = vmul.f32 %v727, %v887
        %v890 = vmul.f32 %v730, %v887
        %v891 = vmul.f32 %v734, %v887
        %v892 = vmul.f32 %v736, %v887
        %v893 = vmul.f32 %v739, %v887
        %v894 = vmul.f32 %v743, %v887
        %v895 = vmul.f32 %v745, %v887
        %v896 = vmul.f32 %v748, %v887
        %v897 = vmul.f32 %v752, %v887
        %v898 = vmul.f32 %v754, %v887
        %v899 = vmul.f32 %v757, %v887
        %v900 = vmul.f32 %v761, %v887
        %v901 = vmul.f32 %v763, %v887
        %v902 = vmul.f32 %v766, %v887
        %v903 = vmul.f32 %v770, %v887
        %v904 = vmul.f32 %v772, %v887
        %v905 = vmul.f32 %v775, %v887
        %v906 = vmul.f32 %v779, %v887
        %v907 = vmul.f32 %v781, %v887
        %v908 = vmul.f32 %v784, %v887
        %v909 = vmul.f32 %v788, %v887
        %v910 = vmul.f32 %v790, %v887
        %v911 = vmul.f32 %v793, %v887
        %v912 = vmul.f32 %v797, %v887
        %v913 = vmul.f32 %v799, %v887
        %v914 = vmul.f32 %v802, %v887
        %v915 = vmul.f32 %v806, %v887
        %v916 = vmul.f32 %v808, %v887
        %v917 = vmul.f32 %v811, %v887
        %v918 = vmul.f32 %v815, %v887
        %v919 = vmul.f32 %v817, %v887
        %v920 = vmul.f32 %v820, %v887
        %v921 = vmul.f32 %v824, %v887
        %v922 = vmul.f32 %v826, %v887
        %v923 = vmul.f32 %v829, %v887
        %v924 = vmul.f32 %v833, %v887
        %v925 = vmul.f32 %v835, %v887
        %v926 = vmul.f32 %v838, %v887
        %v927 = vmul.f32 %v842, %v887
        %v928 = vmul.f32 %v844, %v887
        %v929 = vmul.f32 %v847, %v887
        %v930 = vmul.f32 %v851, %v887
        %v931 = vmul.f32 %v853, %v887
        %v932 = vmul.f32 %v856, %v887
        %v933 = vmul.f32 %v860, %v887
        %v934 = vmul.f32 %v862, %v887
        %v935 = vmul.f32 %v865, %v887
        %v936 = vmul.f32 %v869, %v887
        %v937 = vmul.f32 %v871, %v887
        %v938 = vmul.f32 %v874, %v887
        %v939 = vmul.f32 %v878, %v887
        %v940 = vmul.f32 %v880, %v887
        %v941 = vmul.f32 %v883, %v887
        %v942 = vld [vmem:[%s4 + $0x1] sm:$0x1]
        %v943 = vperm.slane %v942, 0
        %v944 = vadd.f32 %v888, %v943
        %v945 = vadd.f32 %v889, %v943
        %v946 = vadd.f32 %v890, %v943
        %v947 = vadd.f32 %v891, %v943
        %v948 = vadd.f32 %v892, %v943
        %v949 = vadd.f32 %v893, %v943
        %v950 = vadd.f32 %v894, %v943
        %v951 = vadd.f32 %v895, %v943
        %v952 = vadd.f32 %v896, %v943
        %v953 = vadd.f32 %v897, %v943
        %v954 = vadd.f32 %v898, %v943
        %v955 = vadd.f32 %v899, %v943
        %v956 = vadd.f32 %v900, %v943
        %v957 = vadd.f32 %v901, %v943
        %v958 = vadd.f32 %v902, %v943
        %v959 = vadd.f32 %v903, %v943
        %v960 = vadd.f32 %v904, %v943
        %v961 = vadd.f32 %v905, %v943
        %v962 = vadd.f32 %v906, %v943
        %v963 = vadd.f32 %v907, %v943
        %v964 = vadd.f32 %v908, %v943
        %v965 = vadd.f32 %v909, %v943
        %v966 = vadd.f32 %v910, %v943
        %v967 = vadd.f32 %v911, %v943
        %v968 = vadd.f32 %v912, %v943
        %v969 = vadd.f32 %v913, %v943
        %v970 = vadd.f32 %v914, %v943
        %v971 = vadd.f32 %v915, %v943
        %v972 = vadd.f32 %v916, %v943
        %v973 = vadd.f32 %v917, %v943
        %v974 = vadd.f32 %v918, %v943
        %v975 = vadd.f32 %v919, %v943
        %v976 = vadd.f32 %v920, %v943
        %v977 = vadd.f32 %v921, %v943
        %v978 = vadd.f32 %v922, %v943
        %v979 = vadd.f32 %v923, %v943
        %v980 = vadd.f32 %v924, %v943
        %v981 = vadd.f32 %v925, %v943
        %v982 = vadd.f32 %v926, %v943
        %v983 = vadd.f32 %v927, %v943
        %v984 = vadd.f32 %v928, %v943
        %v985 = vadd.f32 %v929, %v943
        %v986 = vadd.f32 %v930, %v943
        %v987 = vadd.f32 %v931, %v943
        %v988 = vadd.f32 %v932, %v943
        %v989 = vadd.f32 %v933, %v943
        %v990 = vadd.f32 %v934, %v943
        %v991 = vadd.f32 %v935, %v943
        %v992 = vadd.f32 %v936, %v943
        %v993 = vadd.f32 %v937, %v943
        %v994 = vadd.f32 %v938, %v943
        %v995 = vadd.f32 %v939, %v943
        %v996 = vadd.f32 %v940, %v943
        %v997 = vadd.f32 %v941, %v943
        %v998 = vmax.f32 %v944, 0.0
        %v999 = vmax.f32 %v945, 0.0
        %v1000 = vmax.f32 %v946, 0.0
        %v1001 = vmax.f32 %v947, 0.0
        %v1002 = vmax.f32 %v948, 0.0
        %v1003 = vmax.f32 %v949, 0.0
        %v1004 = vmax.f32 %v950, 0.0
        %v1005 = vmax.f32 %v951, 0.0
        %v1006 = vmax.f32 %v952, 0.0
        %v1007 = vmax.f32 %v953, 0.0
        %v1008 = vmax.f32 %v954, 0.0
        %v1009 = vmax.f32 %v955, 0.0
        %v1010 = vmax.f32 %v956, 0.0
        %v1011 = vmax.f32 %v957, 0.0
        %v1012 = vmax.f32 %v958, 0.0
        %v1013 = vmax.f32 %v959, 0.0
        %v1014 = vmax.f32 %v960, 0.0
        %v1015 = vmax.f32 %v961, 0.0
        %v1016 = vmax.f32 %v962, 0.0
        %v1017 = vmax.f32 %v963, 0.0
        %v1018 = vmax.f32 %v964, 0.0
        %v1019 = vmax.f32 %v965, 0.0
        %v1020 = vmax.f32 %v966, 0.0
        %v1021 = vmax.f32 %v967, 0.0
        %v1022 = vmax.f32 %v968, 0.0
        %v1023 = vmax.f32 %v969, 0.0
        %v1024 = vmax.f32 %v970, 0.0
        %v1025 = vmax.f32 %v971, 0.0
        %v1026 = vmax.f32 %v972, 0.0
        %v1027 = vmax.f32 %v973, 0.0
        %v1028 = vmax.f32 %v974, 0.0
        %v1029 = vmax.f32 %v975, 0.0
        %v1030 = vmax.f32 %v976, 0.0
        %v1031 = vmax.f32 %v977, 0.0
        %v1032 = vmax.f32 %v978, 0.0
        %v1033 = vmax.f32 %v979, 0.0
        %v1034 = vmax.f32 %v980, 0.0
        %v1035 = vmax.f32 %v981, 0.0
        %v1036 = vmax.f32 %v982, 0.0
        %v1037 = vmax.f32 %v983, 0.0
        %v1038 = vmax.f32 %v984, 0.0
        %v1039 = vmax.f32 %v985, 0.0
        %v1040 = vmax.f32 %v986, 0.0
        %v1041 = vmax.f32 %v987, 0.0
        %v1042 = vmax.f32 %v988, 0.0
        %v1043 = vmax.f32 %v989, 0.0
        %v1044 = vmax.f32 %v990, 0.0
        %v1045 = vmax.f32 %v991, 0.0
        %v1046 = vmax.f32 %v992, 0.0
        %v1047 = vmax.f32 %v993, 0.0
        %v1048 = vmax.f32 %v994, 0.0
        %v1049 = vmax.f32 %v995, 0.0
        %v1050 = vmax.f32 %v996, 0.0
        %v1051 = vmax.f32 %v997, 0.0
        %v1052 = vlaneseq
        %v1053 = vshrl.u32 %v1052, 7
        %v1054 = vadd.s32 %v1053, 8
        %v1055 = vadd.s32 %v1053, 16
        %vm1056 = vcmp.ge.s32.totalorder %v1053, 1
        %vm1057 = vcmp.ge.s32.totalorder %v1054, 1
        %vm1058 = vcmp.ge.s32.totalorder %v1055, 1
        %vm1059 = vmand 0, %vm1056
        %vm1060 = vmand 0, %vm1057
        %vm1061 = vmand 0, %vm1058
        %vm1062 = vmand 1, %vm1056
        %vm1063 = vmand 1, %vm1057
        %vm1064 = vmand 1, %vm1058
        %vm1065 = vcmp.le.s32.totalorder %v1053, 16
        %vm1066 = vcmp.le.s32.totalorder %v1054, 16
        %vm1067 = vcmp.le.s32.totalorder %v1055, 16
        %vm1068 = vmand %vm1059, %vm1065
        %vm1069 = vmand %vm1060, %vm1066
        %vm1070 = vmand %vm1061, %vm1067
        %vm1071 = vmand %vm1062, %vm1065
        %vm1072 = vmand %vm1063, %vm1066
        %vm1073 = vmand %vm1064, %vm1067
        %v1074 = vsel %vm1068, %v998, 0.0
        %v1075 = vsel %vm1069, %v999, 0.0
        %v1076 = vsel %vm1070, %v1000, 0.0
        %v1077 = vsel %vm1071, %v1001, 0.0
        %v1078 = vsel %vm1072, %v1002, 0.0
        %v1079 = vsel %vm1073, %v1003, 0.0
        %v1080 = vsel %vm1071, %v1004, 0.0
        %v1081 = vsel %vm1072, %v1005, 0.0
        %v1082 = vsel %vm1073, %v1006, 0.0
        %v1083 = vsel %vm1071, %v1007, 0.0
        %v1084 = vsel %vm1072, %v1008, 0.0
        %v1085 = vsel %vm1073, %v1009, 0.0
        %v1086 = vsel %vm1071, %v1010, 0.0
        %v1087 = vsel %vm1072, %v1011, 0.0
        %v1088 = vsel %vm1073, %v1012, 0.0
        %v1089 = vsel %vm1071, %v1013, 0.0
        %v1090 = vsel %vm1072, %v1014, 0.0
        %v1091 = vsel %vm1073, %v1015, 0.0
        %v1092 = vsel %vm1071, %v1016, 0.0
        %v1093 = vsel %vm1072, %v1017, 0.0
        %v1094 = vsel %vm1073, %v1018, 0.0
        %v1095 = vsel %vm1071, %v1019, 0.0
        %v1096 = vsel %vm1072, %v1020, 0.0
        %v1097 = vsel %vm1073, %v1021, 0.0
        %v1098 = vsel %vm1071, %v1022, 0.0
        %v1099 = vsel %vm1072, %v1023, 0.0
        %v1100 = vsel %vm1073, %v1024, 0.0
        %v1101 = vsel %vm1071, %v1025, 0.0
        %v1102 = vsel %vm1072, %v1026, 0.0
        %v1103 = vsel %vm1073, %v1027, 0.0
        %v1104 = vsel %vm1071, %v1028, 0.0
        %v1105 = vsel %vm1072, %v1029, 0.0
        %v1106 = vsel %vm1073, %v1030, 0.0
        %v1107 = vsel %vm1071, %v1031, 0.0
        %v1108 = vsel %vm1072, %v1032, 0.0
        %v1109 = vsel %vm1073, %v1033, 0.0
        %v1110 = vsel %vm1071, %v1034, 0.0
        %v1111 = vsel %vm1072, %v1035, 0.0
        %v1112 = vsel %vm1073, %v1036, 0.0
        %v1113 = vsel %vm1071, %v1037, 0.0
        %v1114 = vsel %vm1072, %v1038, 0.0
        %v1115 = vsel %vm1073, %v1039, 0.0
        %v1116 = vsel %vm1071, %v1040, 0.0
        %v1117 = vsel %vm1072, %v1041, 0.0
        %v1118 = vsel %vm1073, %v1042, 0.0
        %v1119 = vsel %vm1071, %v1043, 0.0
        %v1120 = vsel %vm1072, %v1044, 0.0
        %v1121 = vsel %vm1073, %v1045, 0.0
        %v1122 = vsel %vm1071, %v1046, 0.0
        %v1123 = vsel %vm1072, %v1047, 0.0
        %v1124 = vsel %vm1073, %v1048, 0.0
        %v1125 = vsel %vm1068, %v1049, 0.0
        %v1126 = vsel %vm1069, %v1050, 0.0
        %v1127 = vsel %vm1070, %v1051, 0.0
        %v1128 = vpack.c.bf16 %v1074, %v1074
        %v1129 = vpack.c.bf16 %v1075, %v1075
        %v1130 = vpack.c.bf16 %v1077, %v1077
        %v1131 = vpack.c.bf16 %v1078, %v1078
        %v1132 = vpack.c.bf16 %v1080, %v1080
        %v1133 = vpack.c.bf16 %v1081, %v1081
        %v1134 = vpack.c.bf16 %v1083, %v1083
        %v1135 = vpack.c.bf16 %v1084, %v1084
        %v1136 = vpack.c.bf16 %v1086, %v1086
        %v1137 = vpack.c.bf16 %v1087, %v1087
        %v1138 = vpack.c.bf16 %v1089, %v1089
        %v1139 = vpack.c.bf16 %v1090, %v1090
        %v1140 = vpack.c.bf16 %v1092, %v1092
        %v1141 = vpack.c.bf16 %v1093, %v1093
        %v1142 = vpack.c.bf16 %v1095, %v1095
        %v1143 = vpack.c.bf16 %v1096, %v1096
        %v1144 = vpack.c.bf16 %v1098, %v1098
        %v1145 = vpack.c.bf16 %v1099, %v1099
        %v1146 = vpack.c.bf16 %v1101, %v1101
        %v1147 = vpack.c.bf16 %v1102, %v1102
        %v1148 = vpack.c.bf16 %v1104, %v1104
        %v1149 = vpack.c.bf16 %v1105, %v1105
        %v1150 = vpack.c.bf16 %v1107, %v1107
        %v1151 = vpack.c.bf16 %v1108, %v1108
        %v1152 = vpack.c.bf16 %v1110, %v1110
        %v1153 = vpack.c.bf16 %v1111, %v1111
        %v1154 = vpack.c.bf16 %v1113, %v1113
        %v1155 = vpack.c.bf16 %v1114, %v1114
        %v1156 = vpack.c.bf16 %v1116, %v1116
        %v1157 = vpack.c.bf16 %v1117, %v1117
        %v1158 = vpack.c.bf16 %v1119, %v1119
        %v1159 = vpack.c.bf16 %v1120, %v1120
        %v1160 = vpack.c.bf16 %v1122, %v1122
        %v1161 = vpack.c.bf16 %v1123, %v1123
        %v1162 = vpack.c.bf16 %v1125, %v1125
        %v1163 = vpack.c.bf16 %v1126, %v1126
        %v1164 = vld [vmem:[#allocation7] sm:$0xf]
        %v1165 = vld [vmem:[#allocation7 + $0x4] sm:$0xf]
        %v1166 = vld [vmem:[#allocation7 + $0x8] sm:$0xf]
        %v1167 = vld [vmem:[#allocation7 + $0xc] sm:$0xf]
        %v1168 = vld [vmem:[#allocation7 + $0x10] sm:$0xf]
        %v1169 = vld [vmem:[#allocation7 + $0x14] sm:$0xf]
        %v1170 = vld [vmem:[#allocation7 + $0x18] sm:$0xf]
        %v1171 = vld [vmem:[#allocation7 + $0x1c] sm:$0xf]
        %v1172 = vld [vmem:[#allocation7 + $0x20] sm:$0xf]
        %v1173 = vld [vmem:[#allocation7 + $0x24] sm:$0xf]
        %v1174 = vld [vmem:[#allocation7 + $0x28] sm:$0xf]
        %v1175 = vld [vmem:[#allocation7 + $0x2c] sm:$0xf]
        %v1176 = vld [vmem:[#allocation7 + $0x30] sm:$0xf]
        %v1177 = vld [vmem:[#allocation7 + $0x34] sm:$0xf]
        %v1178 = vld [vmem:[#allocation7 + $0x38] sm:$0xf]
        %v1179 = vld [vmem:[#allocation7 + $0x3c] sm:$0xf]
        %s1180 = scalar_lea.vmem [#allocation7], 192
        %v1181 = vld [vmem:[%s1180] sm:$0xf]
        %v1182 = vld [vmem:[%s1180 + $0x4] sm:$0xf]
        %v1183 = vld [vmem:[%s1180 + $0x8] sm:$0xf]
        %v1184 = vld [vmem:[%s1180 + $0xc] sm:$0xf]
        %v1185 = vld [vmem:[%s1180 + $0x10] sm:$0xf]
        %v1186 = vld [vmem:[%s1180 + $0x14] sm:$0xf]
        %v1187 = vld [vmem:[%s1180 + $0x18] sm:$0xf]
        %v1188 = vld [vmem:[%s1180 + $0x1c] sm:$0xf]
        %v1189 = vld [vmem:[%s1180 + $0x20] sm:$0xf]
        %v1190 = vld [vmem:[%s1180 + $0x24] sm:$0xf]
        %v1191 = vld [vmem:[%s1180 + $0x28] sm:$0xf]
        %v1192 = vld [vmem:[%s1180 + $0x2c] sm:$0xf]
        %v1193 = vld [vmem:[%s1180 + $0x30] sm:$0xf]
        %v1194 = vld [vmem:[%s1180 + $0x34] sm:$0xf]
        %v1195 = vld [vmem:[%s1180 + $0x38] sm:$0xf]
        %v1196 = vld [vmem:[%s1180 + $0x3c] sm:$0xf]
        %v1229 = vunpack.c.l.b16 %v1130
        %v1230 = vunpack.c.l.b16 %v1131
        %v1231 = vunpack.c.l.b16 %v1132
        %v1232 = vunpack.c.l.b16 %v1133
        %v1233 = vunpack.c.l.b16 %v1134
        %v1234 = vunpack.c.l.b16 %v1135
        %v1235 = vunpack.c.l.b16 %v1136
        %v1236 = vunpack.c.l.b16 %v1137
        %v1237 = vunpack.c.l.b16 %v1138
        %v1238 = vunpack.c.l.b16 %v1139
        %v1239 = vunpack.c.l.b16 %v1140
        %v1240 = vunpack.c.l.b16 %v1141
        %v1241 = vunpack.c.l.b16 %v1142
        %v1242 = vunpack.c.l.b16 %v1143
        %v1243 = vunpack.c.l.b16 %v1144
        %v1244 = vunpack.c.l.b16 %v1145
        %v1245 = vunpack.c.l.b16 %v1146
        %v1246 = vunpack.c.l.b16 %v1147
        %v1247 = vunpack.c.l.b16 %v1148
        %v1248 = vunpack.c.l.b16 %v1149
        %v1249 = vunpack.c.l.b16 %v1150
        %v1250 = vunpack.c.l.b16 %v1151
        %v1251 = vunpack.c.l.b16 %v1152
        %v1252 = vunpack.c.l.b16 %v1153
        %v1253 = vunpack.c.l.b16 %v1154
        %v1254 = vunpack.c.l.b16 %v1155
        %v1255 = vunpack.c.l.b16 %v1156
        %v1256 = vunpack.c.l.b16 %v1157
        %v1257 = vunpack.c.l.b16 %v1158
        %v1258 = vunpack.c.l.b16 %v1159
        %v1259 = vunpack.c.l.b16 %v1160
        %v1260 = vunpack.c.l.b16 %v1161
        %v1261 = vpack.c.b16 %v1230, %v1229
        %v1262 = vpack.c.b16 %v1232, %v1231
        %v1263 = vpack.c.b16 %v1234, %v1233
        %v1264 = vpack.c.b16 %v1236, %v1235
        %v1265 = vpack.c.b16 %v1238, %v1237
        %v1266 = vpack.c.b16 %v1240, %v1239
        %v1267 = vpack.c.b16 %v1242, %v1241
        %v1268 = vpack.c.b16 %v1244, %v1243
        %v1269 = vpack.c.b16 %v1246, %v1245
        %v1270 = vpack.c.b16 %v1248, %v1247
        %v1271 = vpack.c.b16 %v1250, %v1249
        %v1272 = vpack.c.b16 %v1252, %v1251
        %v1273 = vpack.c.b16 %v1254, %v1253
        %v1274 = vpack.c.b16 %v1256, %v1255
        %v1275 = vpack.c.b16 %v1258, %v1257
        %v1276 = vpack.c.b16 %v1260, %v1259
        %v1309 = vunpack.c.l.b16 %v1181
        %v1310 = vunpack.c.l.b16 %v1182
        %v1311 = vunpack.c.l.b16 %v1183
        %v1312 = vunpack.c.l.b16 %v1184
        %v1313 = vunpack.c.l.b16 %v1185
        %v1314 = vunpack.c.l.b16 %v1186
        %v1315 = vunpack.c.l.b16 %v1187
        %v1316 = vunpack.c.l.b16 %v1188
        %v1317 = vunpack.c.l.b16 %v1189
        %v1318 = vunpack.c.l.b16 %v1190
        %v1319 = vunpack.c.l.b16 %v1191
        %v1320 = vunpack.c.l.b16 %v1192
        %v1321 = vunpack.c.l.b16 %v1193
        %v1322 = vunpack.c.l.b16 %v1194
        %v1323 = vunpack.c.l.b16 %v1195
        %v1324 = vunpack.c.l.b16 %v1196
        %v1325 = vpack.c.b16 %v1310, %v1309
        %v1326 = vpack.c.b16 %v1312, %v1311
        %v1327 = vpack.c.b16 %v1314, %v1313
        %v1328 = vpack.c.b16 %v1316, %v1315
        %v1329 = vpack.c.b16 %v1318, %v1317
        %v1330 = vpack.c.b16 %v1320, %v1319
        %v1331 = vpack.c.b16 %v1322, %v1321
        %v1332 = vpack.c.b16 %v1324, %v1323
        %1341 = vmatpush.bf16.msra.mxu0 %v1332
        %1342 = vmatpush.bf16.msra.mxu0 %v1331
        %1343 = vmatpush.bf16.msra.mxu0 %v1330
        %1344 = vmatpush.bf16.msra.mxu0 %v1329
        %1345 = vmatpush.bf16.msra.mxu0 %v1328
        %1346 = vmatpush.bf16.msra.mxu0 %v1327
        %1347 = vmatpush.bf16.msra.mxu0 %v1326
        %1348 = vmatpush.bf16.msra.mxu0 %v1325
        %1349 = vmatmul.bf16.gmra.mxu0 %v1261
        %v1350 = vpop.f32.mrf.mxu0
        %v1351 = vadd.f32 0.0, %v1350
        %v1352 = vpop.f32.mrf.mxu0
        %v1353 = vadd.f32 0.0, %v1352
        %1354 = vmatmul.bf16.gmra.mxu0 %v1262
        %v1355 = vpop.f32.mrf.mxu0
        %v1356 = vadd.f32 0.0, %v1355
        %v1357 = vpop.f32.mrf.mxu0
        %v1358 = vadd.f32 0.0, %v1357
        %1359 = vmatmul.bf16.gmra.mxu0 %v1263
        %v1360 = vpop.f32.mrf.mxu0
        %v1361 = vadd.f32 0.0, %v1360
        %v1362 = vpop.f32.mrf.mxu0
        %v1363 = vadd.f32 0.0, %v1362
        %1364 = vmatmul.bf16.gmra.mxu0 %v1264
        %v1365 = vpop.f32.mrf.mxu0
        %v1366 = vadd.f32 0.0, %v1365
        %v1367 = vpop.f32.mrf.mxu0
        %v1368 = vadd.f32 0.0, %v1367
        %1369 = vmatmul.bf16.gmra.mxu0 %v1265
        %v1370 = vpop.f32.mrf.mxu0
        %v1371 = vadd.f32 0.0, %v1370
        %v1372 = vpop.f32.mrf.mxu0
        %v1373 = vadd.f32 0.0, %v1372
        %1374 = vmatmul.bf16.gmra.mxu0 %v1266
        %v1375 = vpop.f32.mrf.mxu0
        %v1376 = vadd.f32 0.0, %v1375
        %v1377 = vpop.f32.mrf.mxu0
        %v1378 = vadd.f32 0.0, %v1377
        %1379 = vmatmul.bf16.gmra.mxu0 %v1267
        %v1380 = vpop.f32.mrf.mxu0
        %v1381 = vadd.f32 0.0, %v1380
        %v1382 = vpop.f32.mrf.mxu0
        %v1383 = vadd.f32 0.0, %v1382
        %1384 = vmatmul.bf16.gmra.mxu0 %v1268
        %v1385 = vpop.f32.mrf.mxu0
        %v1386 = vadd.f32 0.0, %v1385
        %v1387 = vpop.f32.mrf.mxu0
        %v1388 = vadd.f32 0.0, %v1387
        %1389 = vmatmul.bf16.gmra.mxu0 %v1269
        %v1390 = vpop.f32.mrf.mxu0
        %v1391 = vadd.f32 0.0, %v1390
        %v1392 = vpop.f32.mrf.mxu0
        %v1393 = vadd.f32 0.0, %v1392
        %1394 = vmatmul.bf16.gmra.mxu0 %v1270
        %v1395 = vpop.f32.mrf.mxu0
        %v1396 = vadd.f32 0.0, %v1395
        %v1397 = vpop.f32.mrf.mxu0
        %v1398 = vadd.f32 0.0, %v1397
        %1399 = vmatmul.bf16.gmra.mxu0 %v1271
        %v1400 = vpop.f32.mrf.mxu0
        %v1401 = vadd.f32 0.0, %v1400
        %v1402 = vpop.f32.mrf.mxu0
        %v1403 = vadd.f32 0.0, %v1402
        %1404 = vmatmul.bf16.gmra.mxu0 %v1272
        %v1405 = vpop.f32.mrf.mxu0
        %v1406 = vadd.f32 0.0, %v1405
        %v1407 = vpop.f32.mrf.mxu0
        %v1408 = vadd.f32 0.0, %v1407
        %1409 = vmatmul.bf16.gmra.mxu0 %v1273
        %v1410 = vpop.f32.mrf.mxu0
        %v1411 = vadd.f32 0.0, %v1410
        %v1412 = vpop.f32.mrf.mxu0
        %v1413 = vadd.f32 0.0, %v1412
        %1414 = vmatmul.bf16.gmra.mxu0 %v1274
        %v1415 = vpop.f32.mrf.mxu0
        %v1416 = vadd.f32 0.0, %v1415
        %v1417 = vpop.f32.mrf.mxu0
        %v1418 = vadd.f32 0.0, %v1417
        %1419 = vmatmul.bf16.gmra.mxu0 %v1275
        %v1420 = vpop.f32.mrf.mxu0
        %v1421 = vadd.f32 0.0, %v1420
        %v1422 = vpop.f32.mrf.mxu0
        %v1423 = vadd.f32 0.0, %v1422
        %1424 = vmatmul.bf16.gmra.mxu0 %v1276
        %v1425 = vpop.f32.mrf.mxu0
        %v1426 = vadd.f32 0.0, %v1425
        %v1427 = vpop.f32.mrf.mxu0
        %v1428 = vadd.f32 0.0, %v1427
        %1429 = vdwg.mxu0
        %v1432 = vunpack.c.l.b16 %v1128
        %v1433 = vunpack.c.l.b16 %v1129
        %v1434 = vpack.c.b16 %v1433, %v1432
        %v1452 = vunpack.c.l.b16 %v1164
        %v1453 = vunpack.c.l.b16 %v1165
        %v1454 = vunpack.c.l.b16 %v1166
        %v1455 = vunpack.c.l.b16 %v1167
        %v1456 = vunpack.c.l.b16 %v1168
        %v1457 = vunpack.c.l.b16 %v1169
        %v1458 = vunpack.c.l.b16 %v1170
        %v1459 = vunpack.c.l.b16 %v1171
        %v1460 = vunpack.c.l.b16 %v1172
        %v1461 = vunpack.c.l.b16 %v1173
        %v1462 = vunpack.c.l.b16 %v1174
        %v1463 = vunpack.c.l.b16 %v1175
        %v1464 = vunpack.c.l.b16 %v1176
        %v1465 = vunpack.c.l.b16 %v1177
        %v1466 = vunpack.c.l.b16 %v1178
        %v1467 = vunpack.c.l.b16 %v1179
        %v1468 = vpack.c.b16 %v1453, %v1452
        %v1469 = vpack.c.b16 %v1455, %v1454
        %v1470 = vpack.c.b16 %v1457, %v1456
        %v1471 = vpack.c.b16 %v1459, %v1458
        %v1472 = vpack.c.b16 %v1461, %v1460
        %v1473 = vpack.c.b16 %v1463, %v1462
        %v1474 = vpack.c.b16 %v1465, %v1464
        %v1475 = vpack.c.b16 %v1467, %v1466
        %1484 = vmatpush.bf16.msra.mxu0 %v1475
        %1485 = vmatpush.bf16.msra.mxu0 %v1474
        %1486 = vmatpush.bf16.msra.mxu0 %v1473
        %1487 = vmatpush.bf16.msra.mxu0 %v1472
        %1488 = vmatpush.bf16.msra.mxu0 %v1471
        %1489 = vmatpush.bf16.msra.mxu0 %v1470
        %1490 = vmatpush.bf16.msra.mxu0 %v1469
        %1491 = vmatpush.bf16.msra.mxu0 %v1468
        %1492 = vmatmul.bf16.gmra.mxu0 %v1434
        %v1493 = vpop.f32.mrf.mxu0
        %v1494 = vadd.f32 %v1351, %v1493
        %v1495 = vpop.f32.mrf.mxu0
        %v1496 = vadd.f32 %v1353, %v1495
        %1497 = vmatmul.bf16.gmra.mxu0 %v1261
        %v1498 = vpop.f32.mrf.mxu0
        %v1499 = vadd.f32 %v1356, %v1498
        %v1500 = vpop.f32.mrf.mxu0
        %v1501 = vadd.f32 %v1358, %v1500
        %1502 = vmatmul.bf16.gmra.mxu0 %v1262
        %v1503 = vpop.f32.mrf.mxu0
        %v1504 = vadd.f32 %v1361, %v1503
        %v1505 = vpop.f32.mrf.mxu0
        %v1506 = vadd.f32 %v1363, %v1505
        %1507 = vmatmul.bf16.gmra.mxu0 %v1263
        %v1508 = vpop.f32.mrf.mxu0
        %v1509 = vadd.f32 %v1366, %v1508
        %v1510 = vpop.f32.mrf.mxu0
        %v1511 = vadd.f32 %v1368, %v1510
        %1512 = vmatmul.bf16.gmra.mxu0 %v1264
        %v1513 = vpop.f32.mrf.mxu0
        %v1514 = vadd.f32 %v1371, %v1513
        %v1515 = vpop.f32.mrf.mxu0
        %v1516 = vadd.f32 %v1373, %v1515
        %1517 = vmatmul.bf16.gmra.mxu0 %v1265
        %v1518 = vpop.f32.mrf.mxu0
        %v1519 = vadd.f32 %v1376, %v1518
        %v1520 = vpop.f32.mrf.mxu0
        %v1521 = vadd.f32 %v1378, %v1520
        %1522 = vmatmul.bf16.gmra.mxu0 %v1266
        %v1523 = vpop.f32.mrf.mxu0
        %v1524 = vadd.f32 %v1381, %v1523
        %v1525 = vpop.f32.mrf.mxu0
        %v1526 = vadd.f32 %v1383, %v1525
        %1527 = vmatmul.bf16.gmra.mxu0 %v1267
        %v1528 = vpop.f32.mrf.mxu0
        %v1529 = vadd.f32 %v1386, %v1528
        %v1530 = vpop.f32.mrf.mxu0
        %v1531 = vadd.f32 %v1388, %v1530
        %1532 = vmatmul.bf16.gmra.mxu0 %v1268
        %v1533 = vpop.f32.mrf.mxu0
        %v1534 = vadd.f32 %v1391, %v1533
        %v1535 = vpop.f32.mrf.mxu0
        %v1536 = vadd.f32 %v1393, %v1535
        %1537 = vmatmul.bf16.gmra.mxu0 %v1269
        %v1538 = vpop.f32.mrf.mxu0
        %v1539 = vadd.f32 %v1396, %v1538
        %v1540 = vpop.f32.mrf.mxu0
        %v1541 = vadd.f32 %v1398, %v1540
        %1542 = vmatmul.bf16.gmra.mxu0 %v1270
        %v1543 = vpop.f32.mrf.mxu0
        %v1544 = vadd.f32 %v1401, %v1543
        %v1545 = vpop.f32.mrf.mxu0
        %v1546 = vadd.f32 %v1403, %v1545
        %1547 = vmatmul.bf16.gmra.mxu0 %v1271
        %v1548 = vpop.f32.mrf.mxu0
        %v1549 = vadd.f32 %v1406, %v1548
        %v1550 = vpop.f32.mrf.mxu0
        %v1551 = vadd.f32 %v1408, %v1550
        %1552 = vmatmul.bf16.gmra.mxu0 %v1272
        %v1553 = vpop.f32.mrf.mxu0
        %v1554 = vadd.f32 %v1411, %v1553
        %v1555 = vpop.f32.mrf.mxu0
        %v1556 = vadd.f32 %v1413, %v1555
        %1557 = vmatmul.bf16.gmra.mxu0 %v1273
        %v1558 = vpop.f32.mrf.mxu0
        %v1559 = vadd.f32 %v1416, %v1558
        %v1560 = vpop.f32.mrf.mxu0
        %v1561 = vadd.f32 %v1418, %v1560
        %1562 = vmatmul.bf16.gmra.mxu0 %v1274
        %v1563 = vpop.f32.mrf.mxu0
        %v1564 = vadd.f32 %v1421, %v1563
        %v1565 = vpop.f32.mrf.mxu0
        %v1566 = vadd.f32 %v1423, %v1565
        %1567 = vmatmul.bf16.gmra.mxu0 %v1275
        %v1568 = vpop.f32.mrf.mxu0
        %v1569 = vadd.f32 %v1426, %v1568
        %v1570 = vpop.f32.mrf.mxu0
        %v1571 = vadd.f32 %v1428, %v1570
        %1572 = vdwg.mxu0
        %s1573 = scalar_lea.vmem [#allocation7], 384
        %v1574 = vld [vmem:[%s1573] sm:$0xf]
        %v1575 = vld [vmem:[%s1573 + $0x4] sm:$0xf]
        %v1576 = vld [vmem:[%s1573 + $0x8] sm:$0xf]
        %v1577 = vld [vmem:[%s1573 + $0xc] sm:$0xf]
        %v1578 = vld [vmem:[%s1573 + $0x10] sm:$0xf]
        %v1579 = vld [vmem:[%s1573 + $0x14] sm:$0xf]
        %v1580 = vld [vmem:[%s1573 + $0x18] sm:$0xf]
        %v1581 = vld [vmem:[%s1573 + $0x1c] sm:$0xf]
        %v1582 = vld [vmem:[%s1573 + $0x20] sm:$0xf]
        %v1583 = vld [vmem:[%s1573 + $0x24] sm:$0xf]
        %v1584 = vld [vmem:[%s1573 + $0x28] sm:$0xf]
        %v1585 = vld [vmem:[%s1573 + $0x2c] sm:$0xf]
        %v1586 = vld [vmem:[%s1573 + $0x30] sm:$0xf]
        %v1587 = vld [vmem:[%s1573 + $0x34] sm:$0xf]
        %v1588 = vld [vmem:[%s1573 + $0x38] sm:$0xf]
        %v1589 = vld [vmem:[%s1573 + $0x3c] sm:$0xf]
        %v1592 = vunpack.c.l.b16 %v1162
        %v1593 = vunpack.c.l.b16 %v1163
        %v1594 = vpack.c.b16 %v1593, %v1592
        %v1612 = vunpack.c.l.b16 %v1574
        %v1613 = vunpack.c.l.b16 %v1575
        %v1614 = vunpack.c.l.b16 %v1576
        %v1615 = vunpack.c.l.b16 %v1577
        %v1616 = vunpack.c.l.b16 %v1578
        %v1617 = vunpack.c.l.b16 %v1579
        %v1618 = vunpack.c.l.b16 %v1580
        %v1619 = vunpack.c.l.b16 %v1581
        %v1620 = vunpack.c.l.b16 %v1582
        %v1621 = vunpack.c.l.b16 %v1583
        %v1622 = vunpack.c.l.b16 %v1584
        %v1623 = vunpack.c.l.b16 %v1585
        %v1624 = vunpack.c.l.b16 %v1586
        %v1625 = vunpack.c.l.b16 %v1587
        %v1626 = vunpack.c.l.b16 %v1588
        %v1627 = vunpack.c.l.b16 %v1589
        %v1628 = vpack.c.b16 %v1613, %v1612
        %v1629 = vpack.c.b16 %v1615, %v1614
        %v1630 = vpack.c.b16 %v1617, %v1616
        %v1631 = vpack.c.b16 %v1619, %v1618
        %v1632 = vpack.c.b16 %v1621, %v1620
        %v1633 = vpack.c.b16 %v1623, %v1622
        %v1634 = vpack.c.b16 %v1625, %v1624
        %v1635 = vpack.c.b16 %v1627, %v1626
        %1644 = vmatpush.bf16.msra.mxu0 %v1635
        %1645 = vmatpush.bf16.msra.mxu0 %v1634
        %1646 = vmatpush.bf16.msra.mxu0 %v1633
        %1647 = vmatpush.bf16.msra.mxu0 %v1632
        %1648 = vmatpush.bf16.msra.mxu0 %v1631
        %1649 = vmatpush.bf16.msra.mxu0 %v1630
        %1650 = vmatpush.bf16.msra.mxu0 %v1629
        %1651 = vmatpush.bf16.msra.mxu0 %v1628
        %1652 = vmatmul.bf16.gmra.mxu0 %v1262
        %v1653 = vpop.f32.mrf.mxu0
        %v1654 = vadd.f32 0.0, %v1653
        %v1655 = vpop.f32.mrf.mxu0
        %v1656 = vadd.f32 0.0, %v1655
        %1657 = vmatmul.bf16.gmra.mxu0 %v1263
        %v1658 = vpop.f32.mrf.mxu0
        %v1659 = vadd.f32 0.0, %v1658
        %v1660 = vpop.f32.mrf.mxu0
        %v1661 = vadd.f32 0.0, %v1660
        %1662 = vmatmul.bf16.gmra.mxu0 %v1264
        %v1663 = vpop.f32.mrf.mxu0
        %v1664 = vadd.f32 0.0, %v1663
        %v1665 = vpop.f32.mrf.mxu0
        %v1666 = vadd.f32 0.0, %v1665
        %1667 = vmatmul.bf16.gmra.mxu0 %v1265
        %v1668 = vpop.f32.mrf.mxu0
        %v1669 = vadd.f32 0.0, %v1668
        %v1670 = vpop.f32.mrf.mxu0
        %v1671 = vadd.f32 0.0, %v1670
        %1672 = vmatmul.bf16.gmra.mxu0 %v1266
        %v1673 = vpop.f32.mrf.mxu0
        %v1674 = vadd.f32 0.0, %v1673
        %v1675 = vpop.f32.mrf.mxu0
        %v1676 = vadd.f32 0.0, %v1675
        %1677 = vmatmul.bf16.gmra.mxu0 %v1267
        %v1678 = vpop.f32.mrf.mxu0
        %v1679 = vadd.f32 0.0, %v1678
        %v1680 = vpop.f32.mrf.mxu0
        %v1681 = vadd.f32 0.0, %v1680
        %1682 = vmatmul.bf16.gmra.mxu0 %v1268
        %v1683 = vpop.f32.mrf.mxu0
        %v1684 = vadd.f32 0.0, %v1683
        %v1685 = vpop.f32.mrf.mxu0
        %v1686 = vadd.f32 0.0, %v1685
        %1687 = vmatmul.bf16.gmra.mxu0 %v1269
        %v1688 = vpop.f32.mrf.mxu0
        %v1689 = vadd.f32 0.0, %v1688
        %v1690 = vpop.f32.mrf.mxu0
        %v1691 = vadd.f32 0.0, %v1690
        %1692 = vmatmul.bf16.gmra.mxu0 %v1270
        %v1693 = vpop.f32.mrf.mxu0
        %v1694 = vadd.f32 0.0, %v1693
        %v1695 = vpop.f32.mrf.mxu0
        %v1696 = vadd.f32 0.0, %v1695
        %1697 = vmatmul.bf16.gmra.mxu0 %v1271
        %v1698 = vpop.f32.mrf.mxu0
        %v1699 = vadd.f32 0.0, %v1698
        %v1700 = vpop.f32.mrf.mxu0
        %v1701 = vadd.f32 0.0, %v1700
        %1702 = vmatmul.bf16.gmra.mxu0 %v1272
        %v1703 = vpop.f32.mrf.mxu0
        %v1704 = vadd.f32 0.0, %v1703
        %v1705 = vpop.f32.mrf.mxu0
        %v1706 = vadd.f32 0.0, %v1705
        %1707 = vmatmul.bf16.gmra.mxu0 %v1273
        %v1708 = vpop.f32.mrf.mxu0
        %v1709 = vadd.f32 0.0, %v1708
        %v1710 = vpop.f32.mrf.mxu0
        %v1711 = vadd.f32 0.0, %v1710
        %1712 = vmatmul.bf16.gmra.mxu0 %v1274
        %v1713 = vpop.f32.mrf.mxu0
        %v1714 = vadd.f32 0.0, %v1713
        %v1715 = vpop.f32.mrf.mxu0
        %v1716 = vadd.f32 0.0, %v1715
        %1717 = vmatmul.bf16.gmra.mxu0 %v1275
        %v1718 = vpop.f32.mrf.mxu0
        %v1719 = vadd.f32 0.0, %v1718
        %v1720 = vpop.f32.mrf.mxu0
        %v1721 = vadd.f32 0.0, %v1720
        %1722 = vmatmul.bf16.gmra.mxu0 %v1276
        %v1723 = vpop.f32.mrf.mxu0
        %v1724 = vadd.f32 0.0, %v1723
        %v1725 = vpop.f32.mrf.mxu0
        %v1726 = vadd.f32 0.0, %v1725
        %1727 = vmatmul.bf16.gmra.mxu0 %v1594
        %v1728 = vpop.f32.mrf.mxu0
        %v1729 = vadd.f32 0.0, %v1728
        %v1730 = vpop.f32.mrf.mxu0
        %v1731 = vadd.f32 0.0, %v1730
        %1732 = vdwg.mxu0
        %v1733 = vadd.f32 %v1494, %v1654
        %v1734 = vadd.f32 %v1496, %v1656
        %v1735 = vadd.f32 %v1499, %v1659
        %v1736 = vadd.f32 %v1501, %v1661
        %v1737 = vadd.f32 %v1504, %v1664
        %v1738 = vadd.f32 %v1506, %v1666
        %v1739 = vadd.f32 %v1509, %v1669
        %v1740 = vadd.f32 %v1511, %v1671
        %v1741 = vadd.f32 %v1514, %v1674
        %v1742 = vadd.f32 %v1516, %v1676
        %v1743 = vadd.f32 %v1519, %v1679
        %v1744 = vadd.f32 %v1521, %v1681
        %v1745 = vadd.f32 %v1524, %v1684
        %v1746 = vadd.f32 %v1526, %v1686
        %v1747 = vadd.f32 %v1529, %v1689
        %v1748 = vadd.f32 %v1531, %v1691
        %v1749 = vadd.f32 %v1534, %v1694
        %v1750 = vadd.f32 %v1536, %v1696
        %v1751 = vadd.f32 %v1539, %v1699
        %v1752 = vadd.f32 %v1541, %v1701
        %v1753 = vadd.f32 %v1544, %v1704
        %v1754 = vadd.f32 %v1546, %v1706
        %v1755 = vadd.f32 %v1549, %v1709
        %v1756 = vadd.f32 %v1551, %v1711
        %v1757 = vadd.f32 %v1554, %v1714
        %v1758 = vadd.f32 %v1556, %v1716
        %v1759 = vadd.f32 %v1559, %v1719
        %v1760 = vadd.f32 %v1561, %v1721
        %v1761 = vadd.f32 %v1564, %v1724
        %v1762 = vadd.f32 %v1566, %v1726
        %v1763 = vadd.f32 %v1569, %v1729
        %v1764 = vadd.f32 %v1571, %v1731
        %v1765 = vpack.c.bf16 %v1076, %v1076
        %v1766 = vpack.c.bf16 %v1079, %v1079
        %v1767 = vpack.c.bf16 %v1082, %v1082
        %v1768 = vpack.c.bf16 %v1085, %v1085
        %v1769 = vpack.c.bf16 %v1088, %v1088
        %v1770 = vpack.c.bf16 %v1091, %v1091
        %v1771 = vpack.c.bf16 %v1094, %v1094
        %v1772 = vpack.c.bf16 %v1097, %v1097
        %v1773 = vpack.c.bf16 %v1100, %v1100
        %v1774 = vpack.c.bf16 %v1103, %v1103
        %v1775 = vpack.c.bf16 %v1106, %v1106
        %v1776 = vpack.c.bf16 %v1109, %v1109
        %v1777 = vpack.c.bf16 %v1112, %v1112
        %v1778 = vpack.c.bf16 %v1115, %v1115
        %v1779 = vpack.c.bf16 %v1118, %v1118
        %v1780 = vpack.c.bf16 %v1121, %v1121
        %v1781 = vpack.c.bf16 %v1124, %v1124
        %v1782 = vpack.c.bf16 %v1127, %v1127
        %vm1783 = vsmask.f32 3328
        %vm1784 = vsmask.f32 7440
        %vm1785 = vmor %vm1783, %vm1784
        %v1787 = vshrl.u32 %v1128, 16
        %v1789 = vrot.slane %v1787, 4
        %v1790 = vshll.u32 %v1128, 16
        %v1792 = vrot.slane %v1790, 5
        %v1793 = vor.u32 %v1789, %v1792
        %v1794 = vrot.slane %v1793, 4
        %v1796 = vshll.u32 %v1129, 16
        %v1798 = vrot.slane %v1796, 5
        %v1799 = vsel %vm1785, %v1794, %v1798
        %v1800 = vshrl.u32 %v1129, 16
        %v1802 = vrot.slane %v1800, 4
        %v1803 = vor.u32 %v1802, %v1798
        %v1804 = vrot.slane %v1803, 4
        %v1806 = vshll.u32 %v1765, 16
        %v1808 = vrot.slane %v1806, 5
        %v1809 = vsel %vm1785, %v1804, %v1808
        %v1811 = vshrl.u32 %v1130, 16
        %v1813 = vrot.slane %v1811, 4
        %v1814 = vshll.u32 %v1130, 16
        %v1816 = vrot.slane %v1814, 5
        %v1817 = vor.u32 %v1813, %v1816
        %v1818 = vrot.slane %v1817, 4
        %v1820 = vshll.u32 %v1131, 16
        %v1822 = vrot.slane %v1820, 5
        %v1823 = vsel %vm1785, %v1818, %v1822
        %v1824 = vshrl.u32 %v1131, 16
        %v1826 = vrot.slane %v1824, 4
        %v1827 = vor.u32 %v1826, %v1822
        %v1828 = vrot.slane %v1827, 4
        %v1830 = vshll.u32 %v1766, 16
        %v1832 = vrot.slane %v1830, 5
        %v1833 = vsel %vm1785, %v1828, %v1832
        %v1835 = vshrl.u32 %v1132, 16
        %v1837 = vrot.slane %v1835, 4
        %v1838 = vshll.u32 %v1132, 16
        %v1840 = vrot.slane %v1838, 5
        %v1841 = vor.u32 %v1837, %v1840
        %v1842 = vrot.slane %v1841, 4
        %v1844 = vshll.u32 %v1133, 16
        %v1846 = vrot.slane %v1844, 5
        %v1847 = vsel %vm1785, %v1842, %v1846
        %v1848 = vshrl.u32 %v1133, 16
        %v1850 = vrot.slane %v1848, 4
        %v1851 = vor.u32 %v1850, %v1846
        %v1852 = vrot.slane %v1851, 4
        %v1854 = vshll.u32 %v1767, 16
        %v1856 = vrot.slane %v1854, 5
        %v1857 = vsel %vm1785, %v1852, %v1856
        %v1859 = vshrl.u32 %v1134, 16
        %v1861 = vrot.slane %v1859, 4
        %v1862 = vshll.u32 %v1134, 16
        %v1864 = vrot.slane %v1862, 5
        %v1865 = vor.u32 %v1861, %v1864
        %v1866 = vrot.slane %v1865, 4
        %v1868 = vshll.u32 %v1135, 16
        %v1870 = vrot.slane %v1868, 5
        %v1871 = vsel %vm1785, %v1866, %v1870
        %v1872 = vshrl.u32 %v1135, 16
        %v1874 = vrot.slane %v1872, 4
        %v1875 = vor.u32 %v1874, %v1870
        %v1876 = vrot.slane %v1875, 4
        %v1878 = vshll.u32 %v1768, 16
        %v1880 = vrot.slane %v1878, 5
        %v1881 = vsel %vm1785, %v1876, %v1880
        %v1883 = vshrl.u32 %v1136, 16
        %v1885 = vrot.slane %v1883, 4
        %v1886 = vshll.u32 %v1136, 16
        %v1888 = vrot.slane %v1886, 5
        %v1889 = vor.u32 %v1885, %v1888
        %v1890 = vrot.slane %v1889, 4
        %v1892 = vshll.u32 %v1137, 16
        %v1894 = vrot.slane %v1892, 5
        %v1895 = vsel %vm1785, %v1890, %v1894
        %v1896 = vshrl.u32 %v1137, 16
        %v1898 = vrot.slane %v1896, 4
        %v1899 = vor.u32 %v1898, %v1894
        %v1900 = vrot.slane %v1899, 4
        %v1902 = vshll.u32 %v1769, 16
        %v1904 = vrot.slane %v1902, 5
        %v1905 = vsel %vm1785, %v1900, %v1904
        %v1907 = vshrl.u32 %v1138, 16
        %v1909 = vrot.slane %v1907, 4
        %v1910 = vshll.u32 %v1138, 16
        %v1912 = vrot.slane %v1910, 5
        %v1913 = vor.u32 %v1909, %v1912
        %v1914 = vrot.slane %v1913, 4
        %v1916 = vshll.u32 %v1139, 16
        %v1918 = vrot.slane %v1916, 5
        %v1919 = vsel %vm1785, %v1914, %v1918
        %v1920 = vshrl.u32 %v1139, 16
        %v1922 = vrot.slane %v1920, 4
        %v1923 = vor.u32 %v1922, %v1918
        %v1924 = vrot.slane %v1923, 4
        %v1926 = vshll.u32 %v1770, 16
        %v1928 = vrot.slane %v1926, 5
        %v1929 = vsel %vm1785, %v1924, %v1928
        %v1931 = vshrl.u32 %v1140, 16
        %v1933 = vrot.slane %v1931, 4
        %v1934 = vshll.u32 %v1140, 16
        %v1936 = vrot.slane %v1934, 5
        %v1937 = vor.u32 %v1933, %v1936
        %v1938 = vrot.slane %v1937, 4
        %v1940 = vshll.u32 %v1141, 16
        %v1942 = vrot.slane %v1940, 5
        %v1943 = vsel %vm1785, %v1938, %v1942
        %v1944 = vshrl.u32 %v1141, 16
        %v1946 = vrot.slane %v1944, 4
        %v1947 = vor.u32 %v1946, %v1942
        %v1948 = vrot.slane %v1947, 4
        %v1950 = vshll.u32 %v1771, 16
        %v1952 = vrot.slane %v1950, 5
        %v1953 = vsel %vm1785, %v1948, %v1952
        %v1955 = vshrl.u32 %v1142, 16
        %v1957 = vrot.slane %v1955, 4
        %v1958 = vshll.u32 %v1142, 16
        %v1960 = vrot.slane %v1958, 5
        %v1961 = vor.u32 %v1957, %v1960
        %v1962 = vrot.slane %v1961, 4
        %v1964 = vshll.u32 %v1143, 16
        %v1966 = vrot.slane %v1964, 5
        %v1967 = vsel %vm1785, %v1962, %v1966
        %v1968 = vshrl.u32 %v1143, 16
        %v1970 = vrot.slane %v1968, 4
        %v1971 = vor.u32 %v1970, %v1966
        %v1972 = vrot.slane %v1971, 4
        %v1974 = vshll.u32 %v1772, 16
        %v1976 = vrot.slane %v1974, 5
        %v1977 = vsel %vm1785, %v1972, %v1976
        %v1979 = vshrl.u32 %v1144, 16
        %v1981 = vrot.slane %v1979, 4
        %v1982 = vshll.u32 %v1144, 16
        %v1984 = vrot.slane %v1982, 5
        %v1985 = vor.u32 %v1981, %v1984
        %v1986 = vrot.slane %v1985, 4
        %v1988 = vshll.u32 %v1145, 16
        %v1990 = vrot.slane %v1988, 5
        %v1991 = vsel %vm1785, %v1986, %v1990
        %v1992 = vshrl.u32 %v1145, 16
        %v1994 = vrot.slane %v1992, 4
        %v1995 = vor.u32 %v1994, %v1990
        %v1996 = vrot.slane %v1995, 4
        %v1998 = vshll.u32 %v1773, 16
        %v2000 = vrot.slane %v1998, 5
        %v2001 = vsel %vm1785, %v1996, %v2000
        %v2003 = vshrl.u32 %v1146, 16
        %v2005 = vrot.slane %v2003, 4
        %v2006 = vshll.u32 %v1146, 16
        %v2008 = vrot.slane %v2006, 5
        %v2009 = vor.u32 %v2005, %v2008
        %v2010 = vrot.slane %v2009, 4
        %v2012 = vshll.u32 %v1147, 16
        %v2014 = vrot.slane %v2012, 5
        %v2015 = vsel %vm1785, %v2010, %v2014
        %v2016 = vshrl.u32 %v1147, 16
        %v2018 = vrot.slane %v2016, 4
        %v2019 = vor.u32 %v2018, %v2014
        %v2020 = vrot.slane %v2019, 4
        %v2022 = vshll.u32 %v1774, 16
        %v2024 = vrot.slane %v2022, 5
        %v2025 = vsel %vm1785, %v2020, %v2024
        %v2027 = vshrl.u32 %v1148, 16
        %v2029 = vrot.slane %v2027, 4
        %v2030 = vshll.u32 %v1148, 16
        %v2032 = vrot.slane %v2030, 5
        %v2033 = vor.u32 %v2029, %v2032
        %v2034 = vrot.slane %v2033, 4
        %v2036 = vshll.u32 %v1149, 16
        %v2038 = vrot.slane %v2036, 5
        %v2039 = vsel %vm1785, %v2034, %v2038
        %v2040 = vshrl.u32 %v1149, 16
        %v2042 = vrot.slane %v2040, 4
        %v2043 = vor.u32 %v2042, %v2038
        %v2044 = vrot.slane %v2043, 4
        %v2046 = vshll.u32 %v1775, 16
        %v2048 = vrot.slane %v2046, 5
        %v2049 = vsel %vm1785, %v2044, %v2048
        %v2051 = vshrl.u32 %v1150, 16
        %v2053 = vrot.slane %v2051, 4
        %v2054 = vshll.u32 %v1150, 16
        %v2056 = vrot.slane %v2054, 5
        %v2057 = vor.u32 %v2053, %v2056
        %v2058 = vrot.slane %v2057, 4
        %v2060 = vshll.u32 %v1151, 16
        %v2062 = vrot.slane %v2060, 5
        %v2063 = vsel %vm1785, %v2058, %v2062
        %v2064 = vshrl.u32 %v1151, 16
        %v2066 = vrot.slane %v2064, 4
        %v2067 = vor.u32 %v2066, %v2062
        %v2068 = vrot.slane %v2067, 4
        %v2070 = vshll.u32 %v1776, 16
        %v2072 = vrot.slane %v2070, 5
        %v2073 = vsel %vm1785, %v2068, %v2072
        %v2075 = vshrl.u32 %v1152, 16
        %v2077 = vrot.slane %v2075, 4
        %v2078 = vshll.u32 %v1152, 16
        %v2080 = vrot.slane %v2078, 5
        %v2081 = vor.u32 %v2077, %v2080
        %v2082 = vrot.slane %v2081, 4
        %v2084 = vshll.u32 %v1153, 16
        %v2086 = vrot.slane %v2084, 5
        %v2087 = vsel %vm1785, %v2082, %v2086
        %v2088 = vshrl.u32 %v1153, 16
        %v2090 = vrot.slane %v2088, 4
        %v2091 = vor.u32 %v2090, %v2086
        %v2092 = vrot.slane %v2091, 4
        %v2094 = vshll.u32 %v1777, 16
        %v2096 = vrot.slane %v2094, 5
        %v2097 = vsel %vm1785, %v2092, %v2096
        %v2099 = vshrl.u32 %v1154, 16
        %v2101 = vrot.slane %v2099, 4
        %v2102 = vshll.u32 %v1154, 16
        %v2104 = vrot.slane %v2102, 5
        %v2105 = vor.u32 %v2101, %v2104
        %v2106 = vrot.slane %v2105, 4
        %v2108 = vshll.u32 %v1155, 16
        %v2110 = vrot.slane %v2108, 5
        %v2111 = vsel %vm1785, %v2106, %v2110
        %v2112 = vshrl.u32 %v1155, 16
        %v2114 = vrot.slane %v2112, 4
        %v2115 = vor.u32 %v2114, %v2110
        %v2116 = vrot.slane %v2115, 4
        %v2118 = vshll.u32 %v1778, 16
        %v2120 = vrot.slane %v2118, 5
        %v2121 = vsel %vm1785, %v2116, %v2120
        %v2123 = vshrl.u32 %v1156, 16
        %v2125 = vrot.slane %v2123, 4
        %v2126 = vshll.u32 %v1156, 16
        %v2128 = vrot.slane %v2126, 5
        %v2129 = vor.u32 %v2125, %v2128
        %v2130 = vrot.slane %v2129, 4
        %v2132 = vshll.u32 %v1157, 16
        %v2134 = vrot.slane %v2132, 5
        %v2135 = vsel %vm1785, %v2130, %v2134
        %v2136 = vshrl.u32 %v1157, 16
        %v2138 = vrot.slane %v2136, 4
        %v2139 = vor.u32 %v2138, %v2134
        %v2140 = vrot.slane %v2139, 4
        %v2142 = vshll.u32 %v1779, 16
        %v2144 = vrot.slane %v2142, 5
        %v2145 = vsel %vm1785, %v2140, %v2144
        %v2147 = vshrl.u32 %v1158, 16
        %v2149 = vrot.slane %v2147, 4
        %v2150 = vshll.u32 %v1158, 16
        %v2152 = vrot.slane %v2150, 5
        %v2153 = vor.u32 %v2149, %v2152
        %v2154 = vrot.slane %v2153, 4
        %v2156 = vshll.u32 %v1159, 16
        %v2158 = vrot.slane %v2156, 5
        %v2159 = vsel %vm1785, %v2154, %v2158
        %v2160 = vshrl.u32 %v1159, 16
        %v2162 = vrot.slane %v2160, 4
        %v2163 = vor.u32 %v2162, %v2158
        %v2164 = vrot.slane %v2163, 4
        %v2166 = vshll.u32 %v1780, 16
        %v2168 = vrot.slane %v2166, 5
        %v2169 = vsel %vm1785, %v2164, %v2168
        %s2170 = scalar_lea.vmem [#allocation7], 64
        %v2171 = vld [vmem:[%s2170] sm:$0xf]
        %v2172 = vld [vmem:[%s2170 + $0x4] sm:$0xf]
        %v2173 = vld [vmem:[%s2170 + $0x8] sm:$0xf]
        %v2174 = vld [vmem:[%s2170 + $0xc] sm:$0xf]
        %v2175 = vld [vmem:[%s2170 + $0x10] sm:$0xf]
        %v2176 = vld [vmem:[%s2170 + $0x14] sm:$0xf]
        %v2177 = vld [vmem:[%s2170 + $0x18] sm:$0xf]
        %v2178 = vld [vmem:[%s2170 + $0x1c] sm:$0xf]
        %v2179 = vld [vmem:[%s2170 + $0x20] sm:$0xf]
        %v2180 = vld [vmem:[%s2170 + $0x24] sm:$0xf]
        %v2181 = vld [vmem:[%s2170 + $0x28] sm:$0xf]
        %v2182 = vld [vmem:[%s2170 + $0x2c] sm:$0xf]
        %v2183 = vld [vmem:[%s2170 + $0x30] sm:$0xf]
        %v2184 = vld [vmem:[%s2170 + $0x34] sm:$0xf]
        %v2185 = vld [vmem:[%s2170 + $0x38] sm:$0xf]
        %v2186 = vld [vmem:[%s2170 + $0x3c] sm:$0xf]
        %v2187 = vunpack.c.l.b16 %v1799
        %v2188 = vunpack.c.l.b16 %v1809
        %v2189 = vunpack.c.l.b16 %v1823
        %v2190 = vunpack.c.l.b16 %v1833
        %v2191 = vunpack.c.l.b16 %v1847
        %v2192 = vunpack.c.l.b16 %v1857
        %v2193 = vunpack.c.l.b16 %v1871
        %v2194 = vunpack.c.l.b16 %v1881
        %v2195 = vunpack.c.l.b16 %v1895
        %v2196 = vunpack.c.l.b16 %v1905
        %v2197 = vunpack.c.l.b16 %v1919
        %v2198 = vunpack.c.l.b16 %v1929
        %v2199 = vunpack.c.l.b16 %v1943
        %v2200 = vunpack.c.l.b16 %v1953
        %v2201 = vunpack.c.l.b16 %v1967
        %v2202 = vunpack.c.l.b16 %v1977
        %v2203 = vunpack.c.l.b16 %v1991
        %v2204 = vunpack.c.l.b16 %v2001
        %v2205 = vunpack.c.l.b16 %v2015
        %v2206 = vunpack.c.l.b16 %v2025
        %v2207 = vunpack.c.l.b16 %v2039
        %v2208 = vunpack.c.l.b16 %v2049
        %v2209 = vunpack.c.l.b16 %v2063
        %v2210 = vunpack.c.l.b16 %v2073
        %v2211 = vunpack.c.l.b16 %v2087
        %v2212 = vunpack.c.l.b16 %v2097
        %v2213 = vunpack.c.l.b16 %v2111
        %v2214 = vunpack.c.l.b16 %v2121
        %v2215 = vunpack.c.l.b16 %v2135
        %v2216 = vunpack.c.l.b16 %v2145
        %v2217 = vunpack.c.l.b16 %v2159
        %v2218 = vunpack.c.l.b16 %v2169
        %v2219 = vpack.c.b16 %v2188, %v2187
        %v2220 = vpack.c.b16 %v2190, %v2189
        %v2221 = vpack.c.b16 %v2192, %v2191
        %v2222 = vpack.c.b16 %v2194, %v2193
        %v2223 = vpack.c.b16 %v2196, %v2195
        %v2224 = vpack.c.b16 %v2198, %v2197
        %v2225 = vpack.c.b16 %v2200, %v2199
        %v2226 = vpack.c.b16 %v2202, %v2201
        %v2227 = vpack.c.b16 %v2204, %v2203
        %v2228 = vpack.c.b16 %v2206, %v2205
        %v2229 = vpack.c.b16 %v2208, %v2207
        %v2230 = vpack.c.b16 %v2210, %v2209
        %v2231 = vpack.c.b16 %v2212, %v2211
        %v2232 = vpack.c.b16 %v2214, %v2213
        %v2233 = vpack.c.b16 %v2216, %v2215
        %v2234 = vpack.c.b16 %v2218, %v2217
        %v2267 = vunpack.c.l.b16 %v2171
        %v2268 = vunpack.c.l.b16 %v2172
        %v2269 = vunpack.c.l.b16 %v2173
        %v2270 = vunpack.c.l.b16 %v2174
        %v2271 = vunpack.c.l.b16 %v2175
        %v2272 = vunpack.c.l.b16 %v2176
        %v2273 = vunpack.c.l.b16 %v2177
        %v2274 = vunpack.c.l.b16 %v2178
        %v2275 = vunpack.c.l.b16 %v2179
        %v2276 = vunpack.c.l.b16 %v2180
        %v2277 = vunpack.c.l.b16 %v2181
        %v2278 = vunpack.c.l.b16 %v2182
        %v2279 = vunpack.c.l.b16 %v2183
        %v2280 = vunpack.c.l.b16 %v2184
        %v2281 = vunpack.c.l.b16 %v2185
        %v2282 = vunpack.c.l.b16 %v2186
        %v2283 = vpack.c.b16 %v2268, %v2267
        %v2284 = vpack.c.b16 %v2270, %v2269
        %v2285 = vpack.c.b16 %v2272, %v2271
        %v2286 = vpack.c.b16 %v2274, %v2273
        %v2287 = vpack.c.b16 %v2276, %v2275
        %v2288 = vpack.c.b16 %v2278, %v2277
        %v2289 = vpack.c.b16 %v2280, %v2279
        %v2290 = vpack.c.b16 %v2282, %v2281
        %2299 = vmatpush.bf16.msra.mxu0 %v2290
        %2300 = vmatpush.bf16.msra.mxu0 %v2289
        %2301 = vmatpush.bf16.msra.mxu0 %v2288
        %2302 = vmatpush.bf16.msra.mxu0 %v2287
        %2303 = vmatpush.bf16.msra.mxu0 %v2286
        %2304 = vmatpush.bf16.msra.mxu0 %v2285
        %2305 = vmatpush.bf16.msra.mxu0 %v2284
        %2306 = vmatpush.bf16.msra.mxu0 %v2283
        %2307 = vmatmul.bf16.gmra.mxu0 %v2219
        %v2308 = vpop.f32.mrf.mxu0
        %v2309 = vadd.f32 0.0, %v2308
        %v2310 = vpop.f32.mrf.mxu0
        %v2311 = vadd.f32 0.0, %v2310
        %2312 = vmatmul.bf16.gmra.mxu0 %v2220
        %v2313 = vpop.f32.mrf.mxu0
        %v2314 = vadd.f32 0.0, %v2313
        %v2315 = vpop.f32.mrf.mxu0
        %v2316 = vadd.f32 0.0, %v2315
        %2317 = vmatmul.bf16.gmra.mxu0 %v2221
        %v2318 = vpop.f32.mrf.mxu0
        %v2319 = vadd.f32 0.0, %v2318
        %v2320 = vpop.f32.mrf.mxu0
        %v2321 = vadd.f32 0.0, %v2320
        %2322 = vmatmul.bf16.gmra.mxu0 %v2222
        %v2323 = vpop.f32.mrf.mxu0
        %v2324 = vadd.f32 0.0, %v2323
        %v2325 = vpop.f32.mrf.mxu0
        %v2326 = vadd.f32 0.0, %v2325
        %2327 = vmatmul.bf16.gmra.mxu0 %v2223
        %v2328 = vpop.f32.mrf.mxu0
        %v2329 = vadd.f32 0.0, %v2328
        %v2330 = vpop.f32.mrf.mxu0
        %v2331 = vadd.f32 0.0, %v2330
        %2332 = vmatmul.bf16.gmra.mxu0 %v2224
        %v2333 = vpop.f32.mrf.mxu0
        %v2334 = vadd.f32 0.0, %v2333
        %v2335 = vpop.f32.mrf.mxu0
        %v2336 = vadd.f32 0.0, %v2335
        %2337 = vmatmul.bf16.gmra.mxu0 %v2225
        %v2338 = vpop.f32.mrf.mxu0
        %v2339 = vadd.f32 0.0, %v2338
        %v2340 = vpop.f32.mrf.mxu0
        %v2341 = vadd.f32 0.0, %v2340
        %2342 = vmatmul.bf16.gmra.mxu0 %v2226
        %v2343 = vpop.f32.mrf.mxu0
        %v2344 = vadd.f32 0.0, %v2343
        %v2345 = vpop.f32.mrf.mxu0
        %v2346 = vadd.f32 0.0, %v2345
        %2347 = vmatmul.bf16.gmra.mxu0 %v2227
        %v2348 = vpop.f32.mrf.mxu0
        %v2349 = vadd.f32 0.0, %v2348
        %v2350 = vpop.f32.mrf.mxu0
        %v2351 = vadd.f32 0.0, %v2350
        %2352 = vmatmul.bf16.gmra.mxu0 %v2228
        %v2353 = vpop.f32.mrf.mxu0
        %v2354 = vadd.f32 0.0, %v2353
        %v2355 = vpop.f32.mrf.mxu0
        %v2356 = vadd.f32 0.0, %v2355
        %2357 = vmatmul.bf16.gmra.mxu0 %v2229
        %v2358 = vpop.f32.mrf.mxu0
        %v2359 = vadd.f32 0.0, %v2358
        %v2360 = vpop.f32.mrf.mxu0
        %v2361 = vadd.f32 0.0, %v2360
        %2362 = vmatmul.bf16.gmra.mxu0 %v2230
        %v2363 = vpop.f32.mrf.mxu0
        %v2364 = vadd.f32 0.0, %v2363
        %v2365 = vpop.f32.mrf.mxu0
        %v2366 = vadd.f32 0.0, %v2365
        %2367 = vmatmul.bf16.gmra.mxu0 %v2231
        %v2368 = vpop.f32.mrf.mxu0
        %v2369 = vadd.f32 0.0, %v2368
        %v2370 = vpop.f32.mrf.mxu0
        %v2371 = vadd.f32 0.0, %v2370
        %2372 = vmatmul.bf16.gmra.mxu0 %v2232
        %v2373 = vpop.f32.mrf.mxu0
        %v2374 = vadd.f32 0.0, %v2373
        %v2375 = vpop.f32.mrf.mxu0
        %v2376 = vadd.f32 0.0, %v2375
        %2377 = vmatmul.bf16.gmra.mxu0 %v2233
        %v2378 = vpop.f32.mrf.mxu0
        %v2379 = vadd.f32 0.0, %v2378
        %v2380 = vpop.f32.mrf.mxu0
        %v2381 = vadd.f32 0.0, %v2380
        %2382 = vmatmul.bf16.gmra.mxu0 %v2234
        %v2383 = vpop.f32.mrf.mxu0
        %v2384 = vadd.f32 0.0, %v2383
        %v2385 = vpop.f32.mrf.mxu0
        %v2386 = vadd.f32 0.0, %v2385
        %2387 = vdwg.mxu0
        %v2388 = vadd.f32 %v1733, %v2309
        %v2389 = vadd.f32 %v1734, %v2311
        %v2390 = vadd.f32 %v1735, %v2314
        %v2391 = vadd.f32 %v1736, %v2316
        %v2392 = vadd.f32 %v1737, %v2319
        %v2393 = vadd.f32 %v1738, %v2321
        %v2394 = vadd.f32 %v1739, %v2324
        %v2395 = vadd.f32 %v1740, %v2326
        %v2396 = vadd.f32 %v1741, %v2329
        %v2397 = vadd.f32 %v1742, %v2331
        %v2398 = vadd.f32 %v1743, %v2334
        %v2399 = vadd.f32 %v1744, %v2336
        %v2400 = vadd.f32 %v1745, %v2339
        %v2401 = vadd.f32 %v1746, %v2341
        %v2402 = vadd.f32 %v1747, %v2344
        %v2403 = vadd.f32 %v1748, %v2346
        %v2404 = vadd.f32 %v1749, %v2349
        %v2405 = vadd.f32 %v1750, %v2351
        %v2406 = vadd.f32 %v1751, %v2354
        %v2407 = vadd.f32 %v1752, %v2356
        %v2408 = vadd.f32 %v1753, %v2359
        %v2409 = vadd.f32 %v1754, %v2361
        %v2410 = vadd.f32 %v1755, %v2364
        %v2411 = vadd.f32 %v1756, %v2366
        %v2412 = vadd.f32 %v1757, %v2369
        %v2413 = vadd.f32 %v1758, %v2371
        %v2414 = vadd.f32 %v1759, %v2374
        %v2415 = vadd.f32 %v1760, %v2376
        %v2416 = vadd.f32 %v1761, %v2379
        %v2417 = vadd.f32 %v1762, %v2381
        %v2418 = vadd.f32 %v1763, %v2384
        %v2419 = vadd.f32 %v1764, %v2386
        %v2421 = vshrl.u32 %v1160, 16
        %v2423 = vrot.slane %v2421, 4
        %v2424 = vshll.u32 %v1160, 16
        %v2426 = vrot.slane %v2424, 5
        %v2427 = vor.u32 %v2423, %v2426
        %v2428 = vrot.slane %v2427, 4
        %v2430 = vshll.u32 %v1161, 16
        %v2432 = vrot.slane %v2430, 5
        %v2433 = vsel %vm1785, %v2428, %v2432
        %v2434 = vshrl.u32 %v1161, 16
        %v2436 = vrot.slane %v2434, 4
        %v2437 = vor.u32 %v2436, %v2432
        %v2438 = vrot.slane %v2437, 4
        %v2440 = vshll.u32 %v1781, 16
        %v2442 = vrot.slane %v2440, 5
        %v2443 = vsel %vm1785, %v2438, %v2442
        %s2444 = scalar_lea.vmem [#allocation7], 256
        %v2445 = vld [vmem:[%s2444] sm:$0xf]
        %v2446 = vld [vmem:[%s2444 + $0x4] sm:$0xf]
        %v2447 = vld [vmem:[%s2444 + $0x8] sm:$0xf]
        %v2448 = vld [vmem:[%s2444 + $0xc] sm:$0xf]
        %v2449 = vld [vmem:[%s2444 + $0x10] sm:$0xf]
        %v2450 = vld [vmem:[%s2444 + $0x14] sm:$0xf]
        %v2451 = vld [vmem:[%s2444 + $0x18] sm:$0xf]
        %v2452 = vld [vmem:[%s2444 + $0x1c] sm:$0xf]
        %v2453 = vld [vmem:[%s2444 + $0x20] sm:$0xf]
        %v2454 = vld [vmem:[%s2444 + $0x24] sm:$0xf]
        %v2455 = vld [vmem:[%s2444 + $0x28] sm:$0xf]
        %v2456 = vld [vmem:[%s2444 + $0x2c] sm:$0xf]
        %v2457 = vld [vmem:[%s2444 + $0x30] sm:$0xf]
        %v2458 = vld [vmem:[%s2444 + $0x34] sm:$0xf]
        %v2459 = vld [vmem:[%s2444 + $0x38] sm:$0xf]
        %v2460 = vld [vmem:[%s2444 + $0x3c] sm:$0xf]
        %v2461 = vunpack.c.l.b16 %v2433
        %v2462 = vunpack.c.l.b16 %v2443
        %v2463 = vpack.c.b16 %v2462, %v2461
        %v2481 = vunpack.c.l.b16 %v2445
        %v2482 = vunpack.c.l.b16 %v2446
        %v2483 = vunpack.c.l.b16 %v2447
        %v2484 = vunpack.c.l.b16 %v2448
        %v2485 = vunpack.c.l.b16 %v2449
        %v2486 = vunpack.c.l.b16 %v2450
        %v2487 = vunpack.c.l.b16 %v2451
        %v2488 = vunpack.c.l.b16 %v2452
        %v2489 = vunpack.c.l.b16 %v2453
        %v2490 = vunpack.c.l.b16 %v2454
        %v2491 = vunpack.c.l.b16 %v2455
        %v2492 = vunpack.c.l.b16 %v2456
        %v2493 = vunpack.c.l.b16 %v2457
        %v2494 = vunpack.c.l.b16 %v2458
        %v2495 = vunpack.c.l.b16 %v2459
        %v2496 = vunpack.c.l.b16 %v2460
        %v2497 = vpack.c.b16 %v2482, %v2481
        %v2498 = vpack.c.b16 %v2484, %v2483
        %v2499 = vpack.c.b16 %v2486, %v2485
        %v2500 = vpack.c.b16 %v2488, %v2487
        %v2501 = vpack.c.b16 %v2490, %v2489
        %v2502 = vpack.c.b16 %v2492, %v2491
        %v2503 = vpack.c.b16 %v2494, %v2493
        %v2504 = vpack.c.b16 %v2496, %v2495
        %2513 = vmatpush.bf16.msra.mxu0 %v2504
        %2514 = vmatpush.bf16.msra.mxu0 %v2503
        %2515 = vmatpush.bf16.msra.mxu0 %v2502
        %2516 = vmatpush.bf16.msra.mxu0 %v2501
        %2517 = vmatpush.bf16.msra.mxu0 %v2500
        %2518 = vmatpush.bf16.msra.mxu0 %v2499
        %2519 = vmatpush.bf16.msra.mxu0 %v2498
        %2520 = vmatpush.bf16.msra.mxu0 %v2497
        %2521 = vmatmul.bf16.gmra.mxu0 %v2220
        %v2522 = vpop.f32.mrf.mxu0
        %v2523 = vadd.f32 0.0, %v2522
        %v2524 = vpop.f32.mrf.mxu0
        %v2525 = vadd.f32 0.0, %v2524
        %2526 = vmatmul.bf16.gmra.mxu0 %v2221
        %v2527 = vpop.f32.mrf.mxu0
        %v2528 = vadd.f32 0.0, %v2527
        %v2529 = vpop.f32.mrf.mxu0
        %v2530 = vadd.f32 0.0, %v2529
        %2531 = vmatmul.bf16.gmra.mxu0 %v2222
        %v2532 = vpop.f32.mrf.mxu0
        %v2533 = vadd.f32 0.0, %v2532
        %v2534 = vpop.f32.mrf.mxu0
        %v2535 = vadd.f32 0.0, %v2534
        %2536 = vmatmul.bf16.gmra.mxu0 %v2223
        %v2537 = vpop.f32.mrf.mxu0
        %v2538 = vadd.f32 0.0, %v2537
        %v2539 = vpop.f32.mrf.mxu0
        %v2540 = vadd.f32 0.0, %v2539
        %2541 = vmatmul.bf16.gmra.mxu0 %v2224
        %v2542 = vpop.f32.mrf.mxu0
        %v2543 = vadd.f32 0.0, %v2542
        %v2544 = vpop.f32.mrf.mxu0
        %v2545 = vadd.f32 0.0, %v2544
        %2546 = vmatmul.bf16.gmra.mxu0 %v2225
        %v2547 = vpop.f32.mrf.mxu0
        %v2548 = vadd.f32 0.0, %v2547
        %v2549 = vpop.f32.mrf.mxu0
        %v2550 = vadd.f32 0.0, %v2549
        %2551 = vmatmul.bf16.gmra.mxu0 %v2226
        %v2552 = vpop.f32.mrf.mxu0
        %v2553 = vadd.f32 0.0, %v2552
        %v2554 = vpop.f32.mrf.mxu0
        %v2555 = vadd.f32 0.0, %v2554
        %2556 = vmatmul.bf16.gmra.mxu0 %v2227
        %v2557 = vpop.f32.mrf.mxu0
        %v2558 = vadd.f32 0.0, %v2557
        %v2559 = vpop.f32.mrf.mxu0
        %v2560 = vadd.f32 0.0, %v2559
        %2561 = vmatmul.bf16.gmra.mxu0 %v2228
        %v2562 = vpop.f32.mrf.mxu0
        %v2563 = vadd.f32 0.0, %v2562
        %v2564 = vpop.f32.mrf.mxu0
        %v2565 = vadd.f32 0.0, %v2564
        %2566 = vmatmul.bf16.gmra.mxu0 %v2229
        %v2567 = vpop.f32.mrf.mxu0
        %v2568 = vadd.f32 0.0, %v2567
        %v2569 = vpop.f32.mrf.mxu0
        %v2570 = vadd.f32 0.0, %v2569
        %2571 = vmatmul.bf16.gmra.mxu0 %v2230
        %v2572 = vpop.f32.mrf.mxu0
        %v2573 = vadd.f32 0.0, %v2572
        %v2574 = vpop.f32.mrf.mxu0
        %v2575 = vadd.f32 0.0, %v2574
        %2576 = vmatmul.bf16.gmra.mxu0 %v2231
        %v2577 = vpop.f32.mrf.mxu0
        %v2578 = vadd.f32 0.0, %v2577
        %v2579 = vpop.f32.mrf.mxu0
        %v2580 = vadd.f32 0.0, %v2579
        %2581 = vmatmul.bf16.gmra.mxu0 %v2232
        %v2582 = vpop.f32.mrf.mxu0
        %v2583 = vadd.f32 0.0, %v2582
        %v2584 = vpop.f32.mrf.mxu0
        %v2585 = vadd.f32 0.0, %v2584
        %2586 = vmatmul.bf16.gmra.mxu0 %v2233
        %v2587 = vpop.f32.mrf.mxu0
        %v2588 = vadd.f32 0.0, %v2587
        %v2589 = vpop.f32.mrf.mxu0
        %v2590 = vadd.f32 0.0, %v2589
        %2591 = vmatmul.bf16.gmra.mxu0 %v2234
        %v2592 = vpop.f32.mrf.mxu0
        %v2593 = vadd.f32 0.0, %v2592
        %v2594 = vpop.f32.mrf.mxu0
        %v2595 = vadd.f32 0.0, %v2594
        %2596 = vmatmul.bf16.gmra.mxu0 %v2463
        %v2597 = vpop.f32.mrf.mxu0
        %v2598 = vadd.f32 0.0, %v2597
        %v2599 = vpop.f32.mrf.mxu0
        %v2600 = vadd.f32 0.0, %v2599
        %2601 = vdwg.mxu0
        %v2602 = vadd.f32 %v2388, %v2523
        %v2603 = vadd.f32 %v2389, %v2525
        %v2604 = vadd.f32 %v2390, %v2528
        %v2605 = vadd.f32 %v2391, %v2530
        %v2606 = vadd.f32 %v2392, %v2533
        %v2607 = vadd.f32 %v2393, %v2535
        %v2608 = vadd.f32 %v2394, %v2538
        %v2609 = vadd.f32 %v2395, %v2540
        %v2610 = vadd.f32 %v2396, %v2543
        %v2611 = vadd.f32 %v2397, %v2545
        %v2612 = vadd.f32 %v2398, %v2548
        %v2613 = vadd.f32 %v2399, %v2550
        %v2614 = vadd.f32 %v2400, %v2553
        %v2615 = vadd.f32 %v2401, %v2555
        %v2616 = vadd.f32 %v2402, %v2558
        %v2617 = vadd.f32 %v2403, %v2560
        %v2618 = vadd.f32 %v2404, %v2563
        %v2619 = vadd.f32 %v2405, %v2565
        %v2620 = vadd.f32 %v2406, %v2568
        %v2621 = vadd.f32 %v2407, %v2570
        %v2622 = vadd.f32 %v2408, %v2573
        %v2623 = vadd.f32 %v2409, %v2575
        %v2624 = vadd.f32 %v2410, %v2578
        %v2625 = vadd.f32 %v2411, %v2580
        %v2626 = vadd.f32 %v2412, %v2583
        %v2627 = vadd.f32 %v2413, %v2585
        %v2628 = vadd.f32 %v2414, %v2588
        %v2629 = vadd.f32 %v2415, %v2590
        %v2630 = vadd.f32 %v2416, %v2593
        %v2631 = vadd.f32 %v2417, %v2595
        %v2632 = vadd.f32 %v2418, %v2598
        %v2633 = vadd.f32 %v2419, %v2600
        %v2635 = vshrl.u32 %v1162, 16
        %v2637 = vrot.slane %v2635, 4
        %v2638 = vshll.u32 %v1162, 16
        %v2640 = vrot.slane %v2638, 5
        %v2641 = vor.u32 %v2637, %v2640
        %v2642 = vrot.slane %v2641, 4
        %v2644 = vshll.u32 %v1163, 16
        %v2646 = vrot.slane %v2644, 5
        %v2647 = vsel %vm1785, %v2642, %v2646
        %v2648 = vshrl.u32 %v1163, 16
        %v2650 = vrot.slane %v2648, 4
        %v2651 = vor.u32 %v2650, %v2646
        %v2652 = vrot.slane %v2651, 4
        %v2654 = vshll.u32 %v1782, 16
        %v2656 = vrot.slane %v2654, 5
        %v2657 = vsel %vm1785, %v2652, %v2656
        %s2658 = scalar_lea.vmem [#allocation7], 448
        %v2659 = vld [vmem:[%s2658] sm:$0xf]
        %v2660 = vld [vmem:[%s2658 + $0x4] sm:$0xf]
        %v2661 = vld [vmem:[%s2658 + $0x8] sm:$0xf]
        %v2662 = vld [vmem:[%s2658 + $0xc] sm:$0xf]
        %v2663 = vld [vmem:[%s2658 + $0x10] sm:$0xf]
        %v2664 = vld [vmem:[%s2658 + $0x14] sm:$0xf]
        %v2665 = vld [vmem:[%s2658 + $0x18] sm:$0xf]
        %v2666 = vld [vmem:[%s2658 + $0x1c] sm:$0xf]
        %v2667 = vld [vmem:[%s2658 + $0x20] sm:$0xf]
        %v2668 = vld [vmem:[%s2658 + $0x24] sm:$0xf]
        %v2669 = vld [vmem:[%s2658 + $0x28] sm:$0xf]
        %v2670 = vld [vmem:[%s2658 + $0x2c] sm:$0xf]
        %v2671 = vld [vmem:[%s2658 + $0x30] sm:$0xf]
        %v2672 = vld [vmem:[%s2658 + $0x34] sm:$0xf]
        %v2673 = vld [vmem:[%s2658 + $0x38] sm:$0xf]
        %v2674 = vld [vmem:[%s2658 + $0x3c] sm:$0xf]
        %v2675 = vunpack.c.l.b16 %v2647
        %v2676 = vunpack.c.l.b16 %v2657
        %v2677 = vpack.c.b16 %v2676, %v2675
        %v2695 = vunpack.c.l.b16 %v2659
        %v2696 = vunpack.c.l.b16 %v2660
        %v2697 = vunpack.c.l.b16 %v2661
        %v2698 = vunpack.c.l.b16 %v2662
        %v2699 = vunpack.c.l.b16 %v2663
        %v2700 = vunpack.c.l.b16 %v2664
        %v2701 = vunpack.c.l.b16 %v2665
        %v2702 = vunpack.c.l.b16 %v2666
        %v2703 = vunpack.c.l.b16 %v2667
        %v2704 = vunpack.c.l.b16 %v2668
        %v2705 = vunpack.c.l.b16 %v2669
        %v2706 = vunpack.c.l.b16 %v2670
        %v2707 = vunpack.c.l.b16 %v2671
        %v2708 = vunpack.c.l.b16 %v2672
        %v2709 = vunpack.c.l.b16 %v2673
        %v2710 = vunpack.c.l.b16 %v2674
        %v2711 = vpack.c.b16 %v2696, %v2695
        %v2712 = vpack.c.b16 %v2698, %v2697
        %v2713 = vpack.c.b16 %v2700, %v2699
        %v2714 = vpack.c.b16 %v2702, %v2701
        %v2715 = vpack.c.b16 %v2704, %v2703
        %v2716 = vpack.c.b16 %v2706, %v2705
        %v2717 = vpack.c.b16 %v2708, %v2707
        %v2718 = vpack.c.b16 %v2710, %v2709
        %2727 = vmatpush.bf16.msra.mxu0 %v2718
        %2728 = vmatpush.bf16.msra.mxu0 %v2717
        %2729 = vmatpush.bf16.msra.mxu0 %v2716
        %2730 = vmatpush.bf16.msra.mxu0 %v2715
        %2731 = vmatpush.bf16.msra.mxu0 %v2714
        %2732 = vmatpush.bf16.msra.mxu0 %v2713
        %2733 = vmatpush.bf16.msra.mxu0 %v2712
        %2734 = vmatpush.bf16.msra.mxu0 %v2711
        %2735 = vmatmul.bf16.gmra.mxu0 %v2221
        %v2736 = vpop.f32.mrf.mxu0
        %v2737 = vadd.f32 0.0, %v2736
        %v2738 = vpop.f32.mrf.mxu0
        %v2739 = vadd.f32 0.0, %v2738
        %2740 = vmatmul.bf16.gmra.mxu0 %v2222
        %v2741 = vpop.f32.mrf.mxu0
        %v2742 = vadd.f32 0.0, %v2741
        %v2743 = vpop.f32.mrf.mxu0
        %v2744 = vadd.f32 0.0, %v2743
        %2745 = vmatmul.bf16.gmra.mxu0 %v2223
        %v2746 = vpop.f32.mrf.mxu0
        %v2747 = vadd.f32 0.0, %v2746
        %v2748 = vpop.f32.mrf.mxu0
        %v2749 = vadd.f32 0.0, %v2748
        %2750 = vmatmul.bf16.gmra.mxu0 %v2224
        %v2751 = vpop.f32.mrf.mxu0
        %v2752 = vadd.f32 0.0, %v2751
        %v2753 = vpop.f32.mrf.mxu0
        %v2754 = vadd.f32 0.0, %v2753
        %2755 = vmatmul.bf16.gmra.mxu0 %v2225
        %v2756 = vpop.f32.mrf.mxu0
        %v2757 = vadd.f32 0.0, %v2756
        %v2758 = vpop.f32.mrf.mxu0
        %v2759 = vadd.f32 0.0, %v2758
        %2760 = vmatmul.bf16.gmra.mxu0 %v2226
        %v2761 = vpop.f32.mrf.mxu0
        %v2762 = vadd.f32 0.0, %v2761
        %v2763 = vpop.f32.mrf.mxu0
        %v2764 = vadd.f32 0.0, %v2763
        %2765 = vmatmul.bf16.gmra.mxu0 %v2227
        %v2766 = vpop.f32.mrf.mxu0
        %v2767 = vadd.f32 0.0, %v2766
        %v2768 = vpop.f32.mrf.mxu0
        %v2769 = vadd.f32 0.0, %v2768
        %2770 = vmatmul.bf16.gmra.mxu0 %v2228
        %v2771 = vpop.f32.mrf.mxu0
        %v2772 = vadd.f32 0.0, %v2771
        %v2773 = vpop.f32.mrf.mxu0
        %v2774 = vadd.f32 0.0, %v2773
        %2775 = vmatmul.bf16.gmra.mxu0 %v2229
        %v2776 = vpop.f32.mrf.mxu0
        %v2777 = vadd.f32 0.0, %v2776
        %v2778 = vpop.f32.mrf.mxu0
        %v2779 = vadd.f32 0.0, %v2778
        %2780 = vmatmul.bf16.gmra.mxu0 %v2230
        %v2781 = vpop.f32.mrf.mxu0
        %v2782 = vadd.f32 0.0, %v2781
        %v2783 = vpop.f32.mrf.mxu0
        %v2784 = vadd.f32 0.0, %v2783
        %2785 = vmatmul.bf16.gmra.mxu0 %v2231
        %v2786 = vpop.f32.mrf.mxu0
        %v2787 = vadd.f32 0.0, %v2786
        %v2788 = vpop.f32.mrf.mxu0
        %v2789 = vadd.f32 0.0, %v2788
        %2790 = vmatmul.bf16.gmra.mxu0 %v2232
        %v2791 = vpop.f32.mrf.mxu0
        %v2792 = vadd.f32 0.0, %v2791
        %v2793 = vpop.f32.mrf.mxu0
        %v2794 = vadd.f32 0.0, %v2793
        %2795 = vmatmul.bf16.gmra.mxu0 %v2233
        %v2796 = vpop.f32.mrf.mxu0
        %v2797 = vadd.f32 0.0, %v2796
        %v2798 = vpop.f32.mrf.mxu0
        %v2799 = vadd.f32 0.0, %v2798
        %2800 = vmatmul.bf16.gmra.mxu0 %v2234
        %v2801 = vpop.f32.mrf.mxu0
        %v2802 = vadd.f32 0.0, %v2801
        %v2803 = vpop.f32.mrf.mxu0
        %v2804 = vadd.f32 0.0, %v2803
        %2805 = vmatmul.bf16.gmra.mxu0 %v2463
        %v2806 = vpop.f32.mrf.mxu0
        %v2807 = vadd.f32 0.0, %v2806
        %v2808 = vpop.f32.mrf.mxu0
        %v2809 = vadd.f32 0.0, %v2808
        %2810 = vmatmul.bf16.gmra.mxu0 %v2677
        %v2811 = vpop.f32.mrf.mxu0
        %v2812 = vadd.f32 0.0, %v2811
        %v2813 = vpop.f32.mrf.mxu0
        %v2814 = vadd.f32 0.0, %v2813
        %2815 = vdwg.mxu0
        %v2816 = vadd.f32 %v2602, %v2737
        %v2817 = vadd.f32 %v2603, %v2739
        %v2818 = vadd.f32 %v2604, %v2742
        %v2819 = vadd.f32 %v2605, %v2744
        %v2820 = vadd.f32 %v2606, %v2747
        %v2821 = vadd.f32 %v2607, %v2749
        %v2822 = vadd.f32 %v2608, %v2752
        %v2823 = vadd.f32 %v2609, %v2754
        %v2824 = vadd.f32 %v2610, %v2757
        %v2825 = vadd.f32 %v2611, %v2759
        %v2826 = vadd.f32 %v2612, %v2762
        %v2827 = vadd.f32 %v2613, %v2764
        %v2828 = vadd.f32 %v2614, %v2767
        %v2829 = vadd.f32 %v2615, %v2769
        %v2830 = vadd.f32 %v2616, %v2772
        %v2831 = vadd.f32 %v2617, %v2774
        %v2832 = vadd.f32 %v2618, %v2777
        %v2833 = vadd.f32 %v2619, %v2779
        %v2834 = vadd.f32 %v2620, %v2782
        %v2835 = vadd.f32 %v2621, %v2784
        %v2836 = vadd.f32 %v2622, %v2787
        %v2837 = vadd.f32 %v2623, %v2789
        %v2838 = vadd.f32 %v2624, %v2792
        %v2839 = vadd.f32 %v2625, %v2794
        %v2840 = vadd.f32 %v2626, %v2797
        %v2841 = vadd.f32 %v2627, %v2799
        %v2842 = vadd.f32 %v2628, %v2802
        %v2843 = vadd.f32 %v2629, %v2804
        %v2844 = vadd.f32 %v2630, %v2807
        %v2845 = vadd.f32 %v2631, %v2809
        %v2846 = vadd.f32 %v2632, %v2812
        %v2847 = vadd.f32 %v2633, %v2814
        %vm2864 = vcmask 1042432
        %vm2865 = vcmask 1046532
        %vm2866 = vmor %vm2864, %vm2865
        %v2867 = vrot.slane %v1128, 5
        %v2868 = vrot.slane %v2867, 4
        %v2869 = vrot.slane %v1129, 5
        %v2870 = vsel %vm2866, %v2868, %v2869
        %v2871 = vrot.slane %v2869, 4
        %v2872 = vrot.slane %v1765, 5
        %v2873 = vsel %vm2866, %v2871, %v2872
        %v2874 = vrot.slane %v1130, 5
        %v2875 = vrot.slane %v2874, 4
        %v2876 = vrot.slane %v1131, 5
        %v2877 = vsel %vm2866, %v2875, %v2876
        %v2878 = vrot.slane %v2876, 4
        %v2879 = vrot.slane %v1766, 5
        %v2880 = vsel %vm2866, %v2878, %v2879
        %v2881 = vrot.slane %v1132, 5
        %v2882 = vrot.slane %v2881, 4
        %v2883 = vrot.slane %v1133, 5
        %v2884 = vsel %vm2866, %v2882, %v2883
        %v2885 = vrot.slane %v2883, 4
        %v2886 = vrot.slane %v1767, 5
        %v2887 = vsel %vm2866, %v2885, %v2886
        %v2888 = vrot.slane %v1134, 5
        %v2889 = vrot.slane %v2888, 4
        %v2890 = vrot.slane %v1135, 5
        %v2891 = vsel %vm2866, %v2889, %v2890
        %v2892 = vrot.slane %v2890, 4
        %v2893 = vrot.slane %v1768, 5
        %v2894 = vsel %vm2866, %v2892, %v2893
        %v2895 = vrot.slane %v1136, 5
        %v2896 = vrot.slane %v2895, 4
        %v2897 = vrot.slane %v1137, 5
        %v2898 = vsel %vm2866, %v2896, %v2897
        %v2899 = vrot.slane %v2897, 4
        %v2900 = vrot.slane %v1769, 5
        %v2901 = vsel %vm2866, %v2899, %v2900
        %v2902 = vrot.slane %v1138, 5
        %v2903 = vrot.slane %v2902, 4
        %v2904 = vrot.slane %v1139, 5
        %v2905 = vsel %vm2866, %v2903, %v2904
        %v2906 = vrot.slane %v2904, 4
        %v2907 = vrot.slane %v1770, 5
        %v2908 = vsel %vm2866, %v2906, %v2907
        %v2909 = vrot.slane %v1140, 5
        %v2910 = vrot.slane %v2909, 4
        %v2911 = vrot.slane %v1141, 5
        %v2912 = vsel %vm2866, %v2910, %v2911
        %v2913 = vrot.slane %v2911, 4
        %v2914 = vrot.slane %v1771, 5
        %v2915 = vsel %vm2866, %v2913, %v2914
        %v2916 = vrot.slane %v1142, 5
        %v2917 = vrot.slane %v2916, 4
        %v2918 = vrot.slane %v1143, 5
        %v2919 = vsel %vm2866, %v2917, %v2918
        %v2920 = vrot.slane %v2918, 4
        %v2921 = vrot.slane %v1772, 5
        %v2922 = vsel %vm2866, %v2920, %v2921
        %v2923 = vrot.slane %v1144, 5
        %v2924 = vrot.slane %v2923, 4
        %v2925 = vrot.slane %v1145, 5
        %v2926 = vsel %vm2866, %v2924, %v2925
        %v2927 = vrot.slane %v2925, 4
        %v2928 = vrot.slane %v1773, 5
        %v2929 = vsel %vm2866, %v2927, %v2928
        %v2930 = vrot.slane %v1146, 5
        %v2931 = vrot.slane %v2930, 4
        %v2932 = vrot.slane %v1147, 5
        %v2933 = vsel %vm2866, %v2931, %v2932
        %v2934 = vrot.slane %v2932, 4
        %v2935 = vrot.slane %v1774, 5
        %v2936 = vsel %vm2866, %v2934, %v2935
        %v2937 = vrot.slane %v1148, 5
        %v2938 = vrot.slane %v2937, 4
        %v2939 = vrot.slane %v1149, 5
        %v2940 = vsel %vm2866, %v2938, %v2939
        %v2941 = vrot.slane %v2939, 4
        %v2942 = vrot.slane %v1775, 5
        %v2943 = vsel %vm2866, %v2941, %v2942
        %v2944 = vrot.slane %v1150, 5
        %v2945 = vrot.slane %v2944, 4
        %v2946 = vrot.slane %v1151, 5
        %v2947 = vsel %vm2866, %v2945, %v2946
        %v2948 = vrot.slane %v2946, 4
        %v2949 = vrot.slane %v1776, 5
        %v2950 = vsel %vm2866, %v2948, %v2949
        %v2951 = vrot.slane %v1152, 5
        %v2952 = vrot.slane %v2951, 4
        %v2953 = vrot.slane %v1153, 5
        %v2954 = vsel %vm2866, %v2952, %v2953
        %v2955 = vrot.slane %v2953, 4
        %v2956 = vrot.slane %v1777, 5
        %v2957 = vsel %vm2866, %v2955, %v2956
        %v2958 = vrot.slane %v1154, 5
        %v2959 = vrot.slane %v2958, 4
        %v2960 = vrot.slane %v1155, 5
        %v2961 = vsel %vm2866, %v2959, %v2960
        %v2962 = vrot.slane %v2960, 4
        %v2963 = vrot.slane %v1778, 5
        %v2964 = vsel %vm2866, %v2962, %v2963
        %v2965 = vrot.slane %v1156, 5
        %v2966 = vrot.slane %v2965, 4
        %v2967 = vrot.slane %v1157, 5
        %v2968 = vsel %vm2866, %v2966, %v2967
        %v2969 = vrot.slane %v2967, 4
        %v2970 = vrot.slane %v1779, 5
        %v2971 = vsel %vm2866, %v2969, %v2970
        %v2972 = vrot.slane %v1158, 5
        %v2973 = vrot.slane %v2972, 4
        %v2974 = vrot.slane %v1159, 5
        %v2975 = vsel %vm2866, %v2973, %v2974
        %v2976 = vrot.slane %v2974, 4
        %v2977 = vrot.slane %v1780, 5
        %v2978 = vsel %vm2866, %v2976, %v2977
        %s2979 = scalar_lea.vmem [#allocation7], 128
        %v2980 = vld [vmem:[%s2979] sm:$0xf]
        %v2981 = vld [vmem:[%s2979 + $0x4] sm:$0xf]
        %v2982 = vld [vmem:[%s2979 + $0x8] sm:$0xf]
        %v2983 = vld [vmem:[%s2979 + $0xc] sm:$0xf]
        %v2984 = vld [vmem:[%s2979 + $0x10] sm:$0xf]
        %v2985 = vld [vmem:[%s2979 + $0x14] sm:$0xf]
        %v2986 = vld [vmem:[%s2979 + $0x18] sm:$0xf]
        %v2987 = vld [vmem:[%s2979 + $0x1c] sm:$0xf]
        %v2988 = vld [vmem:[%s2979 + $0x20] sm:$0xf]
        %v2989 = vld [vmem:[%s2979 + $0x24] sm:$0xf]
        %v2990 = vld [vmem:[%s2979 + $0x28] sm:$0xf]
        %v2991 = vld [vmem:[%s2979 + $0x2c] sm:$0xf]
        %v2992 = vld [vmem:[%s2979 + $0x30] sm:$0xf]
        %v2993 = vld [vmem:[%s2979 + $0x34] sm:$0xf]
        %v2994 = vld [vmem:[%s2979 + $0x38] sm:$0xf]
        %v2995 = vld [vmem:[%s2979 + $0x3c] sm:$0xf]
        %v2996 = vunpack.c.l.b16 %v2870
        %v2997 = vunpack.c.l.b16 %v2873
        %v2998 = vunpack.c.l.b16 %v2877
        %v2999 = vunpack.c.l.b16 %v2880
        %v3000 = vunpack.c.l.b16 %v2884
        %v3001 = vunpack.c.l.b16 %v2887
        %v3002 = vunpack.c.l.b16 %v2891
        %v3003 = vunpack.c.l.b16 %v2894
        %v3004 = vunpack.c.l.b16 %v2898
        %v3005 = vunpack.c.l.b16 %v2901
        %v3006 = vunpack.c.l.b16 %v2905
        %v3007 = vunpack.c.l.b16 %v2908
        %v3008 = vunpack.c.l.b16 %v2912
        %v3009 = vunpack.c.l.b16 %v2915
        %v3010 = vunpack.c.l.b16 %v2919
        %v3011 = vunpack.c.l.b16 %v2922
        %v3012 = vunpack.c.l.b16 %v2926
        %v3013 = vunpack.c.l.b16 %v2929
        %v3014 = vunpack.c.l.b16 %v2933
        %v3015 = vunpack.c.l.b16 %v2936
        %v3016 = vunpack.c.l.b16 %v2940
        %v3017 = vunpack.c.l.b16 %v2943
        %v3018 = vunpack.c.l.b16 %v2947
        %v3019 = vunpack.c.l.b16 %v2950
        %v3020 = vunpack.c.l.b16 %v2954
        %v3021 = vunpack.c.l.b16 %v2957
        %v3022 = vunpack.c.l.b16 %v2961
        %v3023 = vunpack.c.l.b16 %v2964
        %v3024 = vunpack.c.l.b16 %v2968
        %v3025 = vunpack.c.l.b16 %v2971
        %v3026 = vunpack.c.l.b16 %v2975
        %v3027 = vunpack.c.l.b16 %v2978
        %v3028 = vpack.c.b16 %v2997, %v2996
        %v3029 = vpack.c.b16 %v2999, %v2998
        %v3030 = vpack.c.b16 %v3001, %v3000
        %v3031 = vpack.c.b16 %v3003, %v3002
        %v3032 = vpack.c.b16 %v3005, %v3004
        %v3033 = vpack.c.b16 %v3007, %v3006
        %v3034 = vpack.c.b16 %v3009, %v3008
        %v3035 = vpack.c.b16 %v3011, %v3010
        %v3036 = vpack.c.b16 %v3013, %v3012
        %v3037 = vpack.c.b16 %v3015, %v3014
        %v3038 = vpack.c.b16 %v3017, %v3016
        %v3039 = vpack.c.b16 %v3019, %v3018
        %v3040 = vpack.c.b16 %v3021, %v3020
        %v3041 = vpack.c.b16 %v3023, %v3022
        %v3042 = vpack.c.b16 %v3025, %v3024
        %v3043 = vpack.c.b16 %v3027, %v3026
        %v3076 = vunpack.c.l.b16 %v2980
        %v3077 = vunpack.c.l.b16 %v2981
        %v3078 = vunpack.c.l.b16 %v2982
        %v3079 = vunpack.c.l.b16 %v2983
        %v3080 = vunpack.c.l.b16 %v2984
        %v3081 = vunpack.c.l.b16 %v2985
        %v3082 = vunpack.c.l.b16 %v2986
        %v3083 = vunpack.c.l.b16 %v2987
        %v3084 = vunpack.c.l.b16 %v2988
        %v3085 = vunpack.c.l.b16 %v2989
        %v3086 = vunpack.c.l.b16 %v2990
        %v3087 = vunpack.c.l.b16 %v2991
        %v3088 = vunpack.c.l.b16 %v2992
        %v3089 = vunpack.c.l.b16 %v2993
        %v3090 = vunpack.c.l.b16 %v2994
        %v3091 = vunpack.c.l.b16 %v2995
        %v3092 = vpack.c.b16 %v3077, %v3076
        %v3093 = vpack.c.b16 %v3079, %v3078
        %v3094 = vpack.c.b16 %v3081, %v3080
        %v3095 = vpack.c.b16 %v3083, %v3082
        %v3096 = vpack.c.b16 %v3085, %v3084
        %v3097 = vpack.c.b16 %v3087, %v3086
        %v3098 = vpack.c.b16 %v3089, %v3088
        %v3099 = vpack.c.b16 %v3091, %v3090
        %3108 = vmatpush.bf16.msra.mxu0 %v3099
        %3109 = vmatpush.bf16.msra.mxu0 %v3098
        %3110 = vmatpush.bf16.msra.mxu0 %v3097
        %3111 = vmatpush.bf16.msra.mxu0 %v3096
        %3112 = vmatpush.bf16.msra.mxu0 %v3095
        %3113 = vmatpush.bf16.msra.mxu0 %v3094
        %3114 = vmatpush.bf16.msra.mxu0 %v3093
        %3115 = vmatpush.bf16.msra.mxu0 %v3092
        %3116 = vmatmul.bf16.gmra.mxu0 %v3028
        %v3117 = vpop.f32.mrf.mxu0
        %v3118 = vadd.f32 0.0, %v3117
        %v3119 = vpop.f32.mrf.mxu0
        %v3120 = vadd.f32 0.0, %v3119
        %3121 = vmatmul.bf16.gmra.mxu0 %v3029
        %v3122 = vpop.f32.mrf.mxu0
        %v3123 = vadd.f32 0.0, %v3122
        %v3124 = vpop.f32.mrf.mxu0
        %v3125 = vadd.f32 0.0, %v3124
        %3126 = vmatmul.bf16.gmra.mxu0 %v3030
        %v3127 = vpop.f32.mrf.mxu0
        %v3128 = vadd.f32 0.0, %v3127
        %v3129 = vpop.f32.mrf.mxu0
        %v3130 = vadd.f32 0.0, %v3129
        %3131 = vmatmul.bf16.gmra.mxu0 %v3031
        %v3132 = vpop.f32.mrf.mxu0
        %v3133 = vadd.f32 0.0, %v3132
        %v3134 = vpop.f32.mrf.mxu0
        %v3135 = vadd.f32 0.0, %v3134
        %3136 = vmatmul.bf16.gmra.mxu0 %v3032
        %v3137 = vpop.f32.mrf.mxu0
        %v3138 = vadd.f32 0.0, %v3137
        %v3139 = vpop.f32.mrf.mxu0
        %v3140 = vadd.f32 0.0, %v3139
        %3141 = vmatmul.bf16.gmra.mxu0 %v3033
        %v3142 = vpop.f32.mrf.mxu0
        %v3143 = vadd.f32 0.0, %v3142
        %v3144 = vpop.f32.mrf.mxu0
        %v3145 = vadd.f32 0.0, %v3144
        %3146 = vmatmul.bf16.gmra.mxu0 %v3034
        %v3147 = vpop.f32.mrf.mxu0
        %v3148 = vadd.f32 0.0, %v3147
        %v3149 = vpop.f32.mrf.mxu0
        %v3150 = vadd.f32 0.0, %v3149
        %3151 = vmatmul.bf16.gmra.mxu0 %v3035
        %v3152 = vpop.f32.mrf.mxu0
        %v3153 = vadd.f32 0.0, %v3152
        %v3154 = vpop.f32.mrf.mxu0
        %v3155 = vadd.f32 0.0, %v3154
        %3156 = vmatmul.bf16.gmra.mxu0 %v3036
        %v3157 = vpop.f32.mrf.mxu0
        %v3158 = vadd.f32 0.0, %v3157
        %v3159 = vpop.f32.mrf.mxu0
        %v3160 = vadd.f32 0.0, %v3159
        %3161 = vmatmul.bf16.gmra.mxu0 %v3037
        %v3162 = vpop.f32.mrf.mxu0
        %v3163 = vadd.f32 0.0, %v3162
        %v3164 = vpop.f32.mrf.mxu0
        %v3165 = vadd.f32 0.0, %v3164
        %3166 = vmatmul.bf16.gmra.mxu0 %v3038
        %v3167 = vpop.f32.mrf.mxu0
        %v3168 = vadd.f32 0.0, %v3167
        %v3169 = vpop.f32.mrf.mxu0
        %v3170 = vadd.f32 0.0, %v3169
        %3171 = vmatmul.bf16.gmra.mxu0 %v3039
        %v3172 = vpop.f32.mrf.mxu0
        %v3173 = vadd.f32 0.0, %v3172
        %v3174 = vpop.f32.mrf.mxu0
        %v3175 = vadd.f32 0.0, %v3174
        %3176 = vmatmul.bf16.gmra.mxu0 %v3040
        %v3177 = vpop.f32.mrf.mxu0
        %v3178 = vadd.f32 0.0, %v3177
        %v3179 = vpop.f32.mrf.mxu0
        %v3180 = vadd.f32 0.0, %v3179
        %3181 = vmatmul.bf16.gmra.mxu0 %v3041
        %v3182 = vpop.f32.mrf.mxu0
        %v3183 = vadd.f32 0.0, %v3182
        %v3184 = vpop.f32.mrf.mxu0
        %v3185 = vadd.f32 0.0, %v3184
        %3186 = vmatmul.bf16.gmra.mxu0 %v3042
        %v3187 = vpop.f32.mrf.mxu0
        %v3188 = vadd.f32 0.0, %v3187
        %v3189 = vpop.f32.mrf.mxu0
        %v3190 = vadd.f32 0.0, %v3189
        %3191 = vmatmul.bf16.gmra.mxu0 %v3043
        %v3192 = vpop.f32.mrf.mxu0
        %v3193 = vadd.f32 0.0, %v3192
        %v3194 = vpop.f32.mrf.mxu0
        %v3195 = vadd.f32 0.0, %v3194
        %3196 = vdwg.mxu0
        %v3197 = vadd.f32 %v2816, %v3118
        %v3198 = vadd.f32 %v2817, %v3120
        %v3199 = vadd.f32 %v2818, %v3123
        %v3200 = vadd.f32 %v2819, %v3125
        %v3201 = vadd.f32 %v2820, %v3128
        %v3202 = vadd.f32 %v2821, %v3130
        %v3203 = vadd.f32 %v2822, %v3133
        %v3204 = vadd.f32 %v2823, %v3135
        %v3205 = vadd.f32 %v2824, %v3138
        %v3206 = vadd.f32 %v2825, %v3140
        %v3207 = vadd.f32 %v2826, %v3143
        %v3208 = vadd.f32 %v2827, %v3145
        %v3209 = vadd.f32 %v2828, %v3148
        %v3210 = vadd.f32 %v2829, %v3150
        %v3211 = vadd.f32 %v2830, %v3153
        %v3212 = vadd.f32 %v2831, %v3155
        %v3213 = vadd.f32 %v2832, %v3158
        %v3214 = vadd.f32 %v2833, %v3160
        %v3215 = vadd.f32 %v2834, %v3163
        %v3216 = vadd.f32 %v2835, %v3165
        %v3217 = vadd.f32 %v2836, %v3168
        %v3218 = vadd.f32 %v2837, %v3170
        %v3219 = vadd.f32 %v2838, %v3173
        %v3220 = vadd.f32 %v2839, %v3175
        %v3221 = vadd.f32 %v2840, %v3178
        %v3222 = vadd.f32 %v2841, %v3180
        %v3223 = vadd.f32 %v2842, %v3183
        %v3224 = vadd.f32 %v2843, %v3185
        %v3225 = vadd.f32 %v2844, %v3188
        %v3226 = vadd.f32 %v2845, %v3190
        %v3227 = vadd.f32 %v2846, %v3193
        %v3228 = vadd.f32 %v2847, %v3195
        %v3230 = vrot.slane %v1160, 5
        %v3231 = vrot.slane %v3230, 4
        %v3232 = vrot.slane %v1161, 5
        %v3233 = vsel %vm2866, %v3231, %v3232
        %v3234 = vrot.slane %v3232, 4
        %v3235 = vrot.slane %v1781, 5
        %v3236 = vsel %vm2866, %v3234, %v3235
        %s3237 = scalar_lea.vmem [#allocation7], 320
        %v3238 = vld [vmem:[%s3237] sm:$0xf]
        %v3239 = vld [vmem:[%s3237 + $0x4] sm:$0xf]
        %v3240 = vld [vmem:[%s3237 + $0x8] sm:$0xf]
        %v3241 = vld [vmem:[%s3237 + $0xc] sm:$0xf]
        %v3242 = vld [vmem:[%s3237 + $0x10] sm:$0xf]
        %v3243 = vld [vmem:[%s3237 + $0x14] sm:$0xf]
        %v3244 = vld [vmem:[%s3237 + $0x18] sm:$0xf]
        %v3245 = vld [vmem:[%s3237 + $0x1c] sm:$0xf]
        %v3246 = vld [vmem:[%s3237 + $0x20] sm:$0xf]
        %v3247 = vld [vmem:[%s3237 + $0x24] sm:$0xf]
        %v3248 = vld [vmem:[%s3237 + $0x28] sm:$0xf]
        %v3249 = vld [vmem:[%s3237 + $0x2c] sm:$0xf]
        %v3250 = vld [vmem:[%s3237 + $0x30] sm:$0xf]
        %v3251 = vld [vmem:[%s3237 + $0x34] sm:$0xf]
        %v3252 = vld [vmem:[%s3237 + $0x38] sm:$0xf]
        %v3253 = vld [vmem:[%s3237 + $0x3c] sm:$0xf]
        %v3254 = vunpack.c.l.b16 %v3233
        %v3255 = vunpack.c.l.b16 %v3236
        %v3256 = vpack.c.b16 %v3255, %v3254
        %v3274 = vunpack.c.l.b16 %v3238
        %v3275 = vunpack.c.l.b16 %v3239
        %v3276 = vunpack.c.l.b16 %v3240
        %v3277 = vunpack.c.l.b16 %v3241
        %v3278 = vunpack.c.l.b16 %v3242
        %v3279 = vunpack.c.l.b16 %v3243
        %v3280 = vunpack.c.l.b16 %v3244
        %v3281 = vunpack.c.l.b16 %v3245
        %v3282 = vunpack.c.l.b16 %v3246
        %v3283 = vunpack.c.l.b16 %v3247
        %v3284 = vunpack.c.l.b16 %v3248
        %v3285 = vunpack.c.l.b16 %v3249
        %v3286 = vunpack.c.l.b16 %v3250
        %v3287 = vunpack.c.l.b16 %v3251
        %v3288 = vunpack.c.l.b16 %v3252
        %v3289 = vunpack.c.l.b16 %v3253
        %v3290 = vpack.c.b16 %v3275, %v3274
        %v3291 = vpack.c.b16 %v3277, %v3276
        %v3292 = vpack.c.b16 %v3279, %v3278
        %v3293 = vpack.c.b16 %v3281, %v3280
        %v3294 = vpack.c.b16 %v3283, %v3282
        %v3295 = vpack.c.b16 %v3285, %v3284
        %v3296 = vpack.c.b16 %v3287, %v3286
        %v3297 = vpack.c.b16 %v3289, %v3288
        %3306 = vmatpush.bf16.msra.mxu0 %v3297
        %3307 = vmatpush.bf16.msra.mxu0 %v3296
        %3308 = vmatpush.bf16.msra.mxu0 %v3295
        %3309 = vmatpush.bf16.msra.mxu0 %v3294
        %3310 = vmatpush.bf16.msra.mxu0 %v3293
        %3311 = vmatpush.bf16.msra.mxu0 %v3292
        %3312 = vmatpush.bf16.msra.mxu0 %v3291
        %3313 = vmatpush.bf16.msra.mxu0 %v3290
        %3314 = vmatmul.bf16.gmra.mxu0 %v3029
        %v3315 = vpop.f32.mrf.mxu0
        %v3316 = vadd.f32 0.0, %v3315
        %v3317 = vpop.f32.mrf.mxu0
        %v3318 = vadd.f32 0.0, %v3317
        %3319 = vmatmul.bf16.gmra.mxu0 %v3030
        %v3320 = vpop.f32.mrf.mxu0
        %v3321 = vadd.f32 0.0, %v3320
        %v3322 = vpop.f32.mrf.mxu0
        %v3323 = vadd.f32 0.0, %v3322
        %3324 = vmatmul.bf16.gmra.mxu0 %v3031
        %v3325 = vpop.f32.mrf.mxu0
        %v3326 = vadd.f32 0.0, %v3325
        %v3327 = vpop.f32.mrf.mxu0
        %v3328 = vadd.f32 0.0, %v3327
        %3329 = vmatmul.bf16.gmra.mxu0 %v3032
        %v3330 = vpop.f32.mrf.mxu0
        %v3331 = vadd.f32 0.0, %v3330
        %v3332 = vpop.f32.mrf.mxu0
        %v3333 = vadd.f32 0.0, %v3332
        %3334 = vmatmul.bf16.gmra.mxu0 %v3033
        %v3335 = vpop.f32.mrf.mxu0
        %v3336 = vadd.f32 0.0, %v3335
        %v3337 = vpop.f32.mrf.mxu0
        %v3338 = vadd.f32 0.0, %v3337
        %3339 = vmatmul.bf16.gmra.mxu0 %v3034
        %v3340 = vpop.f32.mrf.mxu0
        %v3341 = vadd.f32 0.0, %v3340
        %v3342 = vpop.f32.mrf.mxu0
        %v3343 = vadd.f32 0.0, %v3342
        %3344 = vmatmul.bf16.gmra.mxu0 %v3035
        %v3345 = vpop.f32.mrf.mxu0
        %v3346 = vadd.f32 0.0, %v3345
        %v3347 = vpop.f32.mrf.mxu0
        %v3348 = vadd.f32 0.0, %v3347
        %3349 = vmatmul.bf16.gmra.mxu0 %v3036
        %v3350 = vpop.f32.mrf.mxu0
        %v3351 = vadd.f32 0.0, %v3350
        %v3352 = vpop.f32.mrf.mxu0
        %v3353 = vadd.f32 0.0, %v3352
        %3354 = vmatmul.bf16.gmra.mxu0 %v3037
        %v3355 = vpop.f32.mrf.mxu0
        %v3356 = vadd.f32 0.0, %v3355
        %v3357 = vpop.f32.mrf.mxu0
        %v3358 = vadd.f32 0.0, %v3357
        %3359 = vmatmul.bf16.gmra.mxu0 %v3038
        %v3360 = vpop.f32.mrf.mxu0
        %v3361 = vadd.f32 0.0, %v3360
        %v3362 = vpop.f32.mrf.mxu0
        %v3363 = vadd.f32 0.0, %v3362
        %3364 = vmatmul.bf16.gmra.mxu0 %v3039
        %v3365 = vpop.f32.mrf.mxu0
        %v3366 = vadd.f32 0.0, %v3365
        %v3367 = vpop.f32.mrf.mxu0
        %v3368 = vadd.f32 0.0, %v3367
        %3369 = vmatmul.bf16.gmra.mxu0 %v3040
        %v3370 = vpop.f32.mrf.mxu0
        %v3371 = vadd.f32 0.0, %v3370
        %v3372 = vpop.f32.mrf.mxu0
        %v3373 = vadd.f32 0.0, %v3372
        %3374 = vmatmul.bf16.gmra.mxu0 %v3041
        %v3375 = vpop.f32.mrf.mxu0
        %v3376 = vadd.f32 0.0, %v3375
        %v3377 = vpop.f32.mrf.mxu0
        %v3378 = vadd.f32 0.0, %v3377
        %3379 = vmatmul.bf16.gmra.mxu0 %v3042
        %v3380 = vpop.f32.mrf.mxu0
        %v3381 = vadd.f32 0.0, %v3380
        %v3382 = vpop.f32.mrf.mxu0
        %v3383 = vadd.f32 0.0, %v3382
        %3384 = vmatmul.bf16.gmra.mxu0 %v3043
        %v3385 = vpop.f32.mrf.mxu0
        %v3386 = vadd.f32 0.0, %v3385
        %v3387 = vpop.f32.mrf.mxu0
        %v3388 = vadd.f32 0.0, %v3387
        %3389 = vmatmul.bf16.gmra.mxu0 %v3256
        %v3390 = vpop.f32.mrf.mxu0
        %v3391 = vadd.f32 0.0, %v3390
        %v3392 = vpop.f32.mrf.mxu0
        %v3393 = vadd.f32 0.0, %v3392
        %3394 = vdwg.mxu0
        %v3395 = vadd.f32 %v3197, %v3316
        %v3396 = vadd.f32 %v3198, %v3318
        %v3397 = vadd.f32 %v3199, %v3321
        %v3398 = vadd.f32 %v3200, %v3323
        %v3399 = vadd.f32 %v3201, %v3326
        %v3400 = vadd.f32 %v3202, %v3328
        %v3401 = vadd.f32 %v3203, %v3331
        %v3402 = vadd.f32 %v3204, %v3333
        %v3403 = vadd.f32 %v3205, %v3336
        %v3404 = vadd.f32 %v3206, %v3338
        %v3405 = vadd.f32 %v3207, %v3341
        %v3406 = vadd.f32 %v3208, %v3343
        %v3407 = vadd.f32 %v3209, %v3346
        %v3408 = vadd.f32 %v3210, %v3348
        %v3409 = vadd.f32 %v3211, %v3351
        %v3410 = vadd.f32 %v3212, %v3353
        %v3411 = vadd.f32 %v3213, %v3356
        %v3412 = vadd.f32 %v3214, %v3358
        %v3413 = vadd.f32 %v3215, %v3361
        %v3414 = vadd.f32 %v3216, %v3363
        %v3415 = vadd.f32 %v3217, %v3366
        %v3416 = vadd.f32 %v3218, %v3368
        %v3417 = vadd.f32 %v3219, %v3371
        %v3418 = vadd.f32 %v3220, %v3373
        %v3419 = vadd.f32 %v3221, %v3376
        %v3420 = vadd.f32 %v3222, %v3378
        %v3421 = vadd.f32 %v3223, %v3381
        %v3422 = vadd.f32 %v3224, %v3383
        %v3423 = vadd.f32 %v3225, %v3386
        %v3424 = vadd.f32 %v3226, %v3388
        %v3425 = vadd.f32 %v3227, %v3391
        %v3426 = vadd.f32 %v3228, %v3393
        %v3428 = vrot.slane %v1162, 5
        %v3429 = vrot.slane %v3428, 4
        %v3430 = vrot.slane %v1163, 5
        %v3431 = vsel %vm2866, %v3429, %v3430
        %v3432 = vrot.slane %v3430, 4
        %v3433 = vrot.slane %v1782, 5
        %v3434 = vsel %vm2866, %v3432, %v3433
        %s3435 = scalar_lea.vmem [#allocation7], 512
        %v3436 = vld [vmem:[%s3435] sm:$0xf]
        %v3437 = vld [vmem:[%s3435 + $0x4] sm:$0xf]
        %v3438 = vld [vmem:[%s3435 + $0x8] sm:$0xf]
        %v3439 = vld [vmem:[%s3435 + $0xc] sm:$0xf]
        %v3440 = vld [vmem:[%s3435 + $0x10] sm:$0xf]
        %v3441 = vld [vmem:[%s3435 + $0x14] sm:$0xf]
        %v3442 = vld [vmem:[%s3435 + $0x18] sm:$0xf]
        %v3443 = vld [vmem:[%s3435 + $0x1c] sm:$0xf]
        %v3444 = vld [vmem:[%s3435 + $0x20] sm:$0xf]
        %v3445 = vld [vmem:[%s3435 + $0x24] sm:$0xf]
        %v3446 = vld [vmem:[%s3435 + $0x28] sm:$0xf]
        %v3447 = vld [vmem:[%s3435 + $0x2c] sm:$0xf]
        %v3448 = vld [vmem:[%s3435 + $0x30] sm:$0xf]
        %v3449 = vld [vmem:[%s3435 + $0x34] sm:$0xf]
        %v3450 = vld [vmem:[%s3435 + $0x38] sm:$0xf]
        %v3451 = vld [vmem:[%s3435 + $0x3c] sm:$0xf]
        %v3452 = vunpack.c.l.b16 %v3431
        %v3453 = vunpack.c.l.b16 %v3434
        %v3454 = vpack.c.b16 %v3453, %v3452
        %v3472 = vunpack.c.l.b16 %v3436
        %v3473 = vunpack.c.l.b16 %v3437
        %v3474 = vunpack.c.l.b16 %v3438
        %v3475 = vunpack.c.l.b16 %v3439
        %v3476 = vunpack.c.l.b16 %v3440
        %v3477 = vunpack.c.l.b16 %v3441
        %v3478 = vunpack.c.l.b16 %v3442
        %v3479 = vunpack.c.l.b16 %v3443
        %v3480 = vunpack.c.l.b16 %v3444
        %v3481 = vunpack.c.l.b16 %v3445
        %v3482 = vunpack.c.l.b16 %v3446
        %v3483 = vunpack.c.l.b16 %v3447
        %v3484 = vunpack.c.l.b16 %v3448
        %v3485 = vunpack.c.l.b16 %v3449
        %v3486 = vunpack.c.l.b16 %v3450
        %v3487 = vunpack.c.l.b16 %v3451
        %v3488 = vpack.c.b16 %v3473, %v3472
        %v3489 = vpack.c.b16 %v3475, %v3474
        %v3490 = vpack.c.b16 %v3477, %v3476
        %v3491 = vpack.c.b16 %v3479, %v3478
        %v3492 = vpack.c.b16 %v3481, %v3480
        %v3493 = vpack.c.b16 %v3483, %v3482
        %v3494 = vpack.c.b16 %v3485, %v3484
        %v3495 = vpack.c.b16 %v3487, %v3486
        %3504 = vmatpush.bf16.msra.mxu0 %v3495
        %3505 = vmatpush.bf16.msra.mxu0 %v3494
        %3506 = vmatpush.bf16.msra.mxu0 %v3493
        %3507 = vmatpush.bf16.msra.mxu0 %v3492
        %3508 = vmatpush.bf16.msra.mxu0 %v3491
        %3509 = vmatpush.bf16.msra.mxu0 %v3490
        %3510 = vmatpush.bf16.msra.mxu0 %v3489
        %3511 = vmatpush.bf16.msra.mxu0 %v3488
        %3512 = vmatmul.bf16.gmra.mxu0 %v3030
        %v3513 = vpop.f32.mrf.mxu0
        %v3514 = vadd.f32 0.0, %v3513
        %v3515 = vpop.f32.mrf.mxu0
        %v3516 = vadd.f32 0.0, %v3515
        %3517 = vmatmul.bf16.gmra.mxu0 %v3031
        %v3518 = vpop.f32.mrf.mxu0
        %v3519 = vadd.f32 0.0, %v3518
        %v3520 = vpop.f32.mrf.mxu0
        %v3521 = vadd.f32 0.0, %v3520
        %3522 = vmatmul.bf16.gmra.mxu0 %v3032
        %v3523 = vpop.f32.mrf.mxu0
        %v3524 = vadd.f32 0.0, %v3523
        %v3525 = vpop.f32.mrf.mxu0
        %v3526 = vadd.f32 0.0, %v3525
        %3527 = vmatmul.bf16.gmra.mxu0 %v3033
        %v3528 = vpop.f32.mrf.mxu0
        %v3529 = vadd.f32 0.0, %v3528
        %v3530 = vpop.f32.mrf.mxu0
        %v3531 = vadd.f32 0.0, %v3530
        %3532 = vmatmul.bf16.gmra.mxu0 %v3034
        %v3533 = vpop.f32.mrf.mxu0
        %v3534 = vadd.f32 0.0, %v3533
        %v3535 = vpop.f32.mrf.mxu0
        %v3536 = vadd.f32 0.0, %v3535
        %3537 = vmatmul.bf16.gmra.mxu0 %v3035
        %v3538 = vpop.f32.mrf.mxu0
        %v3539 = vadd.f32 0.0, %v3538
        %v3540 = vpop.f32.mrf.mxu0
        %v3541 = vadd.f32 0.0, %v3540
        %3542 = vmatmul.bf16.gmra.mxu0 %v3036
        %v3543 = vpop.f32.mrf.mxu0
        %v3544 = vadd.f32 0.0, %v3543
        %v3545 = vpop.f32.mrf.mxu0
        %v3546 = vadd.f32 0.0, %v3545
        %3547 = vmatmul.bf16.gmra.mxu0 %v3037
        %v3548 = vpop.f32.mrf.mxu0
        %v3549 = vadd.f32 0.0, %v3548
        %v3550 = vpop.f32.mrf.mxu0
        %v3551 = vadd.f32 0.0, %v3550
        %3552 = vmatmul.bf16.gmra.mxu0 %v3038
        %v3553 = vpop.f32.mrf.mxu0
        %v3554 = vadd.f32 0.0, %v3553
        %v3555 = vpop.f32.mrf.mxu0
        %v3556 = vadd.f32 0.0, %v3555
        %3557 = vmatmul.bf16.gmra.mxu0 %v3039
        %v3558 = vpop.f32.mrf.mxu0
        %v3559 = vadd.f32 0.0, %v3558
        %v3560 = vpop.f32.mrf.mxu0
        %v3561 = vadd.f32 0.0, %v3560
        %3562 = vmatmul.bf16.gmra.mxu0 %v3040
        %v3563 = vpop.f32.mrf.mxu0
        %v3564 = vadd.f32 0.0, %v3563
        %v3565 = vpop.f32.mrf.mxu0
        %v3566 = vadd.f32 0.0, %v3565
        %3567 = vmatmul.bf16.gmra.mxu0 %v3041
        %v3568 = vpop.f32.mrf.mxu0
        %v3569 = vadd.f32 0.0, %v3568
        %v3570 = vpop.f32.mrf.mxu0
        %v3571 = vadd.f32 0.0, %v3570
        %3572 = vmatmul.bf16.gmra.mxu0 %v3042
        %v3573 = vpop.f32.mrf.mxu0
        %v3574 = vadd.f32 0.0, %v3573
        %v3575 = vpop.f32.mrf.mxu0
        %v3576 = vadd.f32 0.0, %v3575
        %3577 = vmatmul.bf16.gmra.mxu0 %v3043
        %v3578 = vpop.f32.mrf.mxu0
        %v3579 = vadd.f32 0.0, %v3578
        %v3580 = vpop.f32.mrf.mxu0
        %v3581 = vadd.f32 0.0, %v3580
        %3582 = vmatmul.bf16.gmra.mxu0 %v3256
        %v3583 = vpop.f32.mrf.mxu0
        %v3584 = vadd.f32 0.0, %v3583
        %v3585 = vpop.f32.mrf.mxu0
        %v3586 = vadd.f32 0.0, %v3585
        %3587 = vmatmul.bf16.gmra.mxu0 %v3454
        %v3588 = vpop.f32.mrf.mxu0
        %v3589 = vadd.f32 0.0, %v3588
        %v3590 = vpop.f32.mrf.mxu0
        %v3591 = vadd.f32 0.0, %v3590
        %3592 = vdwg.mxu0
        %v3593 = vadd.f32 %v3395, %v3514
        %v3594 = vadd.f32 %v3396, %v3516
        %v3595 = vadd.f32 %v3397, %v3519
        %v3596 = vadd.f32 %v3398, %v3521
        %v3597 = vadd.f32 %v3399, %v3524
        %v3598 = vadd.f32 %v3400, %v3526
        %v3599 = vadd.f32 %v3401, %v3529
        %v3600 = vadd.f32 %v3402, %v3531
        %v3601 = vadd.f32 %v3403, %v3534
        %v3602 = vadd.f32 %v3404, %v3536
        %v3603 = vadd.f32 %v3405, %v3539
        %v3604 = vadd.f32 %v3406, %v3541
        %v3605 = vadd.f32 %v3407, %v3544
        %v3606 = vadd.f32 %v3408, %v3546
        %v3607 = vadd.f32 %v3409, %v3549
        %v3608 = vadd.f32 %v3410, %v3551
        %v3609 = vadd.f32 %v3411, %v3554
        %v3610 = vadd.f32 %v3412, %v3556
        %v3611 = vadd.f32 %v3413, %v3559
        %v3612 = vadd.f32 %v3414, %v3561
        %v3613 = vadd.f32 %v3415, %v3564
        %v3614 = vadd.f32 %v3416, %v3566
        %v3615 = vadd.f32 %v3417, %v3569
        %v3616 = vadd.f32 %v3418, %v3571
        %v3617 = vadd.f32 %v3419, %v3574
        %v3618 = vadd.f32 %v3420, %v3576
        %v3619 = vadd.f32 %v3421, %v3579
        %v3620 = vadd.f32 %v3422, %v3581
        %v3621 = vadd.f32 %v3423, %v3584
        %v3622 = vadd.f32 %v3424, %v3586
        %v3623 = vadd.f32 %v3425, %v3589
        %v3624 = vadd.f32 %v3426, %v3591
        %v3625 = vld [vmem:[%s5] sm:$0x1]
        %v3626 = vperm.slane %v3625, 0
        %v3627 = vmul.f32 %v3593, %v3626
        %v3628 = vmul.f32 %v3594, %v3626
        %v3629 = vmul.f32 %v3595, %v3626
        %v3630 = vmul.f32 %v3596, %v3626
        %v3631 = vmul.f32 %v3597, %v3626
        %v3632 = vmul.f32 %v3598, %v3626
        %v3633 = vmul.f32 %v3599, %v3626
        %v3634 = vmul.f32 %v3600, %v3626
        %v3635 = vmul.f32 %v3601, %v3626
        %v3636 = vmul.f32 %v3602, %v3626
        %v3637 = vmul.f32 %v3603, %v3626
        %v3638 = vmul.f32 %v3604, %v3626
        %v3639 = vmul.f32 %v3605, %v3626
        %v3640 = vmul.f32 %v3606, %v3626
        %v3641 = vmul.f32 %v3607, %v3626
        %v3642 = vmul.f32 %v3608, %v3626
        %v3643 = vmul.f32 %v3609, %v3626
        %v3644 = vmul.f32 %v3610, %v3626
        %v3645 = vmul.f32 %v3611, %v3626
        %v3646 = vmul.f32 %v3612, %v3626
        %v3647 = vmul.f32 %v3613, %v3626
        %v3648 = vmul.f32 %v3614, %v3626
        %v3649 = vmul.f32 %v3615, %v3626
        %v3650 = vmul.f32 %v3616, %v3626
        %v3651 = vmul.f32 %v3617, %v3626
        %v3652 = vmul.f32 %v3618, %v3626
        %v3653 = vmul.f32 %v3619, %v3626
        %v3654 = vmul.f32 %v3620, %v3626
        %v3655 = vmul.f32 %v3621, %v3626
        %v3656 = vmul.f32 %v3622, %v3626
        %v3657 = vmul.f32 %v3623, %v3626
        %v3658 = vmul.f32 %v3624, %v3626
        %v3659 = vld [vmem:[%s5 + $0x1] sm:$0x1]
        %v3660 = vperm.slane %v3659, 0
        %v3661 = vadd.f32 %v3627, %v3660
        %v3662 = vadd.f32 %v3628, %v3660
        %v3663 = vadd.f32 %v3629, %v3660
        %v3664 = vadd.f32 %v3630, %v3660
        %v3665 = vadd.f32 %v3631, %v3660
        %v3666 = vadd.f32 %v3632, %v3660
        %v3667 = vadd.f32 %v3633, %v3660
        %v3668 = vadd.f32 %v3634, %v3660
        %v3669 = vadd.f32 %v3635, %v3660
        %v3670 = vadd.f32 %v3636, %v3660
        %v3671 = vadd.f32 %v3637, %v3660
        %v3672 = vadd.f32 %v3638, %v3660
        %v3673 = vadd.f32 %v3639, %v3660
        %v3674 = vadd.f32 %v3640, %v3660
        %v3675 = vadd.f32 %v3641, %v3660
        %v3676 = vadd.f32 %v3642, %v3660
        %v3677 = vadd.f32 %v3643, %v3660
        %v3678 = vadd.f32 %v3644, %v3660
        %v3679 = vadd.f32 %v3645, %v3660
        %v3680 = vadd.f32 %v3646, %v3660
        %v3681 = vadd.f32 %v3647, %v3660
        %v3682 = vadd.f32 %v3648, %v3660
        %v3683 = vadd.f32 %v3649, %v3660
        %v3684 = vadd.f32 %v3650, %v3660
        %v3685 = vadd.f32 %v3651, %v3660
        %v3686 = vadd.f32 %v3652, %v3660
        %v3687 = vadd.f32 %v3653, %v3660
        %v3688 = vadd.f32 %v3654, %v3660
        %v3689 = vadd.f32 %v3655, %v3660
        %v3690 = vadd.f32 %v3656, %v3660
        %v3691 = vadd.f32 %v3657, %v3660
        %v3692 = vadd.f32 %v3658, %v3660
        %v3693 = vmax.f32 %v3661, 0.0
        %v3694 = vmax.f32 %v3662, 0.0
        %v3695 = vmax.f32 %v3663, 0.0
        %v3696 = vmax.f32 %v3664, 0.0
        %v3697 = vmax.f32 %v3665, 0.0
        %v3698 = vmax.f32 %v3666, 0.0
        %v3699 = vmax.f32 %v3667, 0.0
        %v3700 = vmax.f32 %v3668, 0.0
        %v3701 = vmax.f32 %v3669, 0.0
        %v3702 = vmax.f32 %v3670, 0.0
        %v3703 = vmax.f32 %v3671, 0.0
        %v3704 = vmax.f32 %v3672, 0.0
        %v3705 = vmax.f32 %v3673, 0.0
        %v3706 = vmax.f32 %v3674, 0.0
        %v3707 = vmax.f32 %v3675, 0.0
        %v3708 = vmax.f32 %v3676, 0.0
        %v3709 = vmax.f32 %v3677, 0.0
        %v3710 = vmax.f32 %v3678, 0.0
        %v3711 = vmax.f32 %v3679, 0.0
        %v3712 = vmax.f32 %v3680, 0.0
        %v3713 = vmax.f32 %v3681, 0.0
        %v3714 = vmax.f32 %v3682, 0.0
        %v3715 = vmax.f32 %v3683, 0.0
        %v3716 = vmax.f32 %v3684, 0.0
        %v3717 = vmax.f32 %v3685, 0.0
        %v3718 = vmax.f32 %v3686, 0.0
        %v3719 = vmax.f32 %v3687, 0.0
        %v3720 = vmax.f32 %v3688, 0.0
        %v3721 = vmax.f32 %v3689, 0.0
        %v3722 = vmax.f32 %v3690, 0.0
        %v3723 = vmax.f32 %v3691, 0.0
        %v3724 = vmax.f32 %v3692, 0.0
        %v3725 = vpack.c.bf16 %v3694, %v3693
        %v3726 = vpack.c.bf16 %v3696, %v3695
        %v3727 = vpack.c.bf16 %v3698, %v3697
        %v3728 = vpack.c.bf16 %v3700, %v3699
        %v3729 = vpack.c.bf16 %v3702, %v3701
        %v3730 = vpack.c.bf16 %v3704, %v3703
        %v3731 = vpack.c.bf16 %v3706, %v3705
        %v3732 = vpack.c.bf16 %v3708, %v3707
        %v3733 = vpack.c.bf16 %v3710, %v3709
        %v3734 = vpack.c.bf16 %v3712, %v3711
        %v3735 = vpack.c.bf16 %v3714, %v3713
        %v3736 = vpack.c.bf16 %v3716, %v3715
        %v3737 = vpack.c.bf16 %v3718, %v3717
        %v3738 = vpack.c.bf16 %v3720, %v3719
        %v3739 = vpack.c.bf16 %v3722, %v3721
        %v3740 = vpack.c.bf16 %v3724, %v3723
        %v3741 = vld [vmem:[#allocation8] sm:$0xf]
        %v3742 = vld [vmem:[#allocation8 + $0x4] sm:$0xf]
        %v3743 = vld [vmem:[#allocation8 + $0x8] sm:$0xf]
        %v3744 = vld [vmem:[#allocation8 + $0xc] sm:$0xf]
        %v3745 = vld [vmem:[#allocation8 + $0x10] sm:$0xf]
        %v3746 = vld [vmem:[#allocation8 + $0x14] sm:$0xf]
        %v3747 = vld [vmem:[#allocation8 + $0x18] sm:$0xf]
        %v3748 = vld [vmem:[#allocation8 + $0x1c] sm:$0xf]
        %v3749 = vld [vmem:[#allocation8 + $0x20] sm:$0xf]
        %v3750 = vld [vmem:[#allocation8 + $0x24] sm:$0xf]
        %v3751 = vld [vmem:[#allocation8 + $0x28] sm:$0xf]
        %v3752 = vld [vmem:[#allocation8 + $0x2c] sm:$0xf]
        %v3753 = vld [vmem:[#allocation8 + $0x30] sm:$0xf]
        %v3754 = vld [vmem:[#allocation8 + $0x34] sm:$0xf]
        %v3755 = vld [vmem:[#allocation8 + $0x38] sm:$0xf]
        %v3756 = vld [vmem:[#allocation8 + $0x3c] sm:$0xf]
        %v3773 = vunpack.c.l.b16 %v3741
        %v3774 = vunpack.c.l.b16 %v3742
        %v3775 = vunpack.c.l.b16 %v3743
        %v3776 = vunpack.c.l.b16 %v3744
        %v3777 = vunpack.c.l.b16 %v3745
        %v3778 = vunpack.c.l.b16 %v3746
        %v3779 = vunpack.c.l.b16 %v3747
        %v3780 = vunpack.c.l.b16 %v3748
        %v3781 = vunpack.c.l.b16 %v3749
        %v3782 = vunpack.c.l.b16 %v3750
        %v3783 = vunpack.c.l.b16 %v3751
        %v3784 = vunpack.c.l.b16 %v3752
        %v3785 = vunpack.c.l.b16 %v3753
        %v3786 = vunpack.c.l.b16 %v3754
        %v3787 = vunpack.c.l.b16 %v3755
        %v3788 = vunpack.c.l.b16 %v3756
        %v3789 = vpack.c.b16 %v3774, %v3773
        %v3790 = vpack.c.b16 %v3776, %v3775
        %v3791 = vpack.c.b16 %v3778, %v3777
        %v3792 = vpack.c.b16 %v3780, %v3779
        %v3793 = vpack.c.b16 %v3782, %v3781
        %v3794 = vpack.c.b16 %v3784, %v3783
        %v3795 = vpack.c.b16 %v3786, %v3785
        %v3796 = vpack.c.b16 %v3788, %v3787
        %3805 = vmatpush.bf16.msra.mxu0 %v3796
        %3806 = vmatpush.bf16.msra.mxu0 %v3795
        %3807 = vmatpush.bf16.msra.mxu0 %v3794
        %3808 = vmatpush.bf16.msra.mxu0 %v3793
        %3809 = vmatpush.bf16.msra.mxu0 %v3792
        %3810 = vmatpush.bf16.msra.mxu0 %v3791
        %3811 = vmatpush.bf16.msra.mxu0 %v3790
        %3812 = vmatpush.bf16.msra.mxu0 %v3789
        %3813 = vmatmul.bf16.gmra.mxu0 %v3725
        %v3814 = vpop.f32.mrf.mxu0
        %v3815 = vadd.f32 0.0, %v3814
        %v3816 = vpop.f32.mrf.mxu0
        %v3817 = vadd.f32 0.0, %v3816
        %3818 = vmatmul.bf16.gmra.mxu0 %v3726
        %v3819 = vpop.f32.mrf.mxu0
        %v3820 = vadd.f32 0.0, %v3819
        %v3821 = vpop.f32.mrf.mxu0
        %v3822 = vadd.f32 0.0, %v3821
        %3823 = vmatmul.bf16.gmra.mxu0 %v3727
        %v3824 = vpop.f32.mrf.mxu0
        %v3825 = vadd.f32 0.0, %v3824
        %v3826 = vpop.f32.mrf.mxu0
        %v3827 = vadd.f32 0.0, %v3826
        %3828 = vmatmul.bf16.gmra.mxu0 %v3728
        %v3829 = vpop.f32.mrf.mxu0
        %v3830 = vadd.f32 0.0, %v3829
        %v3831 = vpop.f32.mrf.mxu0
        %v3832 = vadd.f32 0.0, %v3831
        %3833 = vmatmul.bf16.gmra.mxu0 %v3729
        %v3834 = vpop.f32.mrf.mxu0
        %v3835 = vadd.f32 0.0, %v3834
        %v3836 = vpop.f32.mrf.mxu0
        %v3837 = vadd.f32 0.0, %v3836
        %3838 = vmatmul.bf16.gmra.mxu0 %v3730
        %v3839 = vpop.f32.mrf.mxu0
        %v3840 = vadd.f32 0.0, %v3839
        %v3841 = vpop.f32.mrf.mxu0
        %v3842 = vadd.f32 0.0, %v3841
        %3843 = vmatmul.bf16.gmra.mxu0 %v3731
        %v3844 = vpop.f32.mrf.mxu0
        %v3845 = vadd.f32 0.0, %v3844
        %v3846 = vpop.f32.mrf.mxu0
        %v3847 = vadd.f32 0.0, %v3846
        %3848 = vmatmul.bf16.gmra.mxu0 %v3732
        %v3849 = vpop.f32.mrf.mxu0
        %v3850 = vadd.f32 0.0, %v3849
        %v3851 = vpop.f32.mrf.mxu0
        %v3852 = vadd.f32 0.0, %v3851
        %3853 = vmatmul.bf16.gmra.mxu0 %v3733
        %v3854 = vpop.f32.mrf.mxu0
        %v3855 = vadd.f32 0.0, %v3854
        %v3856 = vpop.f32.mrf.mxu0
        %v3857 = vadd.f32 0.0, %v3856
        %3858 = vmatmul.bf16.gmra.mxu0 %v3734
        %v3859 = vpop.f32.mrf.mxu0
        %v3860 = vadd.f32 0.0, %v3859
        %v3861 = vpop.f32.mrf.mxu0
        %v3862 = vadd.f32 0.0, %v3861
        %3863 = vmatmul.bf16.gmra.mxu0 %v3735
        %v3864 = vpop.f32.mrf.mxu0
        %v3865 = vadd.f32 0.0, %v3864
        %v3866 = vpop.f32.mrf.mxu0
        %v3867 = vadd.f32 0.0, %v3866
        %3868 = vmatmul.bf16.gmra.mxu0 %v3736
        %v3869 = vpop.f32.mrf.mxu0
        %v3870 = vadd.f32 0.0, %v3869
        %v3871 = vpop.f32.mrf.mxu0
        %v3872 = vadd.f32 0.0, %v3871
        %3873 = vmatmul.bf16.gmra.mxu0 %v3737
        %v3874 = vpop.f32.mrf.mxu0
        %v3875 = vadd.f32 0.0, %v3874
        %v3876 = vpop.f32.mrf.mxu0
        %v3877 = vadd.f32 0.0, %v3876
        %3878 = vmatmul.bf16.gmra.mxu0 %v3738
        %v3879 = vpop.f32.mrf.mxu0
        %v3880 = vadd.f32 0.0, %v3879
        %v3881 = vpop.f32.mrf.mxu0
        %v3882 = vadd.f32 0.0, %v3881
        %3883 = vmatmul.bf16.gmra.mxu0 %v3739
        %v3884 = vpop.f32.mrf.mxu0
        %v3885 = vadd.f32 0.0, %v3884
        %v3886 = vpop.f32.mrf.mxu0
        %v3887 = vadd.f32 0.0, %v3886
        %3888 = vmatmul.bf16.gmra.mxu0 %v3740
        %v3889 = vpop.f32.mrf.mxu0
        %v3890 = vadd.f32 0.0, %v3889
        %v3891 = vpop.f32.mrf.mxu0
        %v3892 = vadd.f32 0.0, %v3891
        %3893 = vdwg.mxu0
        %v3894 = vld [vmem:[#allocation10] sm:$0x1]
        %v3895 = vperm.slane %v3894, 0
        %v3896 = vmul.f32 %v3815, %v3895
        %v3897 = vmul.f32 %v3817, %v3895
        %v3898 = vmul.f32 %v3820, %v3895
        %v3899 = vmul.f32 %v3822, %v3895
        %v3900 = vmul.f32 %v3825, %v3895
        %v3901 = vmul.f32 %v3827, %v3895
        %v3902 = vmul.f32 %v3830, %v3895
        %v3903 = vmul.f32 %v3832, %v3895
        %v3904 = vmul.f32 %v3835, %v3895
        %v3905 = vmul.f32 %v3837, %v3895
        %v3906 = vmul.f32 %v3840, %v3895
        %v3907 = vmul.f32 %v3842, %v3895
        %v3908 = vmul.f32 %v3845, %v3895
        %v3909 = vmul.f32 %v3847, %v3895
        %v3910 = vmul.f32 %v3850, %v3895
        %v3911 = vmul.f32 %v3852, %v3895
        %v3912 = vmul.f32 %v3855, %v3895
        %v3913 = vmul.f32 %v3857, %v3895
        %v3914 = vmul.f32 %v3860, %v3895
        %v3915 = vmul.f32 %v3862, %v3895
        %v3916 = vmul.f32 %v3865, %v3895
        %v3917 = vmul.f32 %v3867, %v3895
        %v3918 = vmul.f32 %v3870, %v3895
        %v3919 = vmul.f32 %v3872, %v3895
        %v3920 = vmul.f32 %v3875, %v3895
        %v3921 = vmul.f32 %v3877, %v3895
        %v3922 = vmul.f32 %v3880, %v3895
        %v3923 = vmul.f32 %v3882, %v3895
        %v3924 = vmul.f32 %v3885, %v3895
        %v3925 = vmul.f32 %v3887, %v3895
        %v3926 = vmul.f32 %v3890, %v3895
        %v3927 = vmul.f32 %v3892, %v3895
        %v3928 = vld [vmem:[#allocation10 + $0x1] sm:$0x1]
        %v3929 = vperm.slane %v3928, 0
        %v3930 = vadd.f32 %v3896, %v3929
        %v3931 = vadd.f32 %v3897, %v3929
        %v3932 = vadd.f32 %v3898, %v3929
        %v3933 = vadd.f32 %v3899, %v3929
        %v3934 = vadd.f32 %v3900, %v3929
        %v3935 = vadd.f32 %v3901, %v3929
        %v3936 = vadd.f32 %v3902, %v3929
        %v3937 = vadd.f32 %v3903, %v3929
        %v3938 = vadd.f32 %v3904, %v3929
        %v3939 = vadd.f32 %v3905, %v3929
        %v3940 = vadd.f32 %v3906, %v3929
        %v3941 = vadd.f32 %v3907, %v3929
        %v3942 = vadd.f32 %v3908, %v3929
        %v3943 = vadd.f32 %v3909, %v3929
        %v3944 = vadd.f32 %v3910, %v3929
        %v3945 = vadd.f32 %v3911, %v3929
        %v3946 = vadd.f32 %v3912, %v3929
        %v3947 = vadd.f32 %v3913, %v3929
        %v3948 = vadd.f32 %v3914, %v3929
        %v3949 = vadd.f32 %v3915, %v3929
        %v3950 = vadd.f32 %v3916, %v3929
        %v3951 = vadd.f32 %v3917, %v3929
        %v3952 = vadd.f32 %v3918, %v3929
        %v3953 = vadd.f32 %v3919, %v3929
        %v3954 = vadd.f32 %v3920, %v3929
        %v3955 = vadd.f32 %v3921, %v3929
        %v3956 = vadd.f32 %v3922, %v3929
        %v3957 = vadd.f32 %v3923, %v3929
        %v3958 = vadd.f32 %v3924, %v3929
        %v3959 = vadd.f32 %v3925, %v3929
        %v3960 = vadd.f32 %v3926, %v3929
        %v3961 = vadd.f32 %v3927, %v3929
        %v3962 = vunpack.c.l.bf16 %v367
        %v3963 = vunpack.c.l.bf16 %v368
        %v3964 = vunpack.c.l.bf16 %v369
        %v3965 = vunpack.c.l.bf16 %v371
        %v3966 = vunpack.c.l.bf16 %v372
        %v3967 = vunpack.c.l.bf16 %v373
        %v3968 = vunpack.c.l.bf16 %v375
        %v3969 = vunpack.c.l.bf16 %v376
        %v3970 = vunpack.c.l.bf16 %v377
        %v3971 = vunpack.c.l.bf16 %v379
        %v3972 = vunpack.c.l.bf16 %v380
        %v3973 = vunpack.c.l.bf16 %v381
        %v3974 = vunpack.c.l.bf16 %v383
        %v3975 = vunpack.c.l.bf16 %v384
        %v3976 = vunpack.c.l.bf16 %v385
        %v3977 = vunpack.c.l.bf16 %v387
        %v3978 = vunpack.c.l.bf16 %v388
        %v3979 = vunpack.c.l.bf16 %v389
        %v3980 = vunpack.c.l.bf16 %v391
        %v3981 = vunpack.c.l.bf16 %v392
        %v3982 = vunpack.c.l.bf16 %v393
        %v3983 = vunpack.c.l.bf16 %v395
        %v3984 = vunpack.c.l.bf16 %v396
        %v3985 = vunpack.c.l.bf16 %v397
        %v3986 = vunpack.c.l.bf16 %v399
        %v3987 = vunpack.c.l.bf16 %v400
        %v3988 = vunpack.c.l.bf16 %v401
        %v3989 = vunpack.c.l.bf16 %v403
        %v3990 = vunpack.c.l.bf16 %v404
        %v3991 = vunpack.c.l.bf16 %v405
        %v3992 = vunpack.c.l.bf16 %v407
        %v3993 = vunpack.c.l.bf16 %v408
        %v3994 = vunpack.c.l.bf16 %v409
        %v3995 = vunpack.c.l.bf16 %v411
        %v3996 = vunpack.c.l.bf16 %v412
        %v3997 = vunpack.c.l.bf16 %v413
        %v3998 = vunpack.c.l.bf16 %v415
        %v3999 = vunpack.c.l.bf16 %v416
        %v4000 = vunpack.c.l.bf16 %v417
        %v4001 = vunpack.c.l.bf16 %v419
        %v4002 = vunpack.c.l.bf16 %v420
        %v4003 = vunpack.c.l.bf16 %v421
        %v4004 = vunpack.c.l.bf16 %v423
        %v4005 = vunpack.c.l.bf16 %v424
        %v4006 = vunpack.c.l.bf16 %v425
        %v4007 = vunpack.c.l.bf16 %v427
        %v4008 = vunpack.c.l.bf16 %v428
        %v4009 = vunpack.c.l.bf16 %v429
        %vm4058 = vcmask 1046528
        %v4059 = vrot.slane %v3962, 1
        %v4060 = vrot.slane %v3963, 1
        %v4061 = vsel %vm4058, %v4059, %v4060
        %v4062 = vrot.slane %v3964, 1
        %v4063 = vsel %vm4058, %v4060, %v4062
        %v4064 = vrot.slane %v3965, 1
        %v4065 = vrot.slane %v3966, 1
        %v4066 = vsel %vm4058, %v4064, %v4065
        %v4067 = vrot.slane %v3967, 1
        %v4068 = vsel %vm4058, %v4065, %v4067
        %v4069 = vrot.slane %v3968, 1
        %v4070 = vrot.slane %v3969, 1
        %v4071 = vsel %vm4058, %v4069, %v4070
        %v4072 = vrot.slane %v3970, 1
        %v4073 = vsel %vm4058, %v4070, %v4072
        %v4074 = vrot.slane %v3971, 1
        %v4075 = vrot.slane %v3972, 1
        %v4076 = vsel %vm4058, %v4074, %v4075
        %v4077 = vrot.slane %v3973, 1
        %v4078 = vsel %vm4058, %v4075, %v4077
        %v4079 = vrot.slane %v3974, 1
        %v4080 = vrot.slane %v3975, 1
        %v4081 = vsel %vm4058, %v4079, %v4080
        %v4082 = vrot.slane %v3976, 1
        %v4083 = vsel %vm4058, %v4080, %v4082
        %v4084 = vrot.slane %v3977, 1
        %v4085 = vrot.slane %v3978, 1
        %v4086 = vsel %vm4058, %v4084, %v4085
        %v4087 = vrot.slane %v3979, 1
        %v4088 = vsel %vm4058, %v4085, %v4087
        %v4089 = vrot.slane %v3980, 1
        %v4090 = vrot.slane %v3981, 1
        %v4091 = vsel %vm4058, %v4089, %v4090
        %v4092 = vrot.slane %v3982, 1
        %v4093 = vsel %vm4058, %v4090, %v4092
        %v4094 = vrot.slane %v3983, 1
        %v4095 = vrot.slane %v3984, 1
        %v4096 = vsel %vm4058, %v4094, %v4095
        %v4097 = vrot.slane %v3985, 1
        %v4098 = vsel %vm4058, %v4095, %v4097
        %v4099 = vrot.slane %v3986, 1
        %v4100 = vrot.slane %v3987, 1
        %v4101 = vsel %vm4058, %v4099, %v4100
        %v4102 = vrot.slane %v3988, 1
        %v4103 = vsel %vm4058, %v4100, %v4102
        %v4104 = vrot.slane %v3989, 1
        %v4105 = vrot.slane %v3990, 1
        %v4106 = vsel %vm4058, %v4104, %v4105
        %v4107 = vrot.slane %v3991, 1
        %v4108 = vsel %vm4058, %v4105, %v4107
        %v4109 = vrot.slane %v3992, 1
        %v4110 = vrot.slane %v3993, 1
        %v4111 = vsel %vm4058, %v4109, %v4110
        %v4112 = vrot.slane %v3994, 1
        %v4113 = vsel %vm4058, %v4110, %v4112
        %v4114 = vrot.slane %v3995, 1
        %v4115 = vrot.slane %v3996, 1
        %v4116 = vsel %vm4058, %v4114, %v4115
        %v4117 = vrot.slane %v3997, 1
        %v4118 = vsel %vm4058, %v4115, %v4117
        %v4119 = vrot.slane %v3998, 1
        %v4120 = vrot.slane %v3999, 1
        %v4121 = vsel %vm4058, %v4119, %v4120
        %v4122 = vrot.slane %v4000, 1
        %v4123 = vsel %vm4058, %v4120, %v4122
        %v4124 = vrot.slane %v4001, 1
        %v4125 = vrot.slane %v4002, 1
        %v4126 = vsel %vm4058, %v4124, %v4125
        %v4127 = vrot.slane %v4003, 1
        %v4128 = vsel %vm4058, %v4125, %v4127
        %v4129 = vrot.slane %v4004, 1
        %v4130 = vrot.slane %v4005, 1
        %v4131 = vsel %vm4058, %v4129, %v4130
        %v4132 = vrot.slane %v4006, 1
        %v4133 = vsel %vm4058, %v4130, %v4132
        %v4134 = vrot.slane %v4007, 1
        %v4135 = vrot.slane %v4008, 1
        %v4136 = vsel %vm4058, %v4134, %v4135
        %v4137 = vrot.slane %v4009, 1
        %v4138 = vsel %vm4058, %v4135, %v4137
        %v4171 = vadd.f32 %v3930, %v4061
        %v4172 = vadd.f32 %v3931, %v4063
        %v4173 = vadd.f32 %v3932, %v4066
        %v4174 = vadd.f32 %v3933, %v4068
        %v4175 = vadd.f32 %v3934, %v4071
        %v4176 = vadd.f32 %v3935, %v4073
        %v4177 = vadd.f32 %v3936, %v4076
        %v4178 = vadd.f32 %v3937, %v4078
        %v4179 = vadd.f32 %v3938, %v4081
        %v4180 = vadd.f32 %v3939, %v4083
        %v4181 = vadd.f32 %v3940, %v4086
        %v4182 = vadd.f32 %v3941, %v4088
        %v4183 = vadd.f32 %v3942, %v4091
        %v4184 = vadd.f32 %v3943, %v4093
        %v4185 = vadd.f32 %v3944, %v4096
        %v4186 = vadd.f32 %v3945, %v4098
        %v4187 = vadd.f32 %v3946, %v4101
        %v4188 = vadd.f32 %v3947, %v4103
        %v4189 = vadd.f32 %v3948, %v4106
        %v4190 = vadd.f32 %v3949, %v4108
        %v4191 = vadd.f32 %v3950, %v4111
        %v4192 = vadd.f32 %v3951, %v4113
        %v4193 = vadd.f32 %v3952, %v4116
        %v4194 = vadd.f32 %v3953, %v4118
        %v4195 = vadd.f32 %v3954, %v4121
        %v4196 = vadd.f32 %v3955, %v4123
        %v4197 = vadd.f32 %v3956, %v4126
        %v4198 = vadd.f32 %v3957, %v4128
        %v4199 = vadd.f32 %v3958, %v4131
        %v4200 = vadd.f32 %v3959, %v4133
        %v4201 = vadd.f32 %v3960, %v4136
        %v4202 = vadd.f32 %v3961, %v4138
        %v4203 = vmax.f32 %v4171, 0.0
        %v4204 = vmax.f32 %v4172, 0.0
        %v4205 = vmax.f32 %v4173, 0.0
        %v4206 = vmax.f32 %v4174, 0.0
        %v4207 = vmax.f32 %v4175, 0.0
        %v4208 = vmax.f32 %v4176, 0.0
        %v4209 = vmax.f32 %v4177, 0.0
        %v4210 = vmax.f32 %v4178, 0.0
        %v4211 = vmax.f32 %v4179, 0.0
        %v4212 = vmax.f32 %v4180, 0.0
        %v4213 = vmax.f32 %v4181, 0.0
        %v4214 = vmax.f32 %v4182, 0.0
        %v4215 = vmax.f32 %v4183, 0.0
        %v4216 = vmax.f32 %v4184, 0.0
        %v4217 = vmax.f32 %v4185, 0.0
        %v4218 = vmax.f32 %v4186, 0.0
        %v4219 = vmax.f32 %v4187, 0.0
        %v4220 = vmax.f32 %v4188, 0.0
        %v4221 = vmax.f32 %v4189, 0.0
        %v4222 = vmax.f32 %v4190, 0.0
        %v4223 = vmax.f32 %v4191, 0.0
        %v4224 = vmax.f32 %v4192, 0.0
        %v4225 = vmax.f32 %v4193, 0.0
        %v4226 = vmax.f32 %v4194, 0.0
        %v4227 = vmax.f32 %v4195, 0.0
        %v4228 = vmax.f32 %v4196, 0.0
        %v4229 = vmax.f32 %v4197, 0.0
        %v4230 = vmax.f32 %v4198, 0.0
        %v4231 = vmax.f32 %v4199, 0.0
        %v4232 = vmax.f32 %v4200, 0.0
        %v4233 = vmax.f32 %v4201, 0.0
        %v4234 = vmax.f32 %v4202, 0.0
        %4235 = vst [vmem:[%s362] sm:$0xff] %v4203
        %4236 = vst [vmem:[%s362 + $0x8] sm:$0xff] %v4204
        %4237 = vst [vmem:[%s362 + $0x10] sm:$0xff] %v4205
        %4238 = vst [vmem:[%s362 + $0x18] sm:$0xff] %v4206
        %4239 = vst [vmem:[%s362 + $0x20] sm:$0xff] %v4207
        %4240 = vst [vmem:[%s362 + $0x28] sm:$0xff] %v4208
        %4241 = vst [vmem:[%s362 + $0x30] sm:$0xff] %v4209
        %4242 = vst [vmem:[%s362 + $0x38] sm:$0xff] %v4210
        %4243 = vst [vmem:[%s362 + $0x40] sm:$0xff] %v4211
        %4244 = vst [vmem:[%s362 + $0x48] sm:$0xff] %v4212
        %4245 = vst [vmem:[%s362 + $0x50] sm:$0xff] %v4213
        %4246 = vst [vmem:[%s362 + $0x58] sm:$0xff] %v4214
        %4247 = vst [vmem:[%s362 + $0x60] sm:$0xff] %v4215
        %4248 = vst [vmem:[%s362 + $0x68] sm:$0xff] %v4216
        %4249 = vst [vmem:[%s362 + $0x70] sm:$0xff] %v4217
        %4250 = vst [vmem:[%s362 + $0x78] sm:$0xff] %v4218
        %4251 = vst [vmem:[%s362 + $0x80] sm:$0xff] %v4219
        %4252 = vst [vmem:[%s362 + $0x88] sm:$0xff] %v4220
        %4253 = vst [vmem:[%s362 + $0x90] sm:$0xff] %v4221
        %4254 = vst [vmem:[%s362 + $0x98] sm:$0xff] %v4222
        %4255 = vst [vmem:[%s362 + $0xa0] sm:$0xff] %v4223
        %4256 = vst [vmem:[%s362 + $0xa8] sm:$0xff] %v4224
        %4257 = vst [vmem:[%s362 + $0xb0] sm:$0xff] %v4225
        %4258 = vst [vmem:[%s362 + $0xb8] sm:$0xff] %v4226
        %4259 = vst [vmem:[%s362 + $0xc0] sm:$0xff] %v4227
        %4260 = vst [vmem:[%s362 + $0xc8] sm:$0xff] %v4228
        %4261 = vst [vmem:[%s362 + $0xd0] sm:$0xff] %v4229
        %4262 = vst [vmem:[%s362 + $0xd8] sm:$0xff] %v4230
        %4263 = vst [vmem:[%s362 + $0xe0] sm:$0xff] %v4231
        %4264 = vst [vmem:[%s362 + $0xe8] sm:$0xff] %v4232
        %4265 = vst [vmem:[%s362 + $0xf0] sm:$0xff] %v4233
        %4266 = vst [vmem:[%s362 + $0xf8] sm:$0xff] %v4234
        %s4267 = sand.u32 %s186, 1
        %s4268 = scalar_lea.sflag [#allocation4], %s4267
        %s4269 = sand.u32 %s186, 1
        %s4270 = smul.addr %s4269, 256
        %s4271 = scalar_lea.vmem [#allocation11], %s4270
        // Predicated region
        $region69: #{tpu_custom_call.1} parent=47 // pred_check
          %p4272 = pneg %p196
        $region70: #{tpu_custom_call.1} parent=47 // pred_check_branch
          %4274 = sbr.rel (%p4272) target = $region72
        $region71: #{tpu_custom_call.1} parent=47 // pred_region
          %4276 = vsyncadd %s4268, 0
          %s4277 = smul.addr %s26, 32
          %s4278 = smul.addr %s4277, 8
          %s4279 = scalar_lea.hbm %s7, %s4278
          %s4280 = sshll.u32 %s4271, 4
          %s4281 = int_to_ptr.vmem [resolvable:$true] %s4280
          %s4282 = sshll.u32 %s4279, 4
          %s4283 = int_to_ptr.hbm [resolvable:$true] %s4282
          %4288 = dma.vmem_to_hbm [thread:$0]  %s4281, 4096, %s4283, %s4268, 128, 128, 8
        $region72: #{tpu_custom_call.1} parent=47 // pred_fallthru
          _
      $region48: #{tpu_custom_call.1} parent=5 // pred_fallthru
        _
      %p4289 = scmp.le.s32.totalorder 2, %s21
      // Predicated region
      $region73: #{tpu_custom_call.1} parent=5 // pred_check
        %p4290 = pneg %p4289
      $region74: #{tpu_custom_call.1} parent=5 // pred_check_branch
        %4292 = sbr.rel (%p4290) target = $region76
      $region75: #{tpu_custom_call.1} parent=5 // pred_region
        %s4293 = ssub.s32 %s21, 2
        // Predicated region
        $region77: #{tpu_custom_call.1} parent=75 // pred_check
          %p4294 = pneg %p202
        $region78: #{tpu_custom_call.1} parent=75 // pred_check_branch
          %4296 = sbr.rel (%p4294) target = $region80
        $region79: #{tpu_custom_call.1} parent=75 // pred_region
          %s4297 = sand.u32 %s187, 1
          %s4298 = scalar_lea.sflag [#allocation4], %s4297
          %s4299 = sand.u32 %s187, 1
          %s4300 = smul.addr %s4299, 256
          %s4301 = scalar_lea.vmem [#allocation11], %s4300
          %4303 = dma.done %s4298, 4096
        $region80: #{tpu_custom_call.1} parent=75 // pred_fallthru
          _
      $region76: #{tpu_custom_call.1} parent=5 // pred_fallthru
        _
    $region6: #{tpu_custom_call.1} parent=1 // loop_footer
      %s25 = sadd.s32 1, %s21
    $region7: #{tpu_custom_call.1} parent=1 // loop_footer_branch
      %20 = sbr.rel target = $region3
    $region8: #{tpu_custom_call.1} parent=1 // loop_exit
      _
    %4304 = vsyncpa [#allocation3], 1
    %s4305 = scalar_lea.sflag [#allocation3], 1
    %4306 = vsyncpa %s4305, 1
    %4307 = vsyncpa [#allocation6], 1
    %4308 = vsyncpa [#allocation9], 1
    %4309 = vsyncpa [#allocation4], 1
    %s4310 = scalar_lea.sflag [#allocation4], 1
    %4311 = vsyncpa %s4310, 1

</llo_original>
